<compile_context>
chip_gen: v5e
topology: v5e:2x2
jax: 0.10.0
libtpu: 0.0.40
codegen_flags: <defaults>
</compile_context>

<pallas_src>
import functools

import jax
import jax.numpy as jnp
from jax.experimental import pallas as pl
from jax.experimental.pallas import tpu as pltpu

F32 = jnp.float32
BF16 = jnp.bfloat16
NORM_EPS = 1e-8    # eps of _norm_no_nan
LN_EPS = 1e-5      # eps of nn.LayerNorm
_ALIGN = 16        # bf16 sublane tile rows (slab row blocks start 16-aligned)


def _ceil(a, m):
    return -(-a // m) * m


# ---------------------------------------------------------------------------
# In-kernel helpers
# ---------------------------------------------------------------------------
def _wterm(a, w_bf16, nr):
    """One K-split term of a weight matmul. rank-1 -> VPU broadcast, else MXU."""
    if nr == 1:
        return a * w_bf16.astype(F32)
    return jnp.dot(a.astype(BF16), w_bf16, preferred_element_type=F32)


def _tile3_mul(V, g):
    """V: [3B, C] * tile(g, (3, 1)); g: [B, C] or [B, 1]."""
    return V * jnp.tile(g, (3, 1))


def _pack(s, V3):
    b = s.shape[0]
    return jnp.concatenate([s, V3[0:b], V3[b:2 * b], V3[2 * b:3 * b]], axis=-1)


def _unpack(x, ns, nv):
    s = x[:, :ns]
    V3 = jnp.concatenate([x[:, ns:ns + nv],
                          x[:, ns + nv:ns + 2 * nv],
                          x[:, ns + 2 * nv:ns + 3 * nv]], axis=0)
    return s, V3


def _gvp(w_ref, meta, s_parts, v_parts, bs, bsv, scalar_act):
    """GVP with vector_gate=True, vector_act=None.

    s_parts / v_parts are the K-splits of the (conceptually concatenated) scalar /
    vector inputs; weights are loaded from the packed bf16 slab at point of use.
    """
    so, vo, h = meta["so"], meta["vo"], meta["h"]
    blocks = meta["blocks"]
    b = s_parts[0].shape[0]

    # Vh = cat(v_parts) @ wh   (sum over K-splits)
    Vh = None
    for k, v in enumerate(v_parts):
        off, nr, nc = blocks[f"wh{k}"]
        t = _wterm(v, w_ref[off:off + nr, 0:nc], nr)
        Vh = t if Vh is None else Vh + t                       # [3B, h]

    # per-channel vector norms (reference _norm_no_nan: clamp summed square, then sqrt)
    vx, vy, vz = Vh[0:b], Vh[b:2 * b], Vh[2 * b:3 * b]
    vn = jnp.sqrt(jnp.maximum(vx * vx + vy * vy + vz * vz, NORM_EPS))   # [B, h]

    # s_out = cat(s_parts, vn) @ ws + bs   (sum over K-splits, f32 bias)
    s_out = bs
    for k, sp in enumerate(s_parts):
        off, nr, nc = blocks[f"ws{k}"]
        s_out = s_out + _wterm(sp, w_ref[off:off + nr, 0:nc], nr)
    off, nr, nc = blocks["ws_vn"]
    s_out = s_out + _wterm(vn, w_ref[off:off + nr, 0:nc], nr)           # [B, so]

    # Vo = Vh @ wv, gated by sigmoid(wsv(s_out) + bsv)
    off, nr, nc = blocks["wv"]
    Vo = _wterm(Vh, w_ref[off:off + nr, 0:nc], nr)                      # [3B, vo]
    off, nr, nc = blocks["wsv"]
    # gate uses pre-scalar-act s_out (vector_act=None in this module)
    gate = jax.nn.sigmoid(_wterm(s_out, w_ref[off:off + nr, 0:nc], nr) + bsv)
    Vo = _tile3_mul(Vo, gate)

    if scalar_act:                                                      # SiLU
        s_out = s_out * jax.nn.sigmoid(s_out)
    return s_out, Vo


def _gvp_layernorm(s, V3, g, bta):
    b = s.shape[0]
    vx, vy, vz = V3[0:b], V3[b:2 * b], V3[2 * b:3 * b]
    nsq = jnp.maximum(vx * vx + vy * vy + vz * vz, NORM_EPS)            # [B, C]
    inv_vn = jax.lax.rsqrt(jnp.mean(nsq, axis=-1, keepdims=True))       # [B, 1]
    V3n = _tile3_mul(V3, inv_vn)
    mu = jnp.mean(s, axis=-1, keepdims=True)
    var = jnp.mean((s - mu) ** 2, axis=-1, keepdims=True)
    s_n = (s - mu) * jax.lax.rsqrt(var + LN_EPS) * g + bta
    return s_n, V3n


# ---------------------------------------------------------------------------
# Fused kernel: step 0 = prologue + layer 0; step l = layer l; last step += epilogue
# ---------------------------------------------------------------------------
def fused_kernel(pos_ref, hs_ref, hv_ref, srcc_ref, dstc_ref, dstr_ref,
                 edge_w_ref, ein_w_ref, eout_w_ref, esm_ref,
                 m1_ref, m2_ref, m3_ref, f1_ref, f2_ref, lsm_ref,
                 y_ref, x_vmem, e_vmem, *,
                 metas, num_layers, inv_norm, eps):
    ns = metas["emb_in"]["so"]
    nv = metas["emb_in"]["vo"]
    n_nodes = pos_ref.shape[0]
    n_edges = srcc_ref.shape[0]
    l = pl.program_id(0)

    def row(ref, i, n):                     # [1, n] f32 small-parameter row
        return ref[i:i + 1, 0:n]

    # ------------------- step 0: edge attrs + edge_embedding + embedding_in ----
    @pl.when(l == 0)
    def _embed():
        pos = pos_ref[...]
        src = srcc_ref[...]
        dst = dstc_ref[...]
        col = jax.lax.broadcasted_iota(jnp.int32, (n_edges, n_nodes), 1)
        sel = (col == src).astype(F32) - (col == dst).astype(F32)       # {-1,0,1}
        diff = jnp.dot(sel, pos, preferred_element_type=F32)            # pos[src]-pos[dst]
        e_len = jnp.sqrt(jnp.sum(diff * diff, axis=-1, keepdims=True))  # [E, 1]
        edir = diff / jnp.maximum(e_len, eps)                           # exact divide
        eV = jnp.concatenate([edir[:, 0:1], edir[:, 1:2], edir[:, 2:3]], axis=0)

        # edge_embedding = GVPLayerNorm((1,1)) + GVP((1,1)->(ns,1)), acts (None,None)
        es, eVn = _gvp_layernorm(e_len, eV, row(esm_ref, 0, 1), row(esm_ref, 1, 1))
        es, eVn = _gvp(edge_w_ref, metas["edge"], [es], [eVn],
                       row(esm_ref, 6, ns), row(esm_ref, 7, 1), scalar_act=False)
        e_vmem[...] = _pack(es, eVn)

        # embedding_in = GVPLayerNorm(in_dims) + GVP(in_dims->hidden), acts (None,None)
        si_in = metas["emb_in"]["si"]
        s0, V0 = _gvp_layernorm(hs_ref[...], hv_ref[...],
                                row(esm_ref, 2, si_in), row(esm_ref, 3, si_in))
        s0, V0 = _gvp(ein_w_ref, metas["emb_in"], [s0], [V0],
                      row(esm_ref, 8, ns), row(esm_ref, 9, nv), scalar_act=False)
        x_vmem[...] = _pack(s0, V0)

    # ------------------- GVPConvLayer l ----------------------------------------
    x = x_vmem[...]
    s, V3 = _unpack(x, ns, nv)
    es, eV3 = _unpack(e_vmem[...], ns, 1)

    src = srcc_ref[...]
    dst_c = dstc_ref[...]
    dst_r = dstr_ref[...]
    col = jax.lax.broadcasted_iota(jnp.int32, (n_edges, n_nodes), 1)
    oh_src = (col == src).astype(BF16)                      # [E, N] gather x_j
    oh_dst = (col == dst_c).astype(BF16)                    # [E, N] gather x_i
    rowi = jax.lax.broadcasted_iota(jnp.int32, (n_nodes, n_edges), 0)
    oh_scat = (rowi == dst_r).astype(BF16)                  # [N, E] scatter-add at i

    xb = x.astype(BF16)
    x_j = jnp.dot(oh_src, xb, preferred_element_type=F32)   # [E, ns+3nv]
    x_i = jnp.dot(oh_dst, xb, preferred_element_type=F32)
    s_j, Vj = _unpack(x_j, ns, nv)
    s_i, Vi = _unpack(x_i, ns, nv)

    # message GVPs on the K-splits of cat((s_j, v_j), edge_attr, (s_i, v_i))
    m_s, m_V = _gvp(m1_ref, metas["msg1"], [s_j, es, s_i], [Vj, eV3, Vi],
                    row(lsm_ref, 4, ns), row(lsm_ref, 5, nv), scalar_act=True)
    m_s, m_V = _gvp(m2_ref, metas["msg2"], [m_s], [m_V],
                    row(lsm_ref, 6, ns), row(lsm_ref, 7, nv), scalar_act=True)
    m_s, m_V = _gvp(m3_ref, metas["msg3"], [m_s], [m_V],
                    row(lsm_ref, 8, ns), row(lsm_ref, 9, nv), scalar_act=False)

    # aggregate (aggr='add') / normalization_factor  (drop_rate=0 -> no dropout)
    msg = _pack(m_s, m_V).astype(BF16)                      # [E, ns+3nv]
    agg = jnp.dot(oh_scat, msg, preferred_element_type=F32) * inv_norm
    d_s, dV = _unpack(agg, ns, nv)

    # residual + GVPLayerNorm
    s, V3 = _gvp_layernorm(s + d_s, V3 + dV, row(lsm_ref, 0, ns), row(lsm_ref, 1, ns))

    # feed-forward (2 GVPs) + residual + GVPLayerNorm
    so_ff, vo_ff = metas["ff1"]["so"], metas["ff1"]["vo"]
    f_s, f_V = _gvp(f1_ref, metas["ff1"], [s], [V3],
                    row(lsm_ref, 10, so_ff), row(lsm_ref, 11, vo_ff), scalar_act=True)
    f_s, f_V = _gvp(f2_ref, metas["ff2"], [f_s], [f_V],
                    row(lsm_ref, 12, ns), row(lsm_ref, 13, nv), scalar_act=False)
    s, V3 = _gvp_layernorm(s + f_s, V3 + f_V, row(lsm_ref, 2, ns), row(lsm_ref, 3, ns))

    x_vmem[...] = _pack(s, V3)

    # ------------------- last step: embedding_out (LN + GVP with SiLU) ---------
    @pl.when(l == num_layers - 1)
    def _out():
        so, vo = metas["emb_out"]["so"], metas["emb_out"]["vo"]
        ys, yV = _gvp_layernorm(s, V3, row(esm_ref, 4, ns), row(esm_ref, 5, ns))
        ys, yV = _gvp(eout_w_ref, metas["emb_out"], [ys], [yV],
                      row(esm_ref, 10, so), row(esm_ref, 11, vo), scalar_act=True)
        y_ref[...] = _pack(ys, yV)


# ---------------------------------------------------------------------------
# Host-side parameter init + bf16 slab packing (shapes follow the PyTorch module)
# ---------------------------------------------------------------------------
def _init_linear(key, fan_in, fan_out, bias=True):
    k1, k2 = jax.random.split(key)
    bound = 1.0 / (fan_in ** 0.5)
    w = jax.random.uniform(k1, (fan_in, fan_out), F32, -bound, bound)
    b = jax.random.uniform(k2, (1, fan_out), F32, -bound, bound) if bias else None
    return w, b


def _init_gvp(key, in_dims, out_dims):
    si, vi = in_dims
    so, vo = out_dims
    h = max(vi, vo)
    k = jax.random.split(key, 4)
    wh, _ = _init_linear(k[0], vi, h, bias=False)
    ws, bs = _init_linear(k[1], si + h, so)      # input order: [s ..., ||wh(v)||]
    wv, _ = _init_linear(k[2], h, vo, bias=False)
    wsv, bsv = _init_linear(k[3], so, vo)
    return dict(wh=wh, ws=ws, bs=bs, wv=wv, wsv=wsv, bsv=bsv,
                si=si, vi=vi, so=so, vo=vo, h=h)


def _pack_gvp_slab(p, s_sections, v_sections):
    """Pack one GVP's matrices into a single bf16 slab (16-row-aligned blocks)."""
    si, vi, so, vo, h = p["si"], p["vi"], p["so"], p["vo"], p["h"]
    assert sum(s_sections) == si and sum(v_sections) == vi
    C = max(h, so, vo)
    blocks = []
    off = 0
    for k, sec in enumerate(v_sections):
        blocks.append((f"wh{k}", p["wh"][off:off + sec, :], sec, h))
        off += sec
    blocks.append(("wv", p["wv"], h, vo))
    off = 0
    for k, sec in enumerate(s_sections):
        blocks.append((f"ws{k}", p["ws"][off:off + sec, :], sec, so))
        off += sec
    blocks.append(("ws_vn", p["ws"][si:si + h, :], h, so))
    blocks.append(("wsv", p["wsv"], so, vo))

    meta = dict(si=si, vi=vi, so=so, vo=vo, h=h, blocks={})
    rows, r = [], 0
    for name, w, nr, nc in blocks:
        pad = jnp.zeros((_ceil(nr, _ALIGN), C), F32).at[:nr, :nc].set(w)
        rows.append(pad)
        meta["blocks"][name] = (r, nr, nc)
        r += _ceil(nr, _ALIGN)
    return jnp.concatenate(rows, axis=0).astype(BF16), meta


def _pack_rows(rows):
    """Pack [1, k] f32 vectors (LN gammas/betas, GVP biases) into one f32 slab."""
    width = _ceil(max(128, max(r.shape[-1] for r in rows)), 128)
    slab = jnp.zeros((_ceil(len(rows), 8), width), F32)
    for i, rvec in enumerate(rows):
        slab = slab.at[i, :rvec.shape[-1]].set(rvec.reshape(-1))
    return slab


def init_network(key, in_dims, out_dims, hidden_dims, num_layers):
    assert num_layers >= 1
    hs, hv = hidden_dims
    keys = jax.random.split(key, 3 + num_layers)

    p_edge = _init_gvp(keys[0], (1, 1), (hs, 1))
    p_in = _init_gvp(keys[1], in_dims, hidden_dims)
    p_out = _init_gvp(keys[2], hidden_dims, out_dims)
    edge_slab, m_edge = _pack_gvp_slab(p_edge, [1], [1])
    in_slab, m_in = _pack_gvp_slab(p_in, [in_dims[0]], [in_dims[1]])
    out_slab, m_out = _pack_gvp_slab(p_out, [hs], [hv])

    embed_smalls = _pack_rows([
        jnp.ones((1, 1), F32), jnp.zeros((1, 1), F32),                     # edge LN
        jnp.ones((1, in_dims[0]), F32), jnp.zeros((1, in_dims[0]), F32),   # emb_in LN
        jnp.ones((1, hs), F32), jnp.zeros((1, hs), F32),                   # emb_out LN
        p_edge["bs"], p_edge["bsv"], p_in["bs"], p_in["bsv"],
        p_out["bs"], p_out["bsv"],
    ])

    msg_in = (3 * hs, 2 * hv + 1)           # cat(s_j, e_s, s_i) / cat(v_j, e_v, v_i)
    ff_hid = (4 * hs, 2 * hv)
    metas = {"edge": m_edge, "emb_in": m_in, "emb_out": m_out}
    acc = {k: [] for k in ["msg1", "msg2", "msg3", "ff1", "ff2", "smalls"]}
    for li in range(num_layers):
        lk = jax.random.split(keys[3 + li], 5)
        p1 = _init_gvp(lk[0], msg_in, hidden_dims)
        p2 = _init_gvp(lk[1], hidden_dims, hidden_dims)
        p3 = _init_gvp(lk[2], hidden_dims, hidden_dims)
        pf1 = _init_gvp(lk[3], hidden_dims, ff_hid)
        pf2 = _init_gvp(lk[4], ff_hid, hidden_dims)
        s1, metas["msg1"] = _pack_gvp_slab(p1, [hs, hs, hs], [hv, 1, hv])
        s2, metas["msg2"] = _pack_gvp_slab(p2, [hs], [hv])
        s3, metas["msg3"] = _pack_gvp_slab(p3, [hs], [hv])
        sf1, metas["ff1"] = _pack_gvp_slab(pf1, [hs], [hv])
        sf2, metas["ff2"] = _pack_gvp_slab(pf2, [ff_hid[0]], [ff_hid[1]])
        sm = _pack_rows([
            jnp.ones((1, hs), F32), jnp.zeros((1, hs), F32),               # LN1
            jnp.ones((1, hs), F32), jnp.zeros((1, hs), F32),               # LN2
            p1["bs"], p1["bsv"], p2["bs"], p2["bsv"], p3["bs"], p3["bsv"],
            pf1["bs"], pf1["bsv"], pf2["bs"], pf2["bsv"],
        ])
        for k, v in zip(["msg1", "msg2", "msg3", "ff1", "ff2", "smalls"],
                        [s1, s2, s3, sf1, sf2, sm]):
            acc[k].append(v)

    weights = dict(
        edge_slab=edge_slab, emb_in_slab=in_slab, emb_out_slab=out_slab,
        embed_smalls=embed_smalls,
        msg1_slab=jnp.stack(acc["msg1"]), msg2_slab=jnp.stack(acc["msg2"]),
        msg3_slab=jnp.stack(acc["msg3"]), ff1_slab=jnp.stack(acc["ff1"]),
        ff2_slab=jnp.stack(acc["ff2"]), layer_smalls=jnp.stack(acc["smalls"]),
    )
    return weights, metas


# ---------------------------------------------------------------------------
# Full GVPNetwork forward (one pallas_call)
# ---------------------------------------------------------------------------
def gvp_network_forward(weights, metas, h_s, h_V, pos, edge_index,
                        normalization_factor=100.0, eps=1e-4):
    N = h_s.shape[0]
    E = edge_index.shape[1]
    assert N % 8 == 0 and E % 8 == 0, "demo requires sublane-aligned N and E"
    ns, nv = metas["emb_in"]["so"], metas["emb_in"]["vo"]
    so, vo = metas["emb_out"]["so"], metas["emb_out"]["vo"]
    L = weights["msg1_slab"].shape[0]

    src_col = edge_index[0].astype(jnp.int32).reshape(E, 1)
    dst_col = edge_index[1].astype(jnp.int32).reshape(E, 1)
    dst_row = edge_index[1].astype(jnp.int32).reshape(1, E)
    hV3 = h_V.reshape(3 * N, h_V.shape[-1])

    def cspec(a):   # whole array, resident across the grid (fetched once)
        return pl.BlockSpec(a.shape, lambda l: (0,) * a.ndim)

    def lspec(a):   # per-layer stacked slab, streamed/pipelined over the grid
        return pl.BlockSpec((None,) + a.shape[1:], lambda l: (l, 0, 0))

    inputs = [pos, h_s, hV3, src_col, dst_col, dst_row,
              weights["edge_slab"], weights["emb_in_slab"],
              weights["emb_out_slab"], weights["embed_smalls"],
              weights["msg1_slab"], weights["msg2_slab"], weights["msg3_slab"],
              weights["ff1_slab"], weights["ff2_slab"], weights["layer_smalls"]]
    in_specs = [cspec(x) for x in inputs[:10]] + [lspec(x) for x in inputs[10:]]

    kernel = functools.partial(
        fused_kernel, metas=metas, num_layers=L,
        inv_norm=1.0 / normalization_factor, eps=eps)

    y = pl.pallas_call(
        kernel,
        grid=(L,),
        in_specs=in_specs,
        out_specs=pl.BlockSpec((N, so + 3 * vo), lambda l: (0, 0)),
        out_shape=jax.ShapeDtypeStruct((N, so + 3 * vo), F32),
        scratch_shapes=[pltpu.VMEM((N, ns + 3 * nv), F32),   # node state
                        pltpu.VMEM((E, ns + 3), F32)],       # edge state
        compiler_params=pltpu.CompilerParams(
            dimension_semantics=("arbitrary",)),              # state carried across steps
    )(*inputs)

    out_s = y[:, :so]
    out_V = jnp.stack([y[:, so:so + vo],
                       y[:, so + vo:so + 2 * vo],
                       y[:, so + 2 * vo:so + 3 * vo]], axis=0)
    return out_s, out_V


# ---------------------------------------------------------------------------
if __name__ == "__main__":
    in_dims = (16, 4)
    hidden_dims = (32, 8)
    out_dims = (8, 2)
    num_layers = 2
    N, E = 8, 16   # multiples of 8 (sublane-aligned row-stacked vectors)

    key = jax.random.PRNGKey(0)
    k1, k2, k3, k4, k5, kp = jax.random.split(key, 6)
    h_s = jax.random.normal(k1, (N, in_dims[0]), F32)
    h_V = jax.random.normal(k2, (3, N, in_dims[1]), F32)     # [3, N, C]
    pos = jax.random.normal(k3, (N, 3), F32)
    src = jax.random.randint(k4, (E,), 0, N)
    dst = (src + 1 + jax.random.randint(k5, (E,), 0, N - 1)) % N   # src != dst
    edge_index = jnp.stack([src, dst], axis=0).astype(jnp.int32)

    weights, metas = init_network(kp, in_dims, out_dims, hidden_dims, num_layers)

    fwd = jax.jit(lambda w, s_, v_, p_, e_:
                  gvp_network_forward(w, metas, s_, v_, p_, e_))
    out_s, out_V = fwd(weights, h_s, h_V, pos, edge_index)
    jax.block_until_ready((out_s, out_V))
    assert out_s.shape == (N, out_dims[0]) and out_V.shape == (3, N, out_dims[1])
    assert bool(jnp.all(jnp.isfinite(out_s))) and bool(jnp.all(jnp.isfinite(out_V)))
    print("KERNEL_OK")
</pallas_src>

<mosaic_0001>
module attributes {stable_mosaic.version = 11 : i64} {
  func.func @fused_kernel(%arg0: i32, %arg1: memref<8x3xf32, #tpu.memory_space<vmem>>, %arg2: memref<8x16xf32, #tpu.memory_space<vmem>>, %arg3: memref<24x4xf32, #tpu.memory_space<vmem>>, %arg4: memref<16x1xi32, #tpu.memory_space<vmem>>, %arg5: memref<16x1xi32, #tpu.memory_space<vmem>>, %arg6: memref<1x16xi32, #tpu.memory_space<vmem>>, %arg7: memref<96x32xbf16, #tpu.memory_space<vmem>>, %arg8: memref<96x32xbf16, #tpu.memory_space<vmem>>, %arg9: memref<96x8xbf16, #tpu.memory_space<vmem>>, %arg10: memref<16x128xf32, #tpu.memory_space<vmem>>, %arg11: memref<1x240x32xbf16, #tpu.memory_space<vmem>>, %arg12: memref<1x112x32xbf16, #tpu.memory_space<vmem>>, %arg13: memref<1x112x32xbf16, #tpu.memory_space<vmem>>, %arg14: memref<1x208x128xbf16, #tpu.memory_space<vmem>>, %arg15: memref<1x208x32xbf16, #tpu.memory_space<vmem>>, %arg16: memref<1x16x128xf32, #tpu.memory_space<vmem>>, %arg17: memref<8x14xf32, #tpu.memory_space<vmem>>, %arg18: memref<8x56xf32, #tpu.memory_space<vmem>>, %arg19: memref<16x35xf32, #tpu.memory_space<vmem>>) attributes {dimension_semantics = [#tpu.dimension_semantics<arbitrary>], iteration_bounds = array<i64: 2>, scalar_prefetch = 0 : i64, scratch_operands = 2 : i64, tpu.core_type = #tpu.core_type<tc>, window_params = [{pipeline_mode = #tpu.pipeline_mode<synchronous>, transform_indices = @transform_0, window_bounds = array<i64: 8, 3>}, {pipeline_mode = #tpu.pipeline_mode<synchronous>, transform_indices = @transform_1, window_bounds = array<i64: 8, 16>}, {pipeline_mode = #tpu.pipeline_mode<synchronous>, transform_indices = @transform_2, window_bounds = array<i64: 24, 4>}, {pipeline_mode = #tpu.pipeline_mode<synchronous>, transform_indices = @transform_3, window_bounds = array<i64: 16, 1>}, {pipeline_mode = #tpu.pipeline_mode<synchronous>, transform_indices = @transform_4, window_bounds = array<i64: 16, 1>}, {pipeline_mode = #tpu.pipeline_mode<synchronous>, transform_indices = @transform_5, window_bounds = array<i64: 1, 16>}, {pipeline_mode = #tpu.pipeline_mode<synchronous>, transform_indices = @transform_6, window_bounds = array<i64: 96, 32>}, {pipeline_mode = #tpu.pipeline_mode<synchronous>, transform_indices = @transform_7, window_bounds = array<i64: 96, 32>}, {pipeline_mode = #tpu.pipeline_mode<synchronous>, transform_indices = @transform_8, window_bounds = array<i64: 96, 8>}, {pipeline_mode = #tpu.pipeline_mode<synchronous>, transform_indices = @transform_9, window_bounds = array<i64: 16, 128>}, {transform_indices = @transform_10, window_bounds = array<i64: 1, 240, 32>}, {transform_indices = @transform_11, window_bounds = array<i64: 1, 112, 32>}, {transform_indices = @transform_12, window_bounds = array<i64: 1, 112, 32>}, {transform_indices = @transform_13, window_bounds = array<i64: 1, 208, 128>}, {transform_indices = @transform_14, window_bounds = array<i64: 1, 208, 32>}, {transform_indices = @transform_15, window_bounds = array<i64: 1, 16, 128>}, {pipeline_mode = #tpu.pipeline_mode<synchronous>, transform_indices = @transform_16, window_bounds = array<i64: 8, 14>}]} {
    %c0_i32 = arith.constant 0 : i32
    %0 = arith.cmpi eq, %arg0, %c0_i32 : i32
    %1 = arith.extui %0 : i1 to i32
    %c0_i32_0 = arith.constant 0 : i32
    %2 = arith.cmpi ne, %1, %c0_i32_0 : i32
    scf.if %2 {
      %c0_179 = arith.constant 0 : index
      %c0_180 = arith.constant 0 : index
      %436 = vector.load %arg1[%c0_179, %c0_180] : memref<8x3xf32, #tpu.memory_space<vmem>>, vector<8x3xf32>
      %c0_181 = arith.constant 0 : index
      %c0_182 = arith.constant 0 : index
      %437 = vector.load %arg4[%c0_181, %c0_182] : memref<16x1xi32, #tpu.memory_space<vmem>>, vector<16x1xi32>
      %c0_183 = arith.constant 0 : index
      %c0_184 = arith.constant 0 : index
      %438 = vector.load %arg5[%c0_183, %c0_184] : memref<16x1xi32, #tpu.memory_space<vmem>>, vector<16x1xi32>
      %439 = tpu.iota {dimensions = array<i32: 1>} : vector<16x8xi32>
      %440 = vector.broadcast %437 : vector<16x1xi32> to vector<16x8xi32>
      %441 = arith.cmpi eq, %439, %440 : vector<16x8xi32>
      %442 = arith.extui %441 : vector<16x8xi1> to vector<16x8xi32>
      %443 = arith.sitofp %442 : vector<16x8xi32> to vector<16x8xf32>
      %444 = vector.broadcast %438 : vector<16x1xi32> to vector<16x8xi32>
      %445 = arith.cmpi eq, %439, %444 : vector<16x8xi32>
      %446 = arith.extui %445 : vector<16x8xi1> to vector<16x8xi32>
      %447 = arith.sitofp %446 : vector<16x8xi32> to vector<16x8xf32>
      %448 = arith.subf %443, %447 : vector<16x8xf32>
      %cst_185 = arith.constant dense<0.000000e+00> : vector<16x3xf32>
      %449 = tpu.matmul %448, %436, %cst_185 {dimension_numbers = #tpu.dot_dimension_numbers<[1], [0], [0], [1], [0, 0, 1, 1], [], []>} : vector<16x8xf32>, vector<8x3xf32>, vector<16x3xf32> -> vector<16x3xf32>
      %450 = arith.mulf %449, %449 : vector<16x3xf32>
      %cst_186 = arith.constant dense<0.000000e+00> : vector<16xf32>
      %451 = vector.multi_reduction <add>, %450, %cst_186 [1] : vector<16x3xf32> to vector<16xf32>
      %452 = vector.shape_cast %451 : vector<16xf32> to vector<16x1xf32>
      %453 = math.sqrt %452 : vector<16x1xf32>
      %cst_187 = arith.constant 9.99999974E-5 : f32
      %454 = vector.broadcast %cst_187 : f32 to vector<16x1xf32>
      %455 = arith.maximumf %453, %454 : vector<16x1xf32>
      %456 = vector.broadcast %455 : vector<16x1xf32> to vector<16x3xf32>
      %457 = arith.divf %449, %456 : vector<16x3xf32>
      %458 = vector.extract_strided_slice %457 {offsets = [0, 0], sizes = [16, 1], strides = [1, 1]} : vector<16x3xf32> to vector<16x1xf32>
      %459 = vector.extract_strided_slice %457 {offsets = [0, 1], sizes = [16, 1], strides = [1, 1]} : vector<16x3xf32> to vector<16x1xf32>
      %460 = vector.extract_strided_slice %457 {offsets = [0, 2], sizes = [16, 1], strides = [1, 1]} : vector<16x3xf32> to vector<16x1xf32>
      %461 = tpu.concatenate %458, %459, %460 in 0 : vector<16x1xf32>, vector<16x1xf32>, vector<16x1xf32> -> vector<48x1xf32>
      %c0_188 = arith.constant 0 : index
      %c0_189 = arith.constant 0 : index
      %462 = vector.load %arg10[%c0_188, %c0_189] : memref<16x128xf32, #tpu.memory_space<vmem>>, vector<1x1xf32>
      %c1_190 = arith.constant 1 : index
      %c0_191 = arith.constant 0 : index
      %463 = vector.load %arg10[%c1_190, %c0_191] : memref<16x128xf32, #tpu.memory_space<vmem>>, vector<1x1xf32>
      %464 = vector.extract_strided_slice %461 {offsets = [0, 0], sizes = [16, 1], strides = [1, 1]} : vector<48x1xf32> to vector<16x1xf32>
      %465 = vector.extract_strided_slice %461 {offsets = [16, 0], sizes = [16, 1], strides = [1, 1]} : vector<48x1xf32> to vector<16x1xf32>
      %466 = vector.extract_strided_slice %461 {offsets = [32, 0], sizes = [16, 1], strides = [1, 1]} : vector<48x1xf32> to vector<16x1xf32>
      %467 = arith.mulf %464, %464 : vector<16x1xf32>
      %468 = arith.mulf %465, %465 : vector<16x1xf32>
      %469 = arith.addf %467, %468 : vector<16x1xf32>
      %470 = arith.mulf %466, %466 : vector<16x1xf32>
      %471 = arith.addf %469, %470 : vector<16x1xf32>
      %cst_192 = arith.constant 9.99999993E-9 : f32
      %472 = vector.broadcast %cst_192 : f32 to vector<16x1xf32>
      %473 = arith.maximumf %471, %472 : vector<16x1xf32>
      %cst_193 = arith.constant dense<0.000000e+00> : vector<16xf32>
      %474 = vector.multi_reduction <add>, %473, %cst_193 [1] : vector<16x1xf32> to vector<16xf32>
      %475 = vector.shape_cast %474 : vector<16xf32> to vector<16x1xf32>
      %cst_194 = arith.constant 1.000000e+00 : f32
      %476 = vector.broadcast %cst_194 : f32 to vector<16x1xf32>
      %477 = arith.divf %475, %476 : vector<16x1xf32>
      %478 = math.rsqrt %477 : vector<16x1xf32>
      %479 = tpu.concatenate %478, %478, %478 in 0 : vector<16x1xf32>, vector<16x1xf32>, vector<16x1xf32> -> vector<48x1xf32>
      %480 = arith.mulf %461, %479 : vector<48x1xf32>
      %cst_195 = arith.constant dense<0.000000e+00> : vector<16xf32>
      %481 = vector.multi_reduction <add>, %453, %cst_195 [1] : vector<16x1xf32> to vector<16xf32>
      %482 = vector.shape_cast %481 : vector<16xf32> to vector<16x1xf32>
      %cst_196 = arith.constant 1.000000e+00 : f32
      %483 = vector.broadcast %cst_196 : f32 to vector<16x1xf32>
      %484 = arith.divf %482, %483 : vector<16x1xf32>
      %485 = arith.subf %453, %484 : vector<16x1xf32>
      %486 = arith.mulf %485, %485 : vector<16x1xf32>
      %cst_197 = arith.constant dense<0.000000e+00> : vector<16xf32>
      %487 = vector.multi_reduction <add>, %486, %cst_197 [1] : vector<16x1xf32> to vector<16xf32>
      %488 = vector.shape_cast %487 : vector<16xf32> to vector<16x1xf32>
      %cst_198 = arith.constant 1.000000e+00 : f32
      %489 = vector.broadcast %cst_198 : f32 to vector<16x1xf32>
      %490 = arith.divf %488, %489 : vector<16x1xf32>
      %491 = arith.subf %453, %484 : vector<16x1xf32>
      %cst_199 = arith.constant 9.99999974E-6 : f32
      %492 = vector.broadcast %cst_199 : f32 to vector<16x1xf32>
      %493 = arith.addf %490, %492 : vector<16x1xf32>
      %494 = math.rsqrt %493 : vector<16x1xf32>
      %495 = arith.mulf %491, %494 : vector<16x1xf32>
      %496 = vector.broadcast %462 : vector<1x1xf32> to vector<16x1xf32>
      %497 = arith.mulf %495, %496 : vector<16x1xf32>
      %498 = vector.broadcast %463 : vector<1x1xf32> to vector<16x1xf32>
      %499 = arith.addf %497, %498 : vector<16x1xf32>
      %c6_200 = arith.constant 6 : index
      %c0_201 = arith.constant 0 : index
      %500 = vector.load %arg10[%c6_200, %c0_201] : memref<16x128xf32, #tpu.memory_space<vmem>>, vector<1x32xf32>
      %c7_202 = arith.constant 7 : index
      %c0_203 = arith.constant 0 : index
      %501 = vector.load %arg10[%c7_202, %c0_203] : memref<16x128xf32, #tpu.memory_space<vmem>>, vector<1x1xf32>
      %c0_204 = arith.constant 0 : index
      %c0_205 = arith.constant 0 : index
      %502 = vector.load %arg7[%c0_204, %c0_205] : memref<96x32xbf16, #tpu.memory_space<vmem>>, vector<1x1xbf16>
      %503 = arith.extf %502 : vector<1x1xbf16> to vector<1x1xf32>
      %504 = vector.broadcast %503 : vector<1x1xf32> to vector<48x1xf32>
      %505 = arith.mulf %480, %504 : vector<48x1xf32>
      %506 = vector.extract_strided_slice %505 {offsets = [0, 0], sizes = [16, 1], strides = [1, 1]} : vector<48x1xf32> to vector<16x1xf32>
      %507 = vector.extract_strided_slice %505 {offsets = [16, 0], sizes = [16, 1], strides = [1, 1]} : vector<48x1xf32> to vector<16x1xf32>
      %508 = vector.extract_strided_slice %505 {offsets = [32, 0], sizes = [16, 1], strides = [1, 1]} : vector<48x1xf32> to vector<16x1xf32>
      %509 = arith.mulf %506, %506 : vector<16x1xf32>
      %510 = arith.mulf %507, %507 : vector<16x1xf32>
      %511 = arith.addf %509, %510 : vector<16x1xf32>
      %512 = arith.mulf %508, %508 : vector<16x1xf32>
      %513 = arith.addf %511, %512 : vector<16x1xf32>
      %cst_206 = arith.constant 9.99999993E-9 : f32
      %514 = vector.broadcast %cst_206 : f32 to vector<16x1xf32>
      %515 = arith.maximumf %513, %514 : vector<16x1xf32>
      %516 = math.sqrt %515 : vector<16x1xf32>
      %c32_207 = arith.constant 32 : index
      %c0_208 = arith.constant 0 : index
      %517 = vector.load %arg7[%c32_207, %c0_208] : memref<96x32xbf16, #tpu.memory_space<vmem>>, vector<1x32xbf16>
      %518 = arith.extf %517 : vector<1x32xbf16> to vector<1x32xf32>
      %519 = vector.broadcast %499 : vector<16x1xf32> to vector<16x32xf32>
      %520 = vector.broadcast %518 : vector<1x32xf32> to vector<16x32xf32>
      %521 = arith.mulf %519, %520 : vector<16x32xf32>
      %522 = vector.broadcast %500 : vector<1x32xf32> to vector<16x32xf32>
      %523 = arith.addf %522, %521 : vector<16x32xf32>
      %c48_209 = arith.constant 48 : index
      %c0_210 = arith.constant 0 : index
      %524 = vector.load %arg7[%c48_209, %c0_210] : memref<96x32xbf16, #tpu.memory_space<vmem>>, vector<1x32xbf16>
      %525 = arith.extf %524 : vector<1x32xbf16> to vector<1x32xf32>
      %526 = vector.broadcast %516 : vector<16x1xf32> to vector<16x32xf32>
      %527 = vector.broadcast %525 : vector<1x32xf32> to vector<16x32xf32>
      %528 = arith.mulf %526, %527 : vector<16x32xf32>
      %529 = arith.addf %523, %528 : vector<16x32xf32>
      %c16_211 = arith.constant 16 : index
      %c0_212 = arith.constant 0 : index
      %530 = vector.load %arg7[%c16_211, %c0_212] : memref<96x32xbf16, #tpu.memory_space<vmem>>, vector<1x1xbf16>
      %531 = arith.extf %530 : vector<1x1xbf16> to vector<1x1xf32>
      %532 = vector.broadcast %531 : vector<1x1xf32> to vector<48x1xf32>
      %533 = arith.mulf %505, %532 : vector<48x1xf32>
      %c64_213 = arith.constant 64 : index
      %c0_214 = arith.constant 0 : index
      %534 = vector.load %arg7[%c64_213, %c0_214] : memref<96x32xbf16, #tpu.memory_space<vmem>>, vector<32x1xbf16>
      %535 = arith.truncf %529 : vector<16x32xf32> to vector<16x32xbf16>
      %cst_215 = arith.constant dense<0.000000e+00> : vector<16x1xf32>
      %536 = tpu.matmul %535, %534, %cst_215 {dimension_numbers = #tpu.dot_dimension_numbers<[1], [0], [0], [1], [0, 0, 1, 1], [], []>} : vector<16x32xbf16>, vector<32x1xbf16>, vector<16x1xf32> -> vector<16x1xf32>
      %537 = vector.broadcast %501 : vector<1x1xf32> to vector<16x1xf32>
      %538 = arith.addf %536, %537 : vector<16x1xf32>
      %539 = arith.negf %538 : vector<16x1xf32>
      %540 = math.exp %539 : vector<16x1xf32>
      %cst_216 = arith.constant 1.000000e+00 : f32
      %541 = vector.broadcast %cst_216 : f32 to vector<16x1xf32>
      %542 = arith.addf %541, %540 : vector<16x1xf32>
      %543 = arith.divf %541, %542 : vector<16x1xf32>
      %544 = tpu.concatenate %543, %543, %543 in 0 : vector<16x1xf32>, vector<16x1xf32>, vector<16x1xf32> -> vector<48x1xf32>
      %545 = arith.mulf %533, %544 : vector<48x1xf32>
      %546 = vector.extract_strided_slice %545 {offsets = [0, 0], sizes = [16, 1], strides = [1, 1]} : vector<48x1xf32> to vector<16x1xf32>
      %547 = vector.extract_strided_slice %545 {offsets = [16, 0], sizes = [16, 1], strides = [1, 1]} : vector<48x1xf32> to vector<16x1xf32>
      %548 = vector.extract_strided_slice %545 {offsets = [32, 0], sizes = [16, 1], strides = [1, 1]} : vector<48x1xf32> to vector<16x1xf32>
      %549 = tpu.concatenate %529, %546, %547, %548 in 1 : vector<16x32xf32>, vector<16x1xf32>, vector<16x1xf32>, vector<16x1xf32> -> vector<16x35xf32>
      %c0_217 = arith.constant 0 : index
      %c0_218 = arith.constant 0 : index
      %550 = vector.load %arg19[%c0_217, %c0_218] : memref<16x35xf32, #tpu.memory_space<vmem>>, vector<16x35xf32>
      tpu.vector_store %arg19[%c0_217, %c0_218], %549 {strides = array<i32>} : memref<16x35xf32, #tpu.memory_space<vmem>>, vector<16x35xf32>,
      %c0_219 = arith.constant 0 : index
      %c0_220 = arith.constant 0 : index
      %551 = vector.load %arg2[%c0_219, %c0_220] : memref<8x16xf32, #tpu.memory_space<vmem>>, vector<8x16xf32>
      %c0_221 = arith.constant 0 : index
      %c0_222 = arith.constant 0 : index
      %552 = vector.load %arg3[%c0_221, %c0_222] : memref<24x4xf32, #tpu.memory_space<vmem>>, vector<24x4xf32>
      %c2_223 = arith.constant 2 : index
      %c0_224 = arith.constant 0 : index
      %553 = vector.load %arg10[%c2_223, %c0_224] : memref<16x128xf32, #tpu.memory_space<vmem>>, vector<1x16xf32>
      %c3_225 = arith.constant 3 : index
      %c0_226 = arith.constant 0 : index
      %554 = vector.load %arg10[%c3_225, %c0_226] : memref<16x128xf32, #tpu.memory_space<vmem>>, vector<1x16xf32>
      %555 = vector.extract_strided_slice %552 {offsets = [0, 0], sizes = [8, 4], strides = [1, 1]} : vector<24x4xf32> to vector<8x4xf32>
      %556 = vector.extract_strided_slice %552 {offsets = [8, 0], sizes = [8, 4], strides = [1, 1]} : vector<24x4xf32> to vector<8x4xf32>
      %557 = vector.extract_strided_slice %552 {offsets = [16, 0], sizes = [8, 4], strides = [1, 1]} : vector<24x4xf32> to vector<8x4xf32>
      %558 = arith.mulf %555, %555 : vector<8x4xf32>
      %559 = arith.mulf %556, %556 : vector<8x4xf32>
      %560 = arith.addf %558, %559 : vector<8x4xf32>
      %561 = arith.mulf %557, %557 : vector<8x4xf32>
      %562 = arith.addf %560, %561 : vector<8x4xf32>
      %cst_227 = arith.constant 9.99999993E-9 : f32
      %563 = vector.broadcast %cst_227 : f32 to vector<8x4xf32>
      %564 = arith.maximumf %562, %563 : vector<8x4xf32>
      %cst_228 = arith.constant dense<0.000000e+00> : vector<8xf32>
      %565 = vector.multi_reduction <add>, %564, %cst_228 [1] : vector<8x4xf32> to vector<8xf32>
      %566 = vector.shape_cast %565 : vector<8xf32> to vector<8x1xf32>
      %cst_229 = arith.constant 4.000000e+00 : f32
      %567 = vector.broadcast %cst_229 : f32 to vector<8x1xf32>
      %568 = arith.divf %566, %567 : vector<8x1xf32>
      %569 = math.rsqrt %568 : vector<8x1xf32>
      %570 = tpu.concatenate %569, %569, %569 in 0 : vector<8x1xf32>, vector<8x1xf32>, vector<8x1xf32> -> vector<24x1xf32>
      %571 = vector.broadcast %570 : vector<24x1xf32> to vector<24x4xf32>
      %572 = arith.mulf %552, %571 : vector<24x4xf32>
      %cst_230 = arith.constant dense<0.000000e+00> : vector<8xf32>
      %573 = vector.multi_reduction <add>, %551, %cst_230 [1] : vector<8x16xf32> to vector<8xf32>
      %574 = vector.shape_cast %573 : vector<8xf32> to vector<8x1xf32>
      %cst_231 = arith.constant 1.600000e+01 : f32
      %575 = vector.broadcast %cst_231 : f32 to vector<8x1xf32>
      %576 = arith.divf %574, %575 : vector<8x1xf32>
      %577 = vector.broadcast %576 : vector<8x1xf32> to vector<8x16xf32>
      %578 = arith.subf %551, %577 : vector<8x16xf32>
      %579 = arith.mulf %578, %578 : vector<8x16xf32>
      %cst_232 = arith.constant dense<0.000000e+00> : vector<8xf32>
      %580 = vector.multi_reduction <add>, %579, %cst_232 [1] : vector<8x16xf32> to vector<8xf32>
      %581 = vector.shape_cast %580 : vector<8xf32> to vector<8x1xf32>
      %cst_233 = arith.constant 1.600000e+01 : f32
      %582 = vector.broadcast %cst_233 : f32 to vector<8x1xf32>
      %583 = arith.divf %581, %582 : vector<8x1xf32>
      %584 = vector.broadcast %576 : vector<8x1xf32> to vector<8x16xf32>
      %585 = arith.subf %551, %584 : vector<8x16xf32>
      %cst_234 = arith.constant 9.99999974E-6 : f32
      %586 = vector.broadcast %cst_234 : f32 to vector<8x1xf32>
      %587 = arith.addf %583, %586 : vector<8x1xf32>
      %588 = math.rsqrt %587 : vector<8x1xf32>
      %589 = vector.broadcast %588 : vector<8x1xf32> to vector<8x16xf32>
      %590 = arith.mulf %585, %589 : vector<8x16xf32>
      %591 = vector.broadcast %553 : vector<1x16xf32> to vector<8x16xf32>
      %592 = arith.mulf %590, %591 : vector<8x16xf32>
      %593 = vector.broadcast %554 : vector<1x16xf32> to vector<8x16xf32>
      %594 = arith.addf %592, %593 : vector<8x16xf32>
      %c8_235 = arith.constant 8 : index
      %c0_236 = arith.constant 0 : index
      %595 = vector.load %arg10[%c8_235, %c0_236] : memref<16x128xf32, #tpu.memory_space<vmem>>, vector<1x32xf32>
      %c9_237 = arith.constant 9 : index
      %c0_238 = arith.constant 0 : index
      %596 = vector.load %arg10[%c9_237, %c0_238] : memref<16x128xf32, #tpu.memory_space<vmem>>, vector<1x8xf32>
      %c0_239 = arith.constant 0 : index
      %c0_240 = arith.constant 0 : index
      %597 = vector.load %arg8[%c0_239, %c0_240] : memref<96x32xbf16, #tpu.memory_space<vmem>>, vector<4x8xbf16>
      %598 = arith.truncf %572 : vector<24x4xf32> to vector<24x4xbf16>
      %cst_241 = arith.constant dense<0.000000e+00> : vector<24x8xf32>
      %599 = tpu.matmul %598, %597, %cst_241 {dimension_numbers = #tpu.dot_dimension_numbers<[1], [0], [0], [1], [0, 0, 1, 1], [], []>} : vector<24x4xbf16>, vector<4x8xbf16>, vector<24x8xf32> -> vector<24x8xf32>
      %600 = vector.extract_strided_slice %599 {offsets = [0, 0], sizes = [8, 8], strides = [1, 1]} : vector<24x8xf32> to vector<8x8xf32>
      %601 = vector.extract_strided_slice %599 {offsets = [8, 0], sizes = [8, 8], strides = [1, 1]} : vector<24x8xf32> to vector<8x8xf32>
      %602 = vector.extract_strided_slice %599 {offsets = [16, 0], sizes = [8, 8], strides = [1, 1]} : vector<24x8xf32> to vector<8x8xf32>
      %603 = arith.mulf %600, %600 : vector<8x8xf32>
      %604 = arith.mulf %601, %601 : vector<8x8xf32>
      %605 = arith.addf %603, %604 : vector<8x8xf32>
      %606 = arith.mulf %602, %602 : vector<8x8xf32>
      %607 = arith.addf %605, %606 : vector<8x8xf32>
      %cst_242 = arith.constant 9.99999993E-9 : f32
      %608 = vector.broadcast %cst_242 : f32 to vector<8x8xf32>
      %609 = arith.maximumf %607, %608 : vector<8x8xf32>
      %610 = math.sqrt %609 : vector<8x8xf32>
      %c32_243 = arith.constant 32 : index
      %c0_244 = arith.constant 0 : index
      %611 = vector.load %arg8[%c32_243, %c0_244] : memref<96x32xbf16, #tpu.memory_space<vmem>>, vector<16x32xbf16>
      %612 = arith.truncf %594 : vector<8x16xf32> to vector<8x16xbf16>
      %cst_245 = arith.constant dense<0.000000e+00> : vector<8x32xf32>
      %613 = tpu.matmul %612, %611, %cst_245 {dimension_numbers = #tpu.dot_dimension_numbers<[1], [0], [0], [1], [0, 0, 1, 1], [], []>} : vector<8x16xbf16>, vector<16x32xbf16>, vector<8x32xf32> -> vector<8x32xf32>
      %614 = vector.broadcast %595 : vector<1x32xf32> to vector<8x32xf32>
      %615 = arith.addf %614, %613 : vector<8x32xf32>
      %c48_246 = arith.constant 48 : index
      %c0_247 = arith.constant 0 : index
      %616 = vector.load %arg8[%c48_246, %c0_247] : memref<96x32xbf16, #tpu.memory_space<vmem>>, vector<8x32xbf16>
      %617 = arith.truncf %610 : vector<8x8xf32> to vector<8x8xbf16>
      %cst_248 = arith.constant dense<0.000000e+00> : vector<8x32xf32>
      %618 = tpu.matmul %617, %616, %cst_248 {dimension_numbers = #tpu.dot_dimension_numbers<[1], [0], [0], [1], [0, 0, 1, 1], [], []>} : vector<8x8xbf16>, vector<8x32xbf16>, vector<8x32xf32> -> vector<8x32xf32>
      %619 = arith.addf %615, %618 : vector<8x32xf32>
      %c16_249 = arith.constant 16 : index
      %c0_250 = arith.constant 0 : index
      %620 = vector.load %arg8[%c16_249, %c0_250] : memref<96x32xbf16, #tpu.memory_space<vmem>>, vector<8x8xbf16>
      %621 = arith.truncf %599 : vector<24x8xf32> to vector<24x8xbf16>
      %cst_251 = arith.constant dense<0.000000e+00> : vector<24x8xf32>
      %622 = tpu.matmul %621, %620, %cst_251 {dimension_numbers = #tpu.dot_dimension_numbers<[1], [0], [0], [1], [0, 0, 1, 1], [], []>} : vector<24x8xbf16>, vector<8x8xbf16>, vector<24x8xf32> -> vector<24x8xf32>
      %c64_252 = arith.constant 64 : index
      %c0_253 = arith.constant 0 : index
      %623 = vector.load %arg8[%c64_252, %c0_253] : memref<96x32xbf16, #tpu.memory_space<vmem>>, vector<32x8xbf16>
      %624 = arith.truncf %619 : vector<8x32xf32> to vector<8x32xbf16>
      %cst_254 = arith.constant dense<0.000000e+00> : vector<8x8xf32>
      %625 = tpu.matmul %624, %623, %cst_254 {dimension_numbers = #tpu.dot_dimension_numbers<[1], [0], [0], [1], [0, 0, 1, 1], [], []>} : vector<8x32xbf16>, vector<32x8xbf16>, vector<8x8xf32> -> vector<8x8xf32>
      %626 = vector.broadcast %596 : vector<1x8xf32> to vector<8x8xf32>
      %627 = arith.addf %625, %626 : vector<8x8xf32>
      %628 = arith.negf %627 : vector<8x8xf32>
      %629 = math.exp %628 : vector<8x8xf32>
      %cst_255 = arith.constant 1.000000e+00 : f32
      %630 = vector.broadcast %cst_255 : f32 to vector<8x8xf32>
      %631 = arith.addf %630, %629 : vector<8x8xf32>
      %632 = arith.divf %630, %631 : vector<8x8xf32>
      %633 = tpu.concatenate %632, %632, %632 in 0 : vector<8x8xf32>, vector<8x8xf32>, vector<8x8xf32> -> vector<24x8xf32>
      %634 = arith.mulf %622, %633 : vector<24x8xf32>
      %635 = vector.extract_strided_slice %634 {offsets = [0, 0], sizes = [8, 8], strides = [1, 1]} : vector<24x8xf32> to vector<8x8xf32>
      %636 = vector.extract_strided_slice %634 {offsets = [8, 0], sizes = [8, 8], strides = [1, 1]} : vector<24x8xf32> to vector<8x8xf32>
      %637 = vector.extract_strided_slice %634 {offsets = [16, 0], sizes = [8, 8], strides = [1, 1]} : vector<24x8xf32> to vector<8x8xf32>
      %638 = tpu.concatenate %619, %635, %636, %637 in 1 : vector<8x32xf32>, vector<8x8xf32>, vector<8x8xf32>, vector<8x8xf32> -> vector<8x56xf32>
      %c0_256 = arith.constant 0 : index
      %c0_257 = arith.constant 0 : index
      %639 = vector.load %arg18[%c0_256, %c0_257] : memref<8x56xf32, #tpu.memory_space<vmem>>, vector<8x56xf32>
      tpu.vector_store %arg18[%c0_256, %c0_257], %638 {strides = array<i32>} : memref<8x56xf32, #tpu.memory_space<vmem>>, vector<8x56xf32>,
    } else {
    }
    %c0 = arith.constant 0 : index
    %c0_1 = arith.constant 0 : index
    %3 = vector.load %arg18[%c0, %c0_1] : memref<8x56xf32, #tpu.memory_space<vmem>>, vector<8x56xf32>
    %4 = vector.extract_strided_slice %3 {offsets = [0, 0], sizes = [8, 32], strides = [1, 1]} : vector<8x56xf32> to vector<8x32xf32>
    %5 = vector.extract_strided_slice %3 {offsets = [0, 32], sizes = [8, 8], strides = [1, 1]} : vector<8x56xf32> to vector<8x8xf32>
    %6 = vector.extract_strided_slice %3 {offsets = [0, 40], sizes = [8, 8], strides = [1, 1]} : vector<8x56xf32> to vector<8x8xf32>
    %7 = vector.extract_strided_slice %3 {offsets = [0, 48], sizes = [8, 8], strides = [1, 1]} : vector<8x56xf32> to vector<8x8xf32>
    %8 = tpu.concatenate %5, %6, %7 in 0 : vector<8x8xf32>, vector<8x8xf32>, vector<8x8xf32> -> vector<24x8xf32>
    %c0_2 = arith.constant 0 : index
    %c0_3 = arith.constant 0 : index
    %9 = vector.load %arg19[%c0_2, %c0_3] : memref<16x35xf32, #tpu.memory_space<vmem>>, vector<16x35xf32>
    %10 = vector.extract_strided_slice %9 {offsets = [0, 0], sizes = [16, 32], strides = [1, 1]} : vector<16x35xf32> to vector<16x32xf32>
    %11 = vector.extract_strided_slice %9 {offsets = [0, 32], sizes = [16, 1], strides = [1, 1]} : vector<16x35xf32> to vector<16x1xf32>
    %12 = vector.extract_strided_slice %9 {offsets = [0, 33], sizes = [16, 1], strides = [1, 1]} : vector<16x35xf32> to vector<16x1xf32>
    %13 = vector.extract_strided_slice %9 {offsets = [0, 34], sizes = [16, 1], strides = [1, 1]} : vector<16x35xf32> to vector<16x1xf32>
    %14 = tpu.concatenate %11, %12, %13 in 0 : vector<16x1xf32>, vector<16x1xf32>, vector<16x1xf32> -> vector<48x1xf32>
    %c0_4 = arith.constant 0 : index
    %c0_5 = arith.constant 0 : index
    %15 = vector.load %arg4[%c0_4, %c0_5] : memref<16x1xi32, #tpu.memory_space<vmem>>, vector<16x1xi32>
    %c0_6 = arith.constant 0 : index
    %c0_7 = arith.constant 0 : index
    %16 = vector.load %arg5[%c0_6, %c0_7] : memref<16x1xi32, #tpu.memory_space<vmem>>, vector<16x1xi32>
    %c0_8 = arith.constant 0 : index
    %c0_9 = arith.constant 0 : index
    %17 = vector.load %arg6[%c0_8, %c0_9] : memref<1x16xi32, #tpu.memory_space<vmem>>, vector<1x16xi32>
    %18 = tpu.iota {dimensions = array<i32: 1>} : vector<16x8xi32>
    %19 = vector.broadcast %15 : vector<16x1xi32> to vector<16x8xi32>
    %20 = arith.cmpi eq, %18, %19 : vector<16x8xi32>
    %21 = arith.extui %20 : vector<16x8xi1> to vector<16x8xi32>
    %22 = arith.sitofp %21 : vector<16x8xi32> to vector<16x8xf32>
    %23 = arith.truncf %22 : vector<16x8xf32> to vector<16x8xbf16>
    %24 = vector.broadcast %16 : vector<16x1xi32> to vector<16x8xi32>
    %25 = arith.cmpi eq, %18, %24 : vector<16x8xi32>
    %26 = arith.extui %25 : vector<16x8xi1> to vector<16x8xi32>
    %27 = arith.sitofp %26 : vector<16x8xi32> to vector<16x8xf32>
    %28 = arith.truncf %27 : vector<16x8xf32> to vector<16x8xbf16>
    %29 = tpu.iota {dimensions = array<i32: 0>} : vector<8x16xi32>
    %30 = vector.broadcast %17 : vector<1x16xi32> to vector<8x16xi32>
    %31 = arith.cmpi eq, %29, %30 : vector<8x16xi32>
    %32 = arith.extui %31 : vector<8x16xi1> to vector<8x16xi32>
    %33 = arith.sitofp %32 : vector<8x16xi32> to vector<8x16xf32>
    %34 = arith.truncf %33 : vector<8x16xf32> to vector<8x16xbf16>
    %35 = arith.truncf %3 : vector<8x56xf32> to vector<8x56xbf16>
    %cst = arith.constant dense<0.000000e+00> : vector<16x56xf32>
    %36 = tpu.matmul %23, %35, %cst {dimension_numbers = #tpu.dot_dimension_numbers<[1], [0], [0], [1], [0, 0, 1, 1], [], []>} : vector<16x8xbf16>, vector<8x56xbf16>, vector<16x56xf32> -> vector<16x56xf32>
    %cst_10 = arith.constant dense<0.000000e+00> : vector<16x56xf32>
    %37 = tpu.matmul %28, %35, %cst_10 {dimension_numbers = #tpu.dot_dimension_numbers<[1], [0], [0], [1], [0, 0, 1, 1], [], []>} : vector<16x8xbf16>, vector<8x56xbf16>, vector<16x56xf32> -> vector<16x56xf32>
    %38 = vector.extract_strided_slice %36 {offsets = [0, 0], sizes = [16, 32], strides = [1, 1]} : vector<16x56xf32> to vector<16x32xf32>
    %39 = vector.extract_strided_slice %36 {offsets = [0, 32], sizes = [16, 8], strides = [1, 1]} : vector<16x56xf32> to vector<16x8xf32>
    %40 = vector.extract_strided_slice %36 {offsets = [0, 40], sizes = [16, 8], strides = [1, 1]} : vector<16x56xf32> to vector<16x8xf32>
    %41 = vector.extract_strided_slice %36 {offsets = [0, 48], sizes = [16, 8], strides = [1, 1]} : vector<16x56xf32> to vector<16x8xf32>
    %42 = tpu.concatenate %39, %40, %41 in 0 : vector<16x8xf32>, vector<16x8xf32>, vector<16x8xf32> -> vector<48x8xf32>
    %43 = vector.extract_strided_slice %37 {offsets = [0, 0], sizes = [16, 32], strides = [1, 1]} : vector<16x56xf32> to vector<16x32xf32>
    %44 = vector.extract_strided_slice %37 {offsets = [0, 32], sizes = [16, 8], strides = [1, 1]} : vector<16x56xf32> to vector<16x8xf32>
    %45 = vector.extract_strided_slice %37 {offsets = [0, 40], sizes = [16, 8], strides = [1, 1]} : vector<16x56xf32> to vector<16x8xf32>
    %46 = vector.extract_strided_slice %37 {offsets = [0, 48], sizes = [16, 8], strides = [1, 1]} : vector<16x56xf32> to vector<16x8xf32>
    %47 = tpu.concatenate %44, %45, %46 in 0 : vector<16x8xf32>, vector<16x8xf32>, vector<16x8xf32> -> vector<48x8xf32>
    %c0_11 = arith.constant 0 : index
    %c4 = arith.constant 4 : index
    %c0_12 = arith.constant 0 : index
    %48 = vector.load %arg16[%c0_11, %c4, %c0_12] : memref<1x16x128xf32, #tpu.memory_space<vmem>>, vector<1x1x32xf32>
    %49 = vector.shape_cast %48 : vector<1x1x32xf32> to vector<1x32xf32>
    %c0_13 = arith.constant 0 : index
    %c5 = arith.constant 5 : index
    %c0_14 = arith.constant 0 : index
    %50 = vector.load %arg16[%c0_13, %c5, %c0_14] : memref<1x16x128xf32, #tpu.memory_space<vmem>>, vector<1x1x8xf32>
    %51 = vector.shape_cast %50 : vector<1x1x8xf32> to vector<1x8xf32>
    %c0_15 = arith.constant 0 : index
    %c0_16 = arith.constant 0 : index
    %c0_17 = arith.constant 0 : index
    %52 = vector.load %arg11[%c0_15, %c0_16, %c0_17] : memref<1x240x32xbf16, #tpu.memory_space<vmem>>, vector<1x8x17xbf16>
    %53 = vector.shape_cast %52 : vector<1x8x17xbf16> to vector<8x17xbf16>
    %54 = arith.truncf %42 : vector<48x8xf32> to vector<48x8xbf16>
    %cst_18 = arith.constant dense<0.000000e+00> : vector<48x17xf32>
    %55 = tpu.matmul %54, %53, %cst_18 {dimension_numbers = #tpu.dot_dimension_numbers<[1], [0], [0], [1], [0, 0, 1, 1], [], []>} : vector<48x8xbf16>, vector<8x17xbf16>, vector<48x17xf32> -> vector<48x17xf32>
    %c0_19 = arith.constant 0 : index
    %c16 = arith.constant 16 : index
    %c0_20 = arith.constant 0 : index
    %56 = vector.load %arg11[%c0_19, %c16, %c0_20] : memref<1x240x32xbf16, #tpu.memory_space<vmem>>, vector<1x1x17xbf16>
    %57 = vector.shape_cast %56 : vector<1x1x17xbf16> to vector<1x17xbf16>
    %58 = arith.extf %57 : vector<1x17xbf16> to vector<1x17xf32>
    %59 = vector.broadcast %14 : vector<48x1xf32> to vector<48x17xf32>
    %60 = vector.broadcast %58 : vector<1x17xf32> to vector<48x17xf32>
    %61 = arith.mulf %59, %60 : vector<48x17xf32>
    %62 = arith.addf %55, %61 : vector<48x17xf32>
    %c0_21 = arith.constant 0 : index
    %c32 = arith.constant 32 : index
    %c0_22 = arith.constant 0 : index
    %63 = vector.load %arg11[%c0_21, %c32, %c0_22] : memref<1x240x32xbf16, #tpu.memory_space<vmem>>, vector<1x8x17xbf16>
    %64 = vector.shape_cast %63 : vector<1x8x17xbf16> to vector<8x17xbf16>
    %65 = arith.truncf %47 : vector<48x8xf32> to vector<48x8xbf16>
    %cst_23 = arith.constant dense<0.000000e+00> : vector<48x17xf32>
    %66 = tpu.matmul %65, %64, %cst_23 {dimension_numbers = #tpu.dot_dimension_numbers<[1], [0], [0], [1], [0, 0, 1, 1], [], []>} : vector<48x8xbf16>, vector<8x17xbf16>, vector<48x17xf32> -> vector<48x17xf32>
    %67 = arith.addf %62, %66 : vector<48x17xf32>
    %68 = vector.extract_strided_slice %67 {offsets = [0, 0], sizes = [16, 17], strides = [1, 1]} : vector<48x17xf32> to vector<16x17xf32>
    %69 = vector.extract_strided_slice %67 {offsets = [16, 0], sizes = [16, 17], strides = [1, 1]} : vector<48x17xf32> to vector<16x17xf32>
    %70 = vector.extract_strided_slice %67 {offsets = [32, 0], sizes = [16, 17], strides = [1, 1]} : vector<48x17xf32> to vector<16x17xf32>
    %71 = arith.mulf %68, %68 : vector<16x17xf32>
    %72 = arith.mulf %69, %69 : vector<16x17xf32>
    %73 = arith.addf %71, %72 : vector<16x17xf32>
    %74 = arith.mulf %70, %70 : vector<16x17xf32>
    %75 = arith.addf %73, %74 : vector<16x17xf32>
    %cst_24 = arith.constant 9.99999993E-9 : f32
    %76 = vector.broadcast %cst_24 : f32 to vector<16x17xf32>
    %77 = arith.maximumf %75, %76 : vector<16x17xf32>
    %78 = math.sqrt %77 : vector<16x17xf32>
    %c0_25 = arith.constant 0 : index
    %c80 = arith.constant 80 : index
    %c0_26 = arith.constant 0 : index
    %79 = vector.load %arg11[%c0_25, %c80, %c0_26] : memref<1x240x32xbf16, #tpu.memory_space<vmem>>, vector<1x32x32xbf16>
    %80 = vector.shape_cast %79 : vector<1x32x32xbf16> to vector<32x32xbf16>
    %81 = arith.truncf %38 : vector<16x32xf32> to vector<16x32xbf16>
    %cst_27 = arith.constant dense<0.000000e+00> : vector<16x32xf32>
    %82 = tpu.matmul %81, %80, %cst_27 {dimension_numbers = #tpu.dot_dimension_numbers<[1], [0], [0], [1], [0, 0, 1, 1], [], []>} : vector<16x32xbf16>, vector<32x32xbf16>, vector<16x32xf32> -> vector<16x32xf32>
    %83 = vector.broadcast %49 : vector<1x32xf32> to vector<16x32xf32>
    %84 = arith.addf %83, %82 : vector<16x32xf32>
    %c0_28 = arith.constant 0 : index
    %c112 = arith.constant 112 : index
    %c0_29 = arith.constant 0 : index
    %85 = vector.load %arg11[%c0_28, %c112, %c0_29] : memref<1x240x32xbf16, #tpu.memory_space<vmem>>, vector<1x32x32xbf16>
    %86 = vector.shape_cast %85 : vector<1x32x32xbf16> to vector<32x32xbf16>
    %87 = arith.truncf %10 : vector<16x32xf32> to vector<16x32xbf16>
    %cst_30 = arith.constant dense<0.000000e+00> : vector<16x32xf32>
    %88 = tpu.matmul %87, %86, %cst_30 {dimension_numbers = #tpu.dot_dimension_numbers<[1], [0], [0], [1], [0, 0, 1, 1], [], []>} : vector<16x32xbf16>, vector<32x32xbf16>, vector<16x32xf32> -> vector<16x32xf32>
    %89 = arith.addf %84, %88 : vector<16x32xf32>
    %c0_31 = arith.constant 0 : index
    %c144 = arith.constant 144 : index
    %c0_32 = arith.constant 0 : index
    %90 = vector.load %arg11[%c0_31, %c144, %c0_32] : memref<1x240x32xbf16, #tpu.memory_space<vmem>>, vector<1x32x32xbf16>
    %91 = vector.shape_cast %90 : vector<1x32x32xbf16> to vector<32x32xbf16>
    %92 = arith.truncf %43 : vector<16x32xf32> to vector<16x32xbf16>
    %cst_33 = arith.constant dense<0.000000e+00> : vector<16x32xf32>
    %93 = tpu.matmul %92, %91, %cst_33 {dimension_numbers = #tpu.dot_dimension_numbers<[1], [0], [0], [1], [0, 0, 1, 1], [], []>} : vector<16x32xbf16>, vector<32x32xbf16>, vector<16x32xf32> -> vector<16x32xf32>
    %94 = arith.addf %89, %93 : vector<16x32xf32>
    %c0_34 = arith.constant 0 : index
    %c176 = arith.constant 176 : index
    %c0_35 = arith.constant 0 : index
    %95 = vector.load %arg11[%c0_34, %c176, %c0_35] : memref<1x240x32xbf16, #tpu.memory_space<vmem>>, vector<1x17x32xbf16>
    %96 = vector.shape_cast %95 : vector<1x17x32xbf16> to vector<17x32xbf16>
    %97 = arith.truncf %78 : vector<16x17xf32> to vector<16x17xbf16>
    %cst_36 = arith.constant dense<0.000000e+00> : vector<16x32xf32>
    %98 = tpu.matmul %97, %96, %cst_36 {dimension_numbers = #tpu.dot_dimension_numbers<[1], [0], [0], [1], [0, 0, 1, 1], [], []>} : vector<16x17xbf16>, vector<17x32xbf16>, vector<16x32xf32> -> vector<16x32xf32>
    %99 = arith.addf %94, %98 : vector<16x32xf32>
    %c0_37 = arith.constant 0 : index
    %c48 = arith.constant 48 : index
    %c0_38 = arith.constant 0 : index
    %100 = vector.load %arg11[%c0_37, %c48, %c0_38] : memref<1x240x32xbf16, #tpu.memory_space<vmem>>, vector<1x17x8xbf16>
    %101 = vector.shape_cast %100 : vector<1x17x8xbf16> to vector<17x8xbf16>
    %102 = arith.truncf %67 : vector<48x17xf32> to vector<48x17xbf16>
    %cst_39 = arith.constant dense<0.000000e+00> : vector<48x8xf32>
    %103 = tpu.matmul %102, %101, %cst_39 {dimension_numbers = #tpu.dot_dimension_numbers<[1], [0], [0], [1], [0, 0, 1, 1], [], []>} : vector<48x17xbf16>, vector<17x8xbf16>, vector<48x8xf32> -> vector<48x8xf32>
    %c0_40 = arith.constant 0 : index
    %c208 = arith.constant 208 : index
    %c0_41 = arith.constant 0 : index
    %104 = vector.load %arg11[%c0_40, %c208, %c0_41] : memref<1x240x32xbf16, #tpu.memory_space<vmem>>, vector<1x32x8xbf16>
    %105 = vector.shape_cast %104 : vector<1x32x8xbf16> to vector<32x8xbf16>
    %106 = arith.truncf %99 : vector<16x32xf32> to vector<16x32xbf16>
    %cst_42 = arith.constant dense<0.000000e+00> : vector<16x8xf32>
    %107 = tpu.matmul %106, %105, %cst_42 {dimension_numbers = #tpu.dot_dimension_numbers<[1], [0], [0], [1], [0, 0, 1, 1], [], []>} : vector<16x32xbf16>, vector<32x8xbf16>, vector<16x8xf32> -> vector<16x8xf32>
    %108 = vector.broadcast %51 : vector<1x8xf32> to vector<16x8xf32>
    %109 = arith.addf %107, %108 : vector<16x8xf32>
    %110 = arith.negf %109 : vector<16x8xf32>
    %111 = math.exp %110 : vector<16x8xf32>
    %cst_43 = arith.constant 1.000000e+00 : f32
    %112 = vector.broadcast %cst_43 : f32 to vector<16x8xf32>
    %113 = arith.addf %112, %111 : vector<16x8xf32>
    %114 = arith.divf %112, %113 : vector<16x8xf32>
    %115 = tpu.concatenate %114, %114, %114 in 0 : vector<16x8xf32>, vector<16x8xf32>, vector<16x8xf32> -> vector<48x8xf32>
    %116 = arith.mulf %103, %115 : vector<48x8xf32>
    %117 = arith.negf %99 : vector<16x32xf32>
    %118 = math.exp %117 : vector<16x32xf32>
    %cst_44 = arith.constant 1.000000e+00 : f32
    %119 = vector.broadcast %cst_44 : f32 to vector<16x32xf32>
    %120 = arith.addf %119, %118 : vector<16x32xf32>
    %121 = arith.divf %119, %120 : vector<16x32xf32>
    %122 = arith.mulf %99, %121 : vector<16x32xf32>
    %c0_45 = arith.constant 0 : index
    %c6 = arith.constant 6 : index
    %c0_46 = arith.constant 0 : index
    %123 = vector.load %arg16[%c0_45, %c6, %c0_46] : memref<1x16x128xf32, #tpu.memory_space<vmem>>, vector<1x1x32xf32>
    %124 = vector.shape_cast %123 : vector<1x1x32xf32> to vector<1x32xf32>
    %c0_47 = arith.constant 0 : index
    %c7 = arith.constant 7 : index
    %c0_48 = arith.constant 0 : index
    %125 = vector.load %arg16[%c0_47, %c7, %c0_48] : memref<1x16x128xf32, #tpu.memory_space<vmem>>, vector<1x1x8xf32>
    %126 = vector.shape_cast %125 : vector<1x1x8xf32> to vector<1x8xf32>
    %c0_49 = arith.constant 0 : index
    %c0_50 = arith.constant 0 : index
    %c0_51 = arith.constant 0 : index
    %127 = vector.load %arg12[%c0_49, %c0_50, %c0_51] : memref<1x112x32xbf16, #tpu.memory_space<vmem>>, vector<1x8x8xbf16>
    %128 = vector.shape_cast %127 : vector<1x8x8xbf16> to vector<8x8xbf16>
    %129 = arith.truncf %116 : vector<48x8xf32> to vector<48x8xbf16>
    %cst_52 = arith.constant dense<0.000000e+00> : vector<48x8xf32>
    %130 = tpu.matmul %129, %128, %cst_52 {dimension_numbers = #tpu.dot_dimension_numbers<[1], [0], [0], [1], [0, 0, 1, 1], [], []>} : vector<48x8xbf16>, vector<8x8xbf16>, vector<48x8xf32> -> vector<48x8xf32>
    %131 = vector.extract_strided_slice %130 {offsets = [0, 0], sizes = [16, 8], strides = [1, 1]} : vector<48x8xf32> to vector<16x8xf32>
    %132 = vector.extract_strided_slice %130 {offsets = [16, 0], sizes = [16, 8], strides = [1, 1]} : vector<48x8xf32> to vector<16x8xf32>
    %133 = vector.extract_strided_slice %130 {offsets = [32, 0], sizes = [16, 8], strides = [1, 1]} : vector<48x8xf32> to vector<16x8xf32>
    %134 = arith.mulf %131, %131 : vector<16x8xf32>
    %135 = arith.mulf %132, %132 : vector<16x8xf32>
    %136 = arith.addf %134, %135 : vector<16x8xf32>
    %137 = arith.mulf %133, %133 : vector<16x8xf32>
    %138 = arith.addf %136, %137 : vector<16x8xf32>
    %cst_53 = arith.constant 9.99999993E-9 : f32
    %139 = vector.broadcast %cst_53 : f32 to vector<16x8xf32>
    %140 = arith.maximumf %138, %139 : vector<16x8xf32>
    %141 = math.sqrt %140 : vector<16x8xf32>
    %c0_54 = arith.constant 0 : index
    %c32_55 = arith.constant 32 : index
    %c0_56 = arith.constant 0 : index
    %142 = vector.load %arg12[%c0_54, %c32_55, %c0_56] : memref<1x112x32xbf16, #tpu.memory_space<vmem>>, vector<1x32x32xbf16>
    %143 = vector.shape_cast %142 : vector<1x32x32xbf16> to vector<32x32xbf16>
    %144 = arith.truncf %122 : vector<16x32xf32> to vector<16x32xbf16>
    %cst_57 = arith.constant dense<0.000000e+00> : vector<16x32xf32>
    %145 = tpu.matmul %144, %143, %cst_57 {dimension_numbers = #tpu.dot_dimension_numbers<[1], [0], [0], [1], [0, 0, 1, 1], [], []>} : vector<16x32xbf16>, vector<32x32xbf16>, vector<16x32xf32> -> vector<16x32xf32>
    %146 = vector.broadcast %124 : vector<1x32xf32> to vector<16x32xf32>
    %147 = arith.addf %146, %145 : vector<16x32xf32>
    %c0_58 = arith.constant 0 : index
    %c64 = arith.constant 64 : index
    %c0_59 = arith.constant 0 : index
    %148 = vector.load %arg12[%c0_58, %c64, %c0_59] : memref<1x112x32xbf16, #tpu.memory_space<vmem>>, vector<1x8x32xbf16>
    %149 = vector.shape_cast %148 : vector<1x8x32xbf16> to vector<8x32xbf16>
    %150 = arith.truncf %141 : vector<16x8xf32> to vector<16x8xbf16>
    %cst_60 = arith.constant dense<0.000000e+00> : vector<16x32xf32>
    %151 = tpu.matmul %150, %149, %cst_60 {dimension_numbers = #tpu.dot_dimension_numbers<[1], [0], [0], [1], [0, 0, 1, 1], [], []>} : vector<16x8xbf16>, vector<8x32xbf16>, vector<16x32xf32> -> vector<16x32xf32>
    %152 = arith.addf %147, %151 : vector<16x32xf32>
    %c0_61 = arith.constant 0 : index
    %c16_62 = arith.constant 16 : index
    %c0_63 = arith.constant 0 : index
    %153 = vector.load %arg12[%c0_61, %c16_62, %c0_63] : memref<1x112x32xbf16, #tpu.memory_space<vmem>>, vector<1x8x8xbf16>
    %154 = vector.shape_cast %153 : vector<1x8x8xbf16> to vector<8x8xbf16>
    %155 = arith.truncf %130 : vector<48x8xf32> to vector<48x8xbf16>
    %cst_64 = arith.constant dense<0.000000e+00> : vector<48x8xf32>
    %156 = tpu.matmul %155, %154, %cst_64 {dimension_numbers = #tpu.dot_dimension_numbers<[1], [0], [0], [1], [0, 0, 1, 1], [], []>} : vector<48x8xbf16>, vector<8x8xbf16>, vector<48x8xf32> -> vector<48x8xf32>
    %c0_65 = arith.constant 0 : index
    %c80_66 = arith.constant 80 : index
    %c0_67 = arith.constant 0 : index
    %157 = vector.load %arg12[%c0_65, %c80_66, %c0_67] : memref<1x112x32xbf16, #tpu.memory_space<vmem>>, vector<1x32x8xbf16>
    %158 = vector.shape_cast %157 : vector<1x32x8xbf16> to vector<32x8xbf16>
    %159 = arith.truncf %152 : vector<16x32xf32> to vector<16x32xbf16>
    %cst_68 = arith.constant dense<0.000000e+00> : vector<16x8xf32>
    %160 = tpu.matmul %159, %158, %cst_68 {dimension_numbers = #tpu.dot_dimension_numbers<[1], [0], [0], [1], [0, 0, 1, 1], [], []>} : vector<16x32xbf16>, vector<32x8xbf16>, vector<16x8xf32> -> vector<16x8xf32>
    %161 = vector.broadcast %126 : vector<1x8xf32> to vector<16x8xf32>
    %162 = arith.addf %160, %161 : vector<16x8xf32>
    %163 = arith.negf %162 : vector<16x8xf32>
    %164 = math.exp %163 : vector<16x8xf32>
    %cst_69 = arith.constant 1.000000e+00 : f32
    %165 = vector.broadcast %cst_69 : f32 to vector<16x8xf32>
    %166 = arith.addf %165, %164 : vector<16x8xf32>
    %167 = arith.divf %165, %166 : vector<16x8xf32>
    %168 = tpu.concatenate %167, %167, %167 in 0 : vector<16x8xf32>, vector<16x8xf32>, vector<16x8xf32> -> vector<48x8xf32>
    %169 = arith.mulf %156, %168 : vector<48x8xf32>
    %170 = arith.negf %152 : vector<16x32xf32>
    %171 = math.exp %170 : vector<16x32xf32>
    %cst_70 = arith.constant 1.000000e+00 : f32
    %172 = vector.broadcast %cst_70 : f32 to vector<16x32xf32>
    %173 = arith.addf %172, %171 : vector<16x32xf32>
    %174 = arith.divf %172, %173 : vector<16x32xf32>
    %175 = arith.mulf %152, %174 : vector<16x32xf32>
    %c0_71 = arith.constant 0 : index
    %c8 = arith.constant 8 : index
    %c0_72 = arith.constant 0 : index
    %176 = vector.load %arg16[%c0_71, %c8, %c0_72] : memref<1x16x128xf32, #tpu.memory_space<vmem>>, vector<1x1x32xf32>
    %177 = vector.shape_cast %176 : vector<1x1x32xf32> to vector<1x32xf32>
    %c0_73 = arith.constant 0 : index
    %c9 = arith.constant 9 : index
    %c0_74 = arith.constant 0 : index
    %178 = vector.load %arg16[%c0_73, %c9, %c0_74] : memref<1x16x128xf32, #tpu.memory_space<vmem>>, vector<1x1x8xf32>
    %179 = vector.shape_cast %178 : vector<1x1x8xf32> to vector<1x8xf32>
    %c0_75 = arith.constant 0 : index
    %c0_76 = arith.constant 0 : index
    %c0_77 = arith.constant 0 : index
    %180 = vector.load %arg13[%c0_75, %c0_76, %c0_77] : memref<1x112x32xbf16, #tpu.memory_space<vmem>>, vector<1x8x8xbf16>
    %181 = vector.shape_cast %180 : vector<1x8x8xbf16> to vector<8x8xbf16>
    %182 = arith.truncf %169 : vector<48x8xf32> to vector<48x8xbf16>
    %cst_78 = arith.constant dense<0.000000e+00> : vector<48x8xf32>
    %183 = tpu.matmul %182, %181, %cst_78 {dimension_numbers = #tpu.dot_dimension_numbers<[1], [0], [0], [1], [0, 0, 1, 1], [], []>} : vector<48x8xbf16>, vector<8x8xbf16>, vector<48x8xf32> -> vector<48x8xf32>
    %184 = vector.extract_strided_slice %183 {offsets = [0, 0], sizes = [16, 8], strides = [1, 1]} : vector<48x8xf32> to vector<16x8xf32>
    %185 = vector.extract_strided_slice %183 {offsets = [16, 0], sizes = [16, 8], strides = [1, 1]} : vector<48x8xf32> to vector<16x8xf32>
    %186 = vector.extract_strided_slice %183 {offsets = [32, 0], sizes = [16, 8], strides = [1, 1]} : vector<48x8xf32> to vector<16x8xf32>
    %187 = arith.mulf %184, %184 : vector<16x8xf32>
    %188 = arith.mulf %185, %185 : vector<16x8xf32>
    %189 = arith.addf %187, %188 : vector<16x8xf32>
    %190 = arith.mulf %186, %186 : vector<16x8xf32>
    %191 = arith.addf %189, %190 : vector<16x8xf32>
    %cst_79 = arith.constant 9.99999993E-9 : f32
    %192 = vector.broadcast %cst_79 : f32 to vector<16x8xf32>
    %193 = arith.maximumf %191, %192 : vector<16x8xf32>
    %194 = math.sqrt %193 : vector<16x8xf32>
    %c0_80 = arith.constant 0 : index
    %c32_81 = arith.constant 32 : index
    %c0_82 = arith.constant 0 : index
    %195 = vector.load %arg13[%c0_80, %c32_81, %c0_82] : memref<1x112x32xbf16, #tpu.memory_space<vmem>>, vector<1x32x32xbf16>
    %196 = vector.shape_cast %195 : vector<1x32x32xbf16> to vector<32x32xbf16>
    %197 = arith.truncf %175 : vector<16x32xf32> to vector<16x32xbf16>
    %cst_83 = arith.constant dense<0.000000e+00> : vector<16x32xf32>
    %198 = tpu.matmul %197, %196, %cst_83 {dimension_numbers = #tpu.dot_dimension_numbers<[1], [0], [0], [1], [0, 0, 1, 1], [], []>} : vector<16x32xbf16>, vector<32x32xbf16>, vector<16x32xf32> -> vector<16x32xf32>
    %199 = vector.broadcast %177 : vector<1x32xf32> to vector<16x32xf32>
    %200 = arith.addf %199, %198 : vector<16x32xf32>
    %c0_84 = arith.constant 0 : index
    %c64_85 = arith.constant 64 : index
    %c0_86 = arith.constant 0 : index
    %201 = vector.load %arg13[%c0_84, %c64_85, %c0_86] : memref<1x112x32xbf16, #tpu.memory_space<vmem>>, vector<1x8x32xbf16>
    %202 = vector.shape_cast %201 : vector<1x8x32xbf16> to vector<8x32xbf16>
    %203 = arith.truncf %194 : vector<16x8xf32> to vector<16x8xbf16>
    %cst_87 = arith.constant dense<0.000000e+00> : vector<16x32xf32>
    %204 = tpu.matmul %203, %202, %cst_87 {dimension_numbers = #tpu.dot_dimension_numbers<[1], [0], [0], [1], [0, 0, 1, 1], [], []>} : vector<16x8xbf16>, vector<8x32xbf16>, vector<16x32xf32> -> vector<16x32xf32>
    %205 = arith.addf %200, %204 : vector<16x32xf32>
    %c0_88 = arith.constant 0 : index
    %c16_89 = arith.constant 16 : index
    %c0_90 = arith.constant 0 : index
    %206 = vector.load %arg13[%c0_88, %c16_89, %c0_90] : memref<1x112x32xbf16, #tpu.memory_space<vmem>>, vector<1x8x8xbf16>
    %207 = vector.shape_cast %206 : vector<1x8x8xbf16> to vector<8x8xbf16>
    %208 = arith.truncf %183 : vector<48x8xf32> to vector<48x8xbf16>
    %cst_91 = arith.constant dense<0.000000e+00> : vector<48x8xf32>
    %209 = tpu.matmul %208, %207, %cst_91 {dimension_numbers = #tpu.dot_dimension_numbers<[1], [0], [0], [1], [0, 0, 1, 1], [], []>} : vector<48x8xbf16>, vector<8x8xbf16>, vector<48x8xf32> -> vector<48x8xf32>
    %c0_92 = arith.constant 0 : index
    %c80_93 = arith.constant 80 : index
    %c0_94 = arith.constant 0 : index
    %210 = vector.load %arg13[%c0_92, %c80_93, %c0_94] : memref<1x112x32xbf16, #tpu.memory_space<vmem>>, vector<1x32x8xbf16>
    %211 = vector.shape_cast %210 : vector<1x32x8xbf16> to vector<32x8xbf16>
    %212 = arith.truncf %205 : vector<16x32xf32> to vector<16x32xbf16>
    %cst_95 = arith.constant dense<0.000000e+00> : vector<16x8xf32>
    %213 = tpu.matmul %212, %211, %cst_95 {dimension_numbers = #tpu.dot_dimension_numbers<[1], [0], [0], [1], [0, 0, 1, 1], [], []>} : vector<16x32xbf16>, vector<32x8xbf16>, vector<16x8xf32> -> vector<16x8xf32>
    %214 = vector.broadcast %179 : vector<1x8xf32> to vector<16x8xf32>
    %215 = arith.addf %213, %214 : vector<16x8xf32>
    %216 = arith.negf %215 : vector<16x8xf32>
    %217 = math.exp %216 : vector<16x8xf32>
    %cst_96 = arith.constant 1.000000e+00 : f32
    %218 = vector.broadcast %cst_96 : f32 to vector<16x8xf32>
    %219 = arith.addf %218, %217 : vector<16x8xf32>
    %220 = arith.divf %218, %219 : vector<16x8xf32>
    %221 = tpu.concatenate %220, %220, %220 in 0 : vector<16x8xf32>, vector<16x8xf32>, vector<16x8xf32> -> vector<48x8xf32>
    %222 = arith.mulf %209, %221 : vector<48x8xf32>
    %223 = vector.extract_strided_slice %222 {offsets = [0, 0], sizes = [16, 8], strides = [1, 1]} : vector<48x8xf32> to vector<16x8xf32>
    %224 = vector.extract_strided_slice %222 {offsets = [16, 0], sizes = [16, 8], strides = [1, 1]} : vector<48x8xf32> to vector<16x8xf32>
    %225 = vector.extract_strided_slice %222 {offsets = [32, 0], sizes = [16, 8], strides = [1, 1]} : vector<48x8xf32> to vector<16x8xf32>
    %226 = tpu.concatenate %205, %223, %224, %225 in 1 : vector<16x32xf32>, vector<16x8xf32>, vector<16x8xf32>, vector<16x8xf32> -> vector<16x56xf32>
    %227 = arith.truncf %226 : vector<16x56xf32> to vector<16x56xbf16>
    %cst_97 = arith.constant dense<0.000000e+00> : vector<8x56xf32>
    %228 = tpu.matmul %34, %227, %cst_97 {dimension_numbers = #tpu.dot_dimension_numbers<[1], [0], [0], [1], [0, 0, 1, 1], [], []>} : vector<8x16xbf16>, vector<16x56xbf16>, vector<8x56xf32> -> vector<8x56xf32>
    %cst_98 = arith.constant 0.00999999977 : f32
    %229 = vector.broadcast %cst_98 : f32 to vector<8x56xf32>
    %230 = arith.mulf %228, %229 : vector<8x56xf32>
    %231 = vector.extract_strided_slice %230 {offsets = [0, 0], sizes = [8, 32], strides = [1, 1]} : vector<8x56xf32> to vector<8x32xf32>
    %232 = vector.extract_strided_slice %230 {offsets = [0, 32], sizes = [8, 8], strides = [1, 1]} : vector<8x56xf32> to vector<8x8xf32>
    %233 = vector.extract_strided_slice %230 {offsets = [0, 40], sizes = [8, 8], strides = [1, 1]} : vector<8x56xf32> to vector<8x8xf32>
    %234 = vector.extract_strided_slice %230 {offsets = [0, 48], sizes = [8, 8], strides = [1, 1]} : vector<8x56xf32> to vector<8x8xf32>
    %235 = tpu.concatenate %232, %233, %234 in 0 : vector<8x8xf32>, vector<8x8xf32>, vector<8x8xf32> -> vector<24x8xf32>
    %236 = arith.addf %4, %231 : vector<8x32xf32>
    %237 = arith.addf %8, %235 : vector<24x8xf32>
    %c0_99 = arith.constant 0 : index
    %c0_100 = arith.constant 0 : index
    %c0_101 = arith.constant 0 : index
    %238 = vector.load %arg16[%c0_99, %c0_100, %c0_101] : memref<1x16x128xf32, #tpu.memory_space<vmem>>, vector<1x1x32xf32>
    %239 = vector.shape_cast %238 : vector<1x1x32xf32> to vector<1x32xf32>
    %c0_102 = arith.constant 0 : index
    %c1 = arith.constant 1 : index
    %c0_103 = arith.constant 0 : index
    %240 = vector.load %arg16[%c0_102, %c1, %c0_103] : memref<1x16x128xf32, #tpu.memory_space<vmem>>, vector<1x1x32xf32>
    %241 = vector.shape_cast %240 : vector<1x1x32xf32> to vector<1x32xf32>
    %242 = vector.extract_strided_slice %237 {offsets = [0, 0], sizes = [8, 8], strides = [1, 1]} : vector<24x8xf32> to vector<8x8xf32>
    %243 = vector.extract_strided_slice %237 {offsets = [8, 0], sizes = [8, 8], strides = [1, 1]} : vector<24x8xf32> to vector<8x8xf32>
    %244 = vector.extract_strided_slice %237 {offsets = [16, 0], sizes = [8, 8], strides = [1, 1]} : vector<24x8xf32> to vector<8x8xf32>
    %245 = arith.mulf %242, %242 : vector<8x8xf32>
    %246 = arith.mulf %243, %243 : vector<8x8xf32>
    %247 = arith.addf %245, %246 : vector<8x8xf32>
    %248 = arith.mulf %244, %244 : vector<8x8xf32>
    %249 = arith.addf %247, %248 : vector<8x8xf32>
    %cst_104 = arith.constant 9.99999993E-9 : f32
    %250 = vector.broadcast %cst_104 : f32 to vector<8x8xf32>
    %251 = arith.maximumf %249, %250 : vector<8x8xf32>
    %cst_105 = arith.constant dense<0.000000e+00> : vector<8xf32>
    %252 = vector.multi_reduction <add>, %251, %cst_105 [1] : vector<8x8xf32> to vector<8xf32>
    %253 = vector.shape_cast %252 : vector<8xf32> to vector<8x1xf32>
    %cst_106 = arith.constant 8.000000e+00 : f32
    %254 = vector.broadcast %cst_106 : f32 to vector<8x1xf32>
    %255 = arith.divf %253, %254 : vector<8x1xf32>
    %256 = math.rsqrt %255 : vector<8x1xf32>
    %257 = tpu.concatenate %256, %256, %256 in 0 : vector<8x1xf32>, vector<8x1xf32>, vector<8x1xf32> -> vector<24x1xf32>
    %258 = vector.broadcast %257 : vector<24x1xf32> to vector<24x8xf32>
    %259 = arith.mulf %237, %258 : vector<24x8xf32>
    %cst_107 = arith.constant dense<0.000000e+00> : vector<8xf32>
    %260 = vector.multi_reduction <add>, %236, %cst_107 [1] : vector<8x32xf32> to vector<8xf32>
    %261 = vector.shape_cast %260 : vector<8xf32> to vector<8x1xf32>
    %cst_108 = arith.constant 3.200000e+01 : f32
    %262 = vector.broadcast %cst_108 : f32 to vector<8x1xf32>
    %263 = arith.divf %261, %262 : vector<8x1xf32>
    %264 = vector.broadcast %263 : vector<8x1xf32> to vector<8x32xf32>
    %265 = arith.subf %236, %264 : vector<8x32xf32>
    %266 = arith.mulf %265, %265 : vector<8x32xf32>
    %cst_109 = arith.constant dense<0.000000e+00> : vector<8xf32>
    %267 = vector.multi_reduction <add>, %266, %cst_109 [1] : vector<8x32xf32> to vector<8xf32>
    %268 = vector.shape_cast %267 : vector<8xf32> to vector<8x1xf32>
    %cst_110 = arith.constant 3.200000e+01 : f32
    %269 = vector.broadcast %cst_110 : f32 to vector<8x1xf32>
    %270 = arith.divf %268, %269 : vector<8x1xf32>
    %271 = vector.broadcast %263 : vector<8x1xf32> to vector<8x32xf32>
    %272 = arith.subf %236, %271 : vector<8x32xf32>
    %cst_111 = arith.constant 9.99999974E-6 : f32
    %273 = vector.broadcast %cst_111 : f32 to vector<8x1xf32>
    %274 = arith.addf %270, %273 : vector<8x1xf32>
    %275 = math.rsqrt %274 : vector<8x1xf32>
    %276 = vector.broadcast %275 : vector<8x1xf32> to vector<8x32xf32>
    %277 = arith.mulf %272, %276 : vector<8x32xf32>
    %278 = vector.broadcast %239 : vector<1x32xf32> to vector<8x32xf32>
    %279 = arith.mulf %277, %278 : vector<8x32xf32>
    %280 = vector.broadcast %241 : vector<1x32xf32> to vector<8x32xf32>
    %281 = arith.addf %279, %280 : vector<8x32xf32>
    %c0_112 = arith.constant 0 : index
    %c10 = arith.constant 10 : index
    %c0_113 = arith.constant 0 : index
    %282 = vector.load %arg16[%c0_112, %c10, %c0_113] : memref<1x16x128xf32, #tpu.memory_space<vmem>>, vector<1x1x128xf32>
    %283 = vector.shape_cast %282 : vector<1x1x128xf32> to vector<1x128xf32>
    %c0_114 = arith.constant 0 : index
    %c11 = arith.constant 11 : index
    %c0_115 = arith.constant 0 : index
    %284 = vector.load %arg16[%c0_114, %c11, %c0_115] : memref<1x16x128xf32, #tpu.memory_space<vmem>>, vector<1x1x16xf32>
    %285 = vector.shape_cast %284 : vector<1x1x16xf32> to vector<1x16xf32>
    %c0_116 = arith.constant 0 : index
    %c0_117 = arith.constant 0 : index
    %c0_118 = arith.constant 0 : index
    %286 = vector.load %arg14[%c0_116, %c0_117, %c0_118] : memref<1x208x128xbf16, #tpu.memory_space<vmem>>, vector<1x8x16xbf16>
    %287 = vector.shape_cast %286 : vector<1x8x16xbf16> to vector<8x16xbf16>
    %288 = arith.truncf %259 : vector<24x8xf32> to vector<24x8xbf16>
    %cst_119 = arith.constant dense<0.000000e+00> : vector<24x16xf32>
    %289 = tpu.matmul %288, %287, %cst_119 {dimension_numbers = #tpu.dot_dimension_numbers<[1], [0], [0], [1], [0, 0, 1, 1], [], []>} : vector<24x8xbf16>, vector<8x16xbf16>, vector<24x16xf32> -> vector<24x16xf32>
    %290 = vector.extract_strided_slice %289 {offsets = [0, 0], sizes = [8, 16], strides = [1, 1]} : vector<24x16xf32> to vector<8x16xf32>
    %291 = vector.extract_strided_slice %289 {offsets = [8, 0], sizes = [8, 16], strides = [1, 1]} : vector<24x16xf32> to vector<8x16xf32>
    %292 = vector.extract_strided_slice %289 {offsets = [16, 0], sizes = [8, 16], strides = [1, 1]} : vector<24x16xf32> to vector<8x16xf32>
    %293 = arith.mulf %290, %290 : vector<8x16xf32>
    %294 = arith.mulf %291, %291 : vector<8x16xf32>
    %295 = arith.addf %293, %294 : vector<8x16xf32>
    %296 = arith.mulf %292, %292 : vector<8x16xf32>
    %297 = arith.addf %295, %296 : vector<8x16xf32>
    %cst_120 = arith.constant 9.99999993E-9 : f32
    %298 = vector.broadcast %cst_120 : f32 to vector<8x16xf32>
    %299 = arith.maximumf %297, %298 : vector<8x16xf32>
    %300 = math.sqrt %299 : vector<8x16xf32>
    %c0_121 = arith.constant 0 : index
    %c32_122 = arith.constant 32 : index
    %c0_123 = arith.constant 0 : index
    %301 = vector.load %arg14[%c0_121, %c32_122, %c0_123] : memref<1x208x128xbf16, #tpu.memory_space<vmem>>, vector<1x32x128xbf16>
    %302 = vector.shape_cast %301 : vector<1x32x128xbf16> to vector<32x128xbf16>
    %303 = arith.truncf %281 : vector<8x32xf32> to vector<8x32xbf16>
    %cst_124 = arith.constant dense<0.000000e+00> : vector<8x128xf32>
    %304 = tpu.matmul %303, %302, %cst_124 {dimension_numbers = #tpu.dot_dimension_numbers<[1], [0], [0], [1], [0, 0, 1, 1], [], []>} : vector<8x32xbf16>, vector<32x128xbf16>, vector<8x128xf32> -> vector<8x128xf32>
    %305 = vector.broadcast %283 : vector<1x128xf32> to vector<8x128xf32>
    %306 = arith.addf %305, %304 : vector<8x128xf32>
    %c0_125 = arith.constant 0 : index
    %c64_126 = arith.constant 64 : index
    %c0_127 = arith.constant 0 : index
    %307 = vector.load %arg14[%c0_125, %c64_126, %c0_127] : memref<1x208x128xbf16, #tpu.memory_space<vmem>>, vector<1x16x128xbf16>
    %308 = vector.shape_cast %307 : vector<1x16x128xbf16> to vector<16x128xbf16>
    %309 = arith.truncf %300 : vector<8x16xf32> to vector<8x16xbf16>
    %cst_128 = arith.constant dense<0.000000e+00> : vector<8x128xf32>
    %310 = tpu.matmul %309, %308, %cst_128 {dimension_numbers = #tpu.dot_dimension_numbers<[1], [0], [0], [1], [0, 0, 1, 1], [], []>} : vector<8x16xbf16>, vector<16x128xbf16>, vector<8x128xf32> -> vector<8x128xf32>
    %311 = arith.addf %306, %310 : vector<8x128xf32>
    %c0_129 = arith.constant 0 : index
    %c16_130 = arith.constant 16 : index
    %c0_131 = arith.constant 0 : index
    %312 = vector.load %arg14[%c0_129, %c16_130, %c0_131] : memref<1x208x128xbf16, #tpu.memory_space<vmem>>, vector<1x16x16xbf16>
    %313 = vector.shape_cast %312 : vector<1x16x16xbf16> to vector<16x16xbf16>
    %314 = arith.truncf %289 : vector<24x16xf32> to vector<24x16xbf16>
    %cst_132 = arith.constant dense<0.000000e+00> : vector<24x16xf32>
    %315 = tpu.matmul %314, %313, %cst_132 {dimension_numbers = #tpu.dot_dimension_numbers<[1], [0], [0], [1], [0, 0, 1, 1], [], []>} : vector<24x16xbf16>, vector<16x16xbf16>, vector<24x16xf32> -> vector<24x16xf32>
    %c0_133 = arith.constant 0 : index
    %c80_134 = arith.constant 80 : index
    %c0_135 = arith.constant 0 : index
    %316 = vector.load %arg14[%c0_133, %c80_134, %c0_135] : memref<1x208x128xbf16, #tpu.memory_space<vmem>>, vector<1x128x16xbf16>
    %317 = vector.shape_cast %316 : vector<1x128x16xbf16> to vector<128x16xbf16>
    %318 = arith.truncf %311 : vector<8x128xf32> to vector<8x128xbf16>
    %cst_136 = arith.constant dense<0.000000e+00> : vector<8x16xf32>
    %319 = tpu.matmul %318, %317, %cst_136 {dimension_numbers = #tpu.dot_dimension_numbers<[1], [0], [0], [1], [0, 0, 1, 1], [], []>} : vector<8x128xbf16>, vector<128x16xbf16>, vector<8x16xf32> -> vector<8x16xf32>
    %320 = vector.broadcast %285 : vector<1x16xf32> to vector<8x16xf32>
    %321 = arith.addf %319, %320 : vector<8x16xf32>
    %322 = arith.negf %321 : vector<8x16xf32>
    %323 = math.exp %322 : vector<8x16xf32>
    %cst_137 = arith.constant 1.000000e+00 : f32
    %324 = vector.broadcast %cst_137 : f32 to vector<8x16xf32>
    %325 = arith.addf %324, %323 : vector<8x16xf32>
    %326 = arith.divf %324, %325 : vector<8x16xf32>
    %327 = tpu.concatenate %326, %326, %326 in 0 : vector<8x16xf32>, vector<8x16xf32>, vector<8x16xf32> -> vector<24x16xf32>
    %328 = arith.mulf %315, %327 : vector<24x16xf32>
    %329 = arith.negf %311 : vector<8x128xf32>
    %330 = math.exp %329 : vector<8x128xf32>
    %cst_138 = arith.constant 1.000000e+00 : f32
    %331 = vector.broadcast %cst_138 : f32 to vector<8x128xf32>
    %332 = arith.addf %331, %330 : vector<8x128xf32>
    %333 = arith.divf %331, %332 : vector<8x128xf32>
    %334 = arith.mulf %311, %333 : vector<8x128xf32>
    %c0_139 = arith.constant 0 : index
    %c12 = arith.constant 12 : index
    %c0_140 = arith.constant 0 : index
    %335 = vector.load %arg16[%c0_139, %c12, %c0_140] : memref<1x16x128xf32, #tpu.memory_space<vmem>>, vector<1x1x32xf32>
    %336 = vector.shape_cast %335 : vector<1x1x32xf32> to vector<1x32xf32>
    %c0_141 = arith.constant 0 : index
    %c13 = arith.constant 13 : index
    %c0_142 = arith.constant 0 : index
    %337 = vector.load %arg16[%c0_141, %c13, %c0_142] : memref<1x16x128xf32, #tpu.memory_space<vmem>>, vector<1x1x8xf32>
    %338 = vector.shape_cast %337 : vector<1x1x8xf32> to vector<1x8xf32>
    %c0_143 = arith.constant 0 : index
    %c0_144 = arith.constant 0 : index
    %c0_145 = arith.constant 0 : index
    %339 = vector.load %arg15[%c0_143, %c0_144, %c0_145] : memref<1x208x32xbf16, #tpu.memory_space<vmem>>, vector<1x16x16xbf16>
    %340 = vector.shape_cast %339 : vector<1x16x16xbf16> to vector<16x16xbf16>
    %341 = arith.truncf %328 : vector<24x16xf32> to vector<24x16xbf16>
    %cst_146 = arith.constant dense<0.000000e+00> : vector<24x16xf32>
    %342 = tpu.matmul %341, %340, %cst_146 {dimension_numbers = #tpu.dot_dimension_numbers<[1], [0], [0], [1], [0, 0, 1, 1], [], []>} : vector<24x16xbf16>, vector<16x16xbf16>, vector<24x16xf32> -> vector<24x16xf32>
    %343 = vector.extract_strided_slice %342 {offsets = [0, 0], sizes = [8, 16], strides = [1, 1]} : vector<24x16xf32> to vector<8x16xf32>
    %344 = vector.extract_strided_slice %342 {offsets = [8, 0], sizes = [8, 16], strides = [1, 1]} : vector<24x16xf32> to vector<8x16xf32>
    %345 = vector.extract_strided_slice %342 {offsets = [16, 0], sizes = [8, 16], strides = [1, 1]} : vector<24x16xf32> to vector<8x16xf32>
    %346 = arith.mulf %343, %343 : vector<8x16xf32>
    %347 = arith.mulf %344, %344 : vector<8x16xf32>
    %348 = arith.addf %346, %347 : vector<8x16xf32>
    %349 = arith.mulf %345, %345 : vector<8x16xf32>
    %350 = arith.addf %348, %349 : vector<8x16xf32>
    %cst_147 = arith.constant 9.99999993E-9 : f32
    %351 = vector.broadcast %cst_147 : f32 to vector<8x16xf32>
    %352 = arith.maximumf %350, %351 : vector<8x16xf32>
    %353 = math.sqrt %352 : vector<8x16xf32>
    %c0_148 = arith.constant 0 : index
    %c32_149 = arith.constant 32 : index
    %c0_150 = arith.constant 0 : index
    %354 = vector.load %arg15[%c0_148, %c32_149, %c0_150] : memref<1x208x32xbf16, #tpu.memory_space<vmem>>, vector<1x128x32xbf16>
    %355 = vector.shape_cast %354 : vector<1x128x32xbf16> to vector<128x32xbf16>
    %356 = arith.truncf %334 : vector<8x128xf32> to vector<8x128xbf16>
    %cst_151 = arith.constant dense<0.000000e+00> : vector<8x32xf32>
    %357 = tpu.matmul %356, %355, %cst_151 {dimension_numbers = #tpu.dot_dimension_numbers<[1], [0], [0], [1], [0, 0, 1, 1], [], []>} : vector<8x128xbf16>, vector<128x32xbf16>, vector<8x32xf32> -> vector<8x32xf32>
    %358 = vector.broadcast %336 : vector<1x32xf32> to vector<8x32xf32>
    %359 = arith.addf %358, %357 : vector<8x32xf32>
    %c0_152 = arith.constant 0 : index
    %c160 = arith.constant 160 : index
    %c0_153 = arith.constant 0 : index
    %360 = vector.load %arg15[%c0_152, %c160, %c0_153] : memref<1x208x32xbf16, #tpu.memory_space<vmem>>, vector<1x16x32xbf16>
    %361 = vector.shape_cast %360 : vector<1x16x32xbf16> to vector<16x32xbf16>
    %362 = arith.truncf %353 : vector<8x16xf32> to vector<8x16xbf16>
    %cst_154 = arith.constant dense<0.000000e+00> : vector<8x32xf32>
    %363 = tpu.matmul %362, %361, %cst_154 {dimension_numbers = #tpu.dot_dimension_numbers<[1], [0], [0], [1], [0, 0, 1, 1], [], []>} : vector<8x16xbf16>, vector<16x32xbf16>, vector<8x32xf32> -> vector<8x32xf32>
    %364 = arith.addf %359, %363 : vector<8x32xf32>
    %c0_155 = arith.constant 0 : index
    %c16_156 = arith.constant 16 : index
    %c0_157 = arith.constant 0 : index
    %365 = vector.load %arg15[%c0_155, %c16_156, %c0_157] : memref<1x208x32xbf16, #tpu.memory_space<vmem>>, vector<1x16x8xbf16>
    %366 = vector.shape_cast %365 : vector<1x16x8xbf16> to vector<16x8xbf16>
    %367 = arith.truncf %342 : vector<24x16xf32> to vector<24x16xbf16>
    %cst_158 = arith.constant dense<0.000000e+00> : vector<24x8xf32>
    %368 = tpu.matmul %367, %366, %cst_158 {dimension_numbers = #tpu.dot_dimension_numbers<[1], [0], [0], [1], [0, 0, 1, 1], [], []>} : vector<24x16xbf16>, vector<16x8xbf16>, vector<24x8xf32> -> vector<24x8xf32>
    %c0_159 = arith.constant 0 : index
    %c176_160 = arith.constant 176 : index
    %c0_161 = arith.constant 0 : index
    %369 = vector.load %arg15[%c0_159, %c176_160, %c0_161] : memref<1x208x32xbf16, #tpu.memory_space<vmem>>, vector<1x32x8xbf16>
    %370 = vector.shape_cast %369 : vector<1x32x8xbf16> to vector<32x8xbf16>
    %371 = arith.truncf %364 : vector<8x32xf32> to vector<8x32xbf16>
    %cst_162 = arith.constant dense<0.000000e+00> : vector<8x8xf32>
    %372 = tpu.matmul %371, %370, %cst_162 {dimension_numbers = #tpu.dot_dimension_numbers<[1], [0], [0], [1], [0, 0, 1, 1], [], []>} : vector<8x32xbf16>, vector<32x8xbf16>, vector<8x8xf32> -> vector<8x8xf32>
    %373 = vector.broadcast %338 : vector<1x8xf32> to vector<8x8xf32>
    %374 = arith.addf %372, %373 : vector<8x8xf32>
    %375 = arith.negf %374 : vector<8x8xf32>
    %376 = math.exp %375 : vector<8x8xf32>
    %cst_163 = arith.constant 1.000000e+00 : f32
    %377 = vector.broadcast %cst_163 : f32 to vector<8x8xf32>
    %378 = arith.addf %377, %376 : vector<8x8xf32>
    %379 = arith.divf %377, %378 : vector<8x8xf32>
    %380 = tpu.concatenate %379, %379, %379 in 0 : vector<8x8xf32>, vector<8x8xf32>, vector<8x8xf32> -> vector<24x8xf32>
    %381 = arith.mulf %368, %380 : vector<24x8xf32>
    %382 = arith.addf %281, %364 : vector<8x32xf32>
    %383 = arith.addf %259, %381 : vector<24x8xf32>
    %c0_164 = arith.constant 0 : index
    %c2 = arith.constant 2 : index
    %c0_165 = arith.constant 0 : index
    %384 = vector.load %arg16[%c0_164, %c2, %c0_165] : memref<1x16x128xf32, #tpu.memory_space<vmem>>, vector<1x1x32xf32>
    %385 = vector.shape_cast %384 : vector<1x1x32xf32> to vector<1x32xf32>
    %c0_166 = arith.constant 0 : index
    %c3 = arith.constant 3 : index
    %c0_167 = arith.constant 0 : index
    %386 = vector.load %arg16[%c0_166, %c3, %c0_167] : memref<1x16x128xf32, #tpu.memory_space<vmem>>, vector<1x1x32xf32>
    %387 = vector.shape_cast %386 : vector<1x1x32xf32> to vector<1x32xf32>
    %388 = vector.extract_strided_slice %383 {offsets = [0, 0], sizes = [8, 8], strides = [1, 1]} : vector<24x8xf32> to vector<8x8xf32>
    %389 = vector.extract_strided_slice %383 {offsets = [8, 0], sizes = [8, 8], strides = [1, 1]} : vector<24x8xf32> to vector<8x8xf32>
    %390 = vector.extract_strided_slice %383 {offsets = [16, 0], sizes = [8, 8], strides = [1, 1]} : vector<24x8xf32> to vector<8x8xf32>
    %391 = arith.mulf %388, %388 : vector<8x8xf32>
    %392 = arith.mulf %389, %389 : vector<8x8xf32>
    %393 = arith.addf %391, %392 : vector<8x8xf32>
    %394 = arith.mulf %390, %390 : vector<8x8xf32>
    %395 = arith.addf %393, %394 : vector<8x8xf32>
    %cst_168 = arith.constant 9.99999993E-9 : f32
    %396 = vector.broadcast %cst_168 : f32 to vector<8x8xf32>
    %397 = arith.maximumf %395, %396 : vector<8x8xf32>
    %cst_169 = arith.constant dense<0.000000e+00> : vector<8xf32>
    %398 = vector.multi_reduction <add>, %397, %cst_169 [1] : vector<8x8xf32> to vector<8xf32>
    %399 = vector.shape_cast %398 : vector<8xf32> to vector<8x1xf32>
    %cst_170 = arith.constant 8.000000e+00 : f32
    %400 = vector.broadcast %cst_170 : f32 to vector<8x1xf32>
    %401 = arith.divf %399, %400 : vector<8x1xf32>
    %402 = math.rsqrt %401 : vector<8x1xf32>
    %403 = tpu.concatenate %402, %402, %402 in 0 : vector<8x1xf32>, vector<8x1xf32>, vector<8x1xf32> -> vector<24x1xf32>
    %404 = vector.broadcast %403 : vector<24x1xf32> to vector<24x8xf32>
    %405 = arith.mulf %383, %404 : vector<24x8xf32>
    %cst_171 = arith.constant dense<0.000000e+00> : vector<8xf32>
    %406 = vector.multi_reduction <add>, %382, %cst_171 [1] : vector<8x32xf32> to vector<8xf32>
    %407 = vector.shape_cast %406 : vector<8xf32> to vector<8x1xf32>
    %cst_172 = arith.constant 3.200000e+01 : f32
    %408 = vector.broadcast %cst_172 : f32 to vector<8x1xf32>
    %409 = arith.divf %407, %408 : vector<8x1xf32>
    %410 = vector.broadcast %409 : vector<8x1xf32> to vector<8x32xf32>
    %411 = arith.subf %382, %410 : vector<8x32xf32>
    %412 = arith.mulf %411, %411 : vector<8x32xf32>
    %cst_173 = arith.constant dense<0.000000e+00> : vector<8xf32>
    %413 = vector.multi_reduction <add>, %412, %cst_173 [1] : vector<8x32xf32> to vector<8xf32>
    %414 = vector.shape_cast %413 : vector<8xf32> to vector<8x1xf32>
    %cst_174 = arith.constant 3.200000e+01 : f32
    %415 = vector.broadcast %cst_174 : f32 to vector<8x1xf32>
    %416 = arith.divf %414, %415 : vector<8x1xf32>
    %417 = vector.broadcast %409 : vector<8x1xf32> to vector<8x32xf32>
    %418 = arith.subf %382, %417 : vector<8x32xf32>
    %cst_175 = arith.constant 9.99999974E-6 : f32
    %419 = vector.broadcast %cst_175 : f32 to vector<8x1xf32>
    %420 = arith.addf %416, %419 : vector<8x1xf32>
    %421 = math.rsqrt %420 : vector<8x1xf32>
    %422 = vector.broadcast %421 : vector<8x1xf32> to vector<8x32xf32>
    %423 = arith.mulf %418, %422 : vector<8x32xf32>
    %424 = vector.broadcast %385 : vector<1x32xf32> to vector<8x32xf32>
    %425 = arith.mulf %423, %424 : vector<8x32xf32>
    %426 = vector.broadcast %387 : vector<1x32xf32> to vector<8x32xf32>
    %427 = arith.addf %425, %426 : vector<8x32xf32>
    %428 = vector.extract_strided_slice %405 {offsets = [0, 0], sizes = [8, 8], strides = [1, 1]} : vector<24x8xf32> to vector<8x8xf32>
    %429 = vector.extract_strided_slice %405 {offsets = [8, 0], sizes = [8, 8], strides = [1, 1]} : vector<24x8xf32> to vector<8x8xf32>
    %430 = vector.extract_strided_slice %405 {offsets = [16, 0], sizes = [8, 8], strides = [1, 1]} : vector<24x8xf32> to vector<8x8xf32>
    %431 = tpu.concatenate %427, %428, %429, %430 in 1 : vector<8x32xf32>, vector<8x8xf32>, vector<8x8xf32>, vector<8x8xf32> -> vector<8x56xf32>
    %c0_176 = arith.constant 0 : index
    %c0_177 = arith.constant 0 : index
    %432 = vector.load %arg18[%c0_176, %c0_177] : memref<8x56xf32, #tpu.memory_space<vmem>>, vector<8x56xf32>
    tpu.vector_store %arg18[%c0_176, %c0_177], %431 {strides = array<i32>} : memref<8x56xf32, #tpu.memory_space<vmem>>, vector<8x56xf32>,
    %c1_i32 = arith.constant 1 : i32
    %433 = arith.cmpi eq, %arg0, %c1_i32 : i32
    %434 = arith.extui %433 : i1 to i32
    %c0_i32_178 = arith.constant 0 : i32
    %435 = arith.cmpi ne, %434, %c0_i32_178 : i32
    scf.if %435 {
      %c4_179 = arith.constant 4 : index
      %c0_180 = arith.constant 0 : index
      %436 = vector.load %arg10[%c4_179, %c0_180] : memref<16x128xf32, #tpu.memory_space<vmem>>, vector<1x32xf32>
      %c5_181 = arith.constant 5 : index
      %c0_182 = arith.constant 0 : index
      %437 = vector.load %arg10[%c5_181, %c0_182] : memref<16x128xf32, #tpu.memory_space<vmem>>, vector<1x32xf32>
      %438 = vector.extract_strided_slice %405 {offsets = [0, 0], sizes = [8, 8], strides = [1, 1]} : vector<24x8xf32> to vector<8x8xf32>
      %439 = vector.extract_strided_slice %405 {offsets = [8, 0], sizes = [8, 8], strides = [1, 1]} : vector<24x8xf32> to vector<8x8xf32>
      %440 = vector.extract_strided_slice %405 {offsets = [16, 0], sizes = [8, 8], strides = [1, 1]} : vector<24x8xf32> to vector<8x8xf32>
      %441 = arith.mulf %438, %438 : vector<8x8xf32>
      %442 = arith.mulf %439, %439 : vector<8x8xf32>
      %443 = arith.addf %441, %442 : vector<8x8xf32>
      %444 = arith.mulf %440, %440 : vector<8x8xf32>
      %445 = arith.addf %443, %444 : vector<8x8xf32>
      %cst_183 = arith.constant 9.99999993E-9 : f32
      %446 = vector.broadcast %cst_183 : f32 to vector<8x8xf32>
      %447 = arith.maximumf %445, %446 : vector<8x8xf32>
      %cst_184 = arith.constant dense<0.000000e+00> : vector<8xf32>
      %448 = vector.multi_reduction <add>, %447, %cst_184 [1] : vector<8x8xf32> to vector<8xf32>
      %449 = vector.shape_cast %448 : vector<8xf32> to vector<8x1xf32>
      %cst_185 = arith.constant 8.000000e+00 : f32
      %450 = vector.broadcast %cst_185 : f32 to vector<8x1xf32>
      %451 = arith.divf %449, %450 : vector<8x1xf32>
      %452 = math.rsqrt %451 : vector<8x1xf32>
      %453 = tpu.concatenate %452, %452, %452 in 0 : vector<8x1xf32>, vector<8x1xf32>, vector<8x1xf32> -> vector<24x1xf32>
      %454 = vector.broadcast %453 : vector<24x1xf32> to vector<24x8xf32>
      %455 = arith.mulf %405, %454 : vector<24x8xf32>
      %cst_186 = arith.constant dense<0.000000e+00> : vector<8xf32>
      %456 = vector.multi_reduction <add>, %427, %cst_186 [1] : vector<8x32xf32> to vector<8xf32>
      %457 = vector.shape_cast %456 : vector<8xf32> to vector<8x1xf32>
      %cst_187 = arith.constant 3.200000e+01 : f32
      %458 = vector.broadcast %cst_187 : f32 to vector<8x1xf32>
      %459 = arith.divf %457, %458 : vector<8x1xf32>
      %460 = vector.broadcast %459 : vector<8x1xf32> to vector<8x32xf32>
      %461 = arith.subf %427, %460 : vector<8x32xf32>
      %462 = arith.mulf %461, %461 : vector<8x32xf32>
      %cst_188 = arith.constant dense<0.000000e+00> : vector<8xf32>
      %463 = vector.multi_reduction <add>, %462, %cst_188 [1] : vector<8x32xf32> to vector<8xf32>
      %464 = vector.shape_cast %463 : vector<8xf32> to vector<8x1xf32>
      %cst_189 = arith.constant 3.200000e+01 : f32
      %465 = vector.broadcast %cst_189 : f32 to vector<8x1xf32>
      %466 = arith.divf %464, %465 : vector<8x1xf32>
      %467 = vector.broadcast %459 : vector<8x1xf32> to vector<8x32xf32>
      %468 = arith.subf %427, %467 : vector<8x32xf32>
      %cst_190 = arith.constant 9.99999974E-6 : f32
      %469 = vector.broadcast %cst_190 : f32 to vector<8x1xf32>
      %470 = arith.addf %466, %469 : vector<8x1xf32>
      %471 = math.rsqrt %470 : vector<8x1xf32>
      %472 = vector.broadcast %471 : vector<8x1xf32> to vector<8x32xf32>
      %473 = arith.mulf %468, %472 : vector<8x32xf32>
      %474 = vector.broadcast %436 : vector<1x32xf32> to vector<8x32xf32>
      %475 = arith.mulf %473, %474 : vector<8x32xf32>
      %476 = vector.broadcast %437 : vector<1x32xf32> to vector<8x32xf32>
      %477 = arith.addf %475, %476 : vector<8x32xf32>
      %c10_191 = arith.constant 10 : index
      %c0_192 = arith.constant 0 : index
      %478 = vector.load %arg10[%c10_191, %c0_192] : memref<16x128xf32, #tpu.memory_space<vmem>>, vector<1x8xf32>
      %c11_193 = arith.constant 11 : index
      %c0_194 = arith.constant 0 : index
      %479 = vector.load %arg10[%c11_193, %c0_194] : memref<16x128xf32, #tpu.memory_space<vmem>>, vector<1x2xf32>
      %c0_195 = arith.constant 0 : index
      %c0_196 = arith.constant 0 : index
      %480 = vector.load %arg9[%c0_195, %c0_196] : memref<96x8xbf16, #tpu.memory_space<vmem>>, vector<8x8xbf16>
      %481 = arith.truncf %455 : vector<24x8xf32> to vector<24x8xbf16>
      %cst_197 = arith.constant dense<0.000000e+00> : vector<24x8xf32>
      %482 = tpu.matmul %481, %480, %cst_197 {dimension_numbers = #tpu.dot_dimension_numbers<[1], [0], [0], [1], [0, 0, 1, 1], [], []>} : vector<24x8xbf16>, vector<8x8xbf16>, vector<24x8xf32> -> vector<24x8xf32>
      %483 = vector.extract_strided_slice %482 {offsets = [0, 0], sizes = [8, 8], strides = [1, 1]} : vector<24x8xf32> to vector<8x8xf32>
      %484 = vector.extract_strided_slice %482 {offsets = [8, 0], sizes = [8, 8], strides = [1, 1]} : vector<24x8xf32> to vector<8x8xf32>
      %485 = vector.extract_strided_slice %482 {offsets = [16, 0], sizes = [8, 8], strides = [1, 1]} : vector<24x8xf32> to vector<8x8xf32>
      %486 = arith.mulf %483, %483 : vector<8x8xf32>
      %487 = arith.mulf %484, %484 : vector<8x8xf32>
      %488 = arith.addf %486, %487 : vector<8x8xf32>
      %489 = arith.mulf %485, %485 : vector<8x8xf32>
      %490 = arith.addf %488, %489 : vector<8x8xf32>
      %cst_198 = arith.constant 9.99999993E-9 : f32
      %491 = vector.broadcast %cst_198 : f32 to vector<8x8xf32>
      %492 = arith.maximumf %490, %491 : vector<8x8xf32>
      %493 = math.sqrt %492 : vector<8x8xf32>
      %c32_199 = arith.constant 32 : index
      %c0_200 = arith.constant 0 : index
      %494 = vector.load %arg9[%c32_199, %c0_200] : memref<96x8xbf16, #tpu.memory_space<vmem>>, vector<32x8xbf16>
      %495 = arith.truncf %477 : vector<8x32xf32> to vector<8x32xbf16>
      %cst_201 = arith.constant dense<0.000000e+00> : vector<8x8xf32>
      %496 = tpu.matmul %495, %494, %cst_201 {dimension_numbers = #tpu.dot_dimension_numbers<[1], [0], [0], [1], [0, 0, 1, 1], [], []>} : vector<8x32xbf16>, vector<32x8xbf16>, vector<8x8xf32> -> vector<8x8xf32>
      %497 = vector.broadcast %478 : vector<1x8xf32> to vector<8x8xf32>
      %498 = arith.addf %497, %496 : vector<8x8xf32>
      %c64_202 = arith.constant 64 : index
      %c0_203 = arith.constant 0 : index
      %499 = vector.load %arg9[%c64_202, %c0_203] : memref<96x8xbf16, #tpu.memory_space<vmem>>, vector<8x8xbf16>
      %500 = arith.truncf %493 : vector<8x8xf32> to vector<8x8xbf16>
      %cst_204 = arith.constant dense<0.000000e+00> : vector<8x8xf32>
      %501 = tpu.matmul %500, %499, %cst_204 {dimension_numbers = #tpu.dot_dimension_numbers<[1], [0], [0], [1], [0, 0, 1, 1], [], []>} : vector<8x8xbf16>, vector<8x8xbf16>, vector<8x8xf32> -> vector<8x8xf32>
      %502 = arith.addf %498, %501 : vector<8x8xf32>
      %c16_205 = arith.constant 16 : index
      %c0_206 = arith.constant 0 : index
      %503 = vector.load %arg9[%c16_205, %c0_206] : memref<96x8xbf16, #tpu.memory_space<vmem>>, vector<8x2xbf16>
      %504 = arith.truncf %482 : vector<24x8xf32> to vector<24x8xbf16>
      %cst_207 = arith.constant dense<0.000000e+00> : vector<24x2xf32>
      %505 = tpu.matmul %504, %503, %cst_207 {dimension_numbers = #tpu.dot_dimension_numbers<[1], [0], [0], [1], [0, 0, 1, 1], [], []>} : vector<24x8xbf16>, vector<8x2xbf16>, vector<24x2xf32> -> vector<24x2xf32>
      %c80_208 = arith.constant 80 : index
      %c0_209 = arith.constant 0 : index
      %506 = vector.load %arg9[%c80_208, %c0_209] : memref<96x8xbf16, #tpu.memory_space<vmem>>, vector<8x2xbf16>
      %507 = arith.truncf %502 : vector<8x8xf32> to vector<8x8xbf16>
      %cst_210 = arith.constant dense<0.000000e+00> : vector<8x2xf32>
      %508 = tpu.matmul %507, %506, %cst_210 {dimension_numbers = #tpu.dot_dimension_numbers<[1], [0], [0], [1], [0, 0, 1, 1], [], []>} : vector<8x8xbf16>, vector<8x2xbf16>, vector<8x2xf32> -> vector<8x2xf32>
      %509 = vector.broadcast %479 : vector<1x2xf32> to vector<8x2xf32>
      %510 = arith.addf %508, %509 : vector<8x2xf32>
      %511 = arith.negf %510 : vector<8x2xf32>
      %512 = math.exp %511 : vector<8x2xf32>
      %cst_211 = arith.constant 1.000000e+00 : f32
      %513 = vector.broadcast %cst_211 : f32 to vector<8x2xf32>
      %514 = arith.addf %513, %512 : vector<8x2xf32>
      %515 = arith.divf %513, %514 : vector<8x2xf32>
      %516 = tpu.concatenate %515, %515, %515 in 0 : vector<8x2xf32>, vector<8x2xf32>, vector<8x2xf32> -> vector<24x2xf32>
      %517 = arith.mulf %505, %516 : vector<24x2xf32>
      %518 = arith.negf %502 : vector<8x8xf32>
      %519 = math.exp %518 : vector<8x8xf32>
      %cst_212 = arith.constant 1.000000e+00 : f32
      %520 = vector.broadcast %cst_212 : f32 to vector<8x8xf32>
      %521 = arith.addf %520, %519 : vector<8x8xf32>
      %522 = arith.divf %520, %521 : vector<8x8xf32>
      %523 = arith.mulf %502, %522 : vector<8x8xf32>
      %524 = vector.extract_strided_slice %517 {offsets = [0, 0], sizes = [8, 2], strides = [1, 1]} : vector<24x2xf32> to vector<8x2xf32>
      %525 = vector.extract_strided_slice %517 {offsets = [8, 0], sizes = [8, 2], strides = [1, 1]} : vector<24x2xf32> to vector<8x2xf32>
      %526 = vector.extract_strided_slice %517 {offsets = [16, 0], sizes = [8, 2], strides = [1, 1]} : vector<24x2xf32> to vector<8x2xf32>
      %527 = tpu.concatenate %523, %524, %525, %526 in 1 : vector<8x8xf32>, vector<8x2xf32>, vector<8x2xf32>, vector<8x2xf32> -> vector<8x14xf32>
      %c0_213 = arith.constant 0 : index
      %c0_214 = arith.constant 0 : index
      %528 = vector.load %arg17[%c0_213, %c0_214] : memref<8x14xf32, #tpu.memory_space<vmem>>, vector<8x14xf32>
      tpu.vector_store %arg17[%c0_213, %c0_214], %527 {strides = array<i32>} : memref<8x14xf32, #tpu.memory_space<vmem>>, vector<8x14xf32>,
    } else {
    }
    return
  }
  func.func @transform_0(%arg0: i32) -> (i32, i32) {
    %c0_i32 = arith.constant 0 : i32
    %c0_i32_0 = arith.constant 0 : i32
    %c0_i32_1 = arith.constant 0 : i32
    return %c0_i32, %c0_i32_0 : i32, i32
  }
  func.func @transform_1(%arg0: i32) -> (i32, i32) {
    %c0_i32 = arith.constant 0 : i32
    %c0_i32_0 = arith.constant 0 : i32
    %c0_i32_1 = arith.constant 0 : i32
    return %c0_i32, %c0_i32_0 : i32, i32
  }
  func.func @transform_2(%arg0: i32) -> (i32, i32) {
    %c0_i32 = arith.constant 0 : i32
    %c0_i32_0 = arith.constant 0 : i32
    %c0_i32_1 = arith.constant 0 : i32
    return %c0_i32, %c0_i32_0 : i32, i32
  }
  func.func @transform_3(%arg0: i32) -> (i32, i32) {
    %c0_i32 = arith.constant 0 : i32
    %c0_i32_0 = arith.constant 0 : i32
    %c0_i32_1 = arith.constant 0 : i32
    return %c0_i32, %c0_i32_0 : i32, i32
  }
  func.func @transform_4(%arg0: i32) -> (i32, i32) {
    %c0_i32 = arith.constant 0 : i32
    %c0_i32_0 = arith.constant 0 : i32
    %c0_i32_1 = arith.constant 0 : i32
    return %c0_i32, %c0_i32_0 : i32, i32
  }
  func.func @transform_5(%arg0: i32) -> (i32, i32) {
    %c0_i32 = arith.constant 0 : i32
    %c0_i32_0 = arith.constant 0 : i32
    %c0_i32_1 = arith.constant 0 : i32
    return %c0_i32, %c0_i32_0 : i32, i32
  }
  func.func @transform_6(%arg0: i32) -> (i32, i32) {
    %c0_i32 = arith.constant 0 : i32
    %c0_i32_0 = arith.constant 0 : i32
    %c0_i32_1 = arith.constant 0 : i32
    return %c0_i32, %c0_i32_0 : i32, i32
  }
  func.func @transform_7(%arg0: i32) -> (i32, i32) {
    %c0_i32 = arith.constant 0 : i32
    %c0_i32_0 = arith.constant 0 : i32
    %c0_i32_1 = arith.constant 0 : i32
    return %c0_i32, %c0_i32_0 : i32, i32
  }
  func.func @transform_8(%arg0: i32) -> (i32, i32) {
    %c0_i32 = arith.constant 0 : i32
    %c0_i32_0 = arith.constant 0 : i32
    %c0_i32_1 = arith.constant 0 : i32
    return %c0_i32, %c0_i32_0 : i32, i32
  }
  func.func @transform_9(%arg0: i32) -> (i32, i32) {
    %c0_i32 = arith.constant 0 : i32
    %c0_i32_0 = arith.constant 0 : i32
    %c0_i32_1 = arith.constant 0 : i32
    return %c0_i32, %c0_i32_0 : i32, i32
  }
  func.func @transform_10(%arg0: i32) -> (i32, i32, i32) {
    %c0_i32 = arith.constant 0 : i32
    %c0_i32_0 = arith.constant 0 : i32
    %c0_i32_1 = arith.constant 0 : i32
    return %arg0, %c0_i32, %c0_i32_0 : i32, i32, i32
  }
  func.func @transform_11(%arg0: i32) -> (i32, i32, i32) {
    %c0_i32 = arith.constant 0 : i32
    %c0_i32_0 = arith.constant 0 : i32
    %c0_i32_1 = arith.constant 0 : i32
    return %arg0, %c0_i32, %c0_i32_0 : i32, i32, i32
  }
  func.func @transform_12(%arg0: i32) -> (i32, i32, i32) {
    %c0_i32 = arith.constant 0 : i32
    %c0_i32_0 = arith.constant 0 : i32
    %c0_i32_1 = arith.constant 0 : i32
    return %arg0, %c0_i32, %c0_i32_0 : i32, i32, i32
  }
  func.func @transform_13(%arg0: i32) -> (i32, i32, i32) {
    %c0_i32 = arith.constant 0 : i32
    %c0_i32_0 = arith.constant 0 : i32
    %c0_i32_1 = arith.constant 0 : i32
    return %arg0, %c0_i32, %c0_i32_0 : i32, i32, i32
  }
  func.func @transform_14(%arg0: i32) -> (i32, i32, i32) {
    %c0_i32 = arith.constant 0 : i32
    %c0_i32_0 = arith.constant 0 : i32
    %c0_i32_1 = arith.constant 0 : i32
    return %arg0, %c0_i32, %c0_i32_0 : i32, i32, i32
  }
  func.func @transform_15(%arg0: i32) -> (i32, i32, i32) {
    %c0_i32 = arith.constant 0 : i32
    %c0_i32_0 = arith.constant 0 : i32
    %c0_i32_1 = arith.constant 0 : i32
    return %arg0, %c0_i32, %c0_i32_0 : i32, i32, i32
  }
  func.func @transform_16(%arg0: i32) -> (i32, i32) {
    %c0_i32 = arith.constant 0 : i32
    %c0_i32_0 = arith.constant 0 : i32
    %c0_i32_1 = arith.constant 0 : i32
    return %c0_i32, %c0_i32_0 : i32, i32
  }
}

</mosaic_0001>

<llo_original>
// kernel: _lambda_.1
$region0: #{_lambda_.1}
  #allocation0 [shape = 'u32[]', space=smem, size = 0x4, offset = 0x4, fixed_abs, tag = 'smem constant byte address 0x4 - core index']
  #allocation1 [shape = 'u32[72,128]{1,0:T(1,128)}', space=vmem, size = 0x9000, scoped, tag = 'internal scratch']
  #allocation2 [shape = 'f32[8,56]{1,0:T(8,128)}', space=vmem, size = 0x1000, scoped, tag = 'scratch operand']
  #allocation3 [shape = 'f32[16,35]{1,0:T(8,128)}', space=vmem, size = 0x2000, scoped, tag = 'scratch operand']
  %s0 = inlined_call_operand.vmem [shape: f32[8,3], index: 0, kind: input, shape index: {}]
  %s1 = inlined_call_operand.vmem [shape: f32[8,16], index: 1, kind: input, shape index: {}]
  %s2 = inlined_call_operand.vmem [shape: f32[24,4], index: 2, kind: input, shape index: {}]
  %s3 = inlined_call_operand.vmem [shape: s32[16,1], index: 3, kind: input, shape index: {}]
  %s4 = inlined_call_operand.vmem [shape: s32[16,1], index: 4, kind: input, shape index: {}]
  %s5 = inlined_call_operand.vmem [shape: s32[1,16], index: 5, kind: input, shape index: {}]
  %s6 = inlined_call_operand.vmem [shape: bf16[96,32], index: 6, kind: input, shape index: {}]
  %s7 = inlined_call_operand.vmem [shape: bf16[96,32], index: 7, kind: input, shape index: {}]
  %s8 = inlined_call_operand.vmem [shape: bf16[96,8], index: 8, kind: input, shape index: {}]
  %s9 = inlined_call_operand.vmem [shape: f32[16,128], index: 9, kind: input, shape index: {}]
  %s10 = inlined_call_operand.vmem [shape: bf16[2,240,32], index: 10, kind: input, shape index: {}]
  %s11 = inlined_call_operand.vmem [shape: bf16[2,112,32], index: 11, kind: input, shape index: {}]
  %s12 = inlined_call_operand.vmem [shape: bf16[2,112,32], index: 12, kind: input, shape index: {}]
  %s13 = inlined_call_operand.vmem [shape: bf16[2,208,128], index: 13, kind: input, shape index: {}]
  %s14 = inlined_call_operand.vmem [shape: bf16[2,208,32], index: 14, kind: input, shape index: {}]
  %s15 = inlined_call_operand.vmem [shape: f32[2,16,128], index: 15, kind: input, shape index: {}]
  %s16 = inlined_call_operand.vmem [shape: f32[8,14], index: 16, kind: output, shape index: {}]
  %s17 = sld [smem:[#allocation0]]
  $region105: #{_lambda_.1} parent=0
    _
  %s19 = ssub.s32 1, %s17
  %s20 = scalar_select 0, %s19, %s17
  loop: start=0, step=1, limit=4
  $region2: #{_lambda_.1} parent=0 // loop_pre_header
    _
  $region3: #{_lambda_.1} parent=0 // loop_header
    %s22 = sphi 0, %s26
    %p23 = scmp.ge.s32.totalorder %s22, 4
    %s30 = sphi 0, %s30
    %s32 = sphi 0, %s30
    %s33 = sphi 0, %s32
    %s47 = sphi 0, %s33
    %s51 = sphi 0, %s51
    %s53 = sphi 0, %s51
    %s54 = sphi 0, %s53
    %s68 = sphi 0, %s54
    %s72 = sphi 0, %s72
    %s74 = sphi 0, %s72
    %s75 = sphi 0, %s74
    %s89 = sphi 0, %s75
    %s93 = sphi 0, %s93
    %s95 = sphi 0, %s93
    %s96 = sphi 0, %s95
    %s110 = sphi 0, %s96
    %s114 = sphi 0, %s114
    %s116 = sphi 0, %s114
    %s117 = sphi 0, %s116
    %s131 = sphi 0, %s117
    %s135 = sphi 0, %s135
    %s137 = sphi 0, %s135
    %s138 = sphi 0, %s137
    %s152 = sphi 0, %s138
    %s156 = sphi 0, %s156
    %s158 = sphi 0, %s156
    %s159 = sphi 0, %s158
    %s173 = sphi 0, %s159
    %s177 = sphi 0, %s177
    %s179 = sphi 0, %s177
    %s180 = sphi 0, %s179
    %s194 = sphi 0, %s180
    %s198 = sphi 0, %s198
    %s200 = sphi 0, %s198
    %s201 = sphi 0, %s200
    %s215 = sphi 0, %s201
    %s219 = sphi 0, %s219
    %s221 = sphi 0, %s219
    %s222 = sphi 0, %s221
    %s236 = sphi 0, %s222
    %s242 = sphi 0, %s244
    %s245 = sphi 0, %s242
    %s246 = sphi 0, %s245
    %s262 = sphi 0, %s246
    %s268 = sphi 0, %s270
    %s271 = sphi 0, %s268
    %s272 = sphi 0, %s271
    %s288 = sphi 0, %s272
    %s294 = sphi 0, %s296
    %s297 = sphi 0, %s294
    %s298 = sphi 0, %s297
    %s314 = sphi 0, %s298
    %s320 = sphi 0, %s322
    %s323 = sphi 0, %s320
    %s324 = sphi 0, %s323
    %s340 = sphi 0, %s324
    %s346 = sphi 0, %s348
    %s349 = sphi 0, %s346
    %s350 = sphi 0, %s349
    %s366 = sphi 0, %s350
    %s372 = sphi 0, %s374
    %s375 = sphi 0, %s372
    %s376 = sphi 0, %s375
    %s392 = sphi 0, %s376
    %s396 = sphi 0, %s396
    %s398 = sphi 0, %s396
    %s399 = sphi 0, %s398
    %s413 = sphi 0, %s399
  $region4: #{_lambda_.1} parent=0 // loop_header_branch
    %25 = sbr.rel (%p23) target = $region8
  $region5: #{_lambda_.1} parent=0 // loop_body
    %s27 = ssub.s32 %s22, 1
    %s28 = ssub.s32 %s22, 2
    %s29 = sadd.s32 %s22, 1
    %s31 = sadd.s32 %s30, 1
    %p34 = scmp.eq.s32.totalorder %s22, 1
    %p35 = scmp.ne.s32.totalorder %s30, %s32
    %p36 = scmp.eq.s32.totalorder %s22, 0
    %p37 = por %p35, %p36
    %p38 = scmp.ne.s32.totalorder %s30, %s32
    %p39 = scmp.eq.s32.totalorder %s27, 1
    %p40 = por %p38, %p39
    %p41 = scmp.ne.s32.totalorder %s32, %s33
    %p42 = scmp.eq.s32.totalorder %s27, 0
    %p43 = por %p41, %p42
    %p44 = scmp.ne.s32.totalorder %s32, %s33
    %p45 = scmp.eq.s32.totalorder %s28, 1
    %p46 = por %p44, %p45
    %p48 = scmp.ne.s32.totalorder %s33, %s47
    %p49 = scmp.eq.s32.totalorder %s28, 0
    %p50 = por %p48, %p49
    %s52 = sadd.s32 %s51, 1
    %p55 = scmp.eq.s32.totalorder %s22, 1
    %p56 = scmp.ne.s32.totalorder %s51, %s53
    %p57 = scmp.eq.s32.totalorder %s22, 0
    %p58 = por %p56, %p57
    %p59 = scmp.ne.s32.totalorder %s51, %s53
    %p60 = scmp.eq.s32.totalorder %s27, 1
    %p61 = por %p59, %p60
    %p62 = scmp.ne.s32.totalorder %s53, %s54
    %p63 = scmp.eq.s32.totalorder %s27, 0
    %p64 = por %p62, %p63
    %p65 = scmp.ne.s32.totalorder %s53, %s54
    %p66 = scmp.eq.s32.totalorder %s28, 1
    %p67 = por %p65, %p66
    %p69 = scmp.ne.s32.totalorder %s54, %s68
    %p70 = scmp.eq.s32.totalorder %s28, 0
    %p71 = por %p69, %p70
    %s73 = sadd.s32 %s72, 1
    %p76 = scmp.eq.s32.totalorder %s22, 1
    %p77 = scmp.ne.s32.totalorder %s72, %s74
    %p78 = scmp.eq.s32.totalorder %s22, 0
    %p79 = por %p77, %p78
    %p80 = scmp.ne.s32.totalorder %s72, %s74
    %p81 = scmp.eq.s32.totalorder %s27, 1
    %p82 = por %p80, %p81
    %p83 = scmp.ne.s32.totalorder %s74, %s75
    %p84 = scmp.eq.s32.totalorder %s27, 0
    %p85 = por %p83, %p84
    %p86 = scmp.ne.s32.totalorder %s74, %s75
    %p87 = scmp.eq.s32.totalorder %s28, 1
    %p88 = por %p86, %p87
    %p90 = scmp.ne.s32.totalorder %s75, %s89
    %p91 = scmp.eq.s32.totalorder %s28, 0
    %p92 = por %p90, %p91
    %s94 = sadd.s32 %s93, 1
    %p97 = scmp.eq.s32.totalorder %s22, 1
    %p98 = scmp.ne.s32.totalorder %s93, %s95
    %p99 = scmp.eq.s32.totalorder %s22, 0
    %p100 = por %p98, %p99
    %p101 = scmp.ne.s32.totalorder %s93, %s95
    %p102 = scmp.eq.s32.totalorder %s27, 1
    %p103 = por %p101, %p102
    %p104 = scmp.ne.s32.totalorder %s95, %s96
    %p105 = scmp.eq.s32.totalorder %s27, 0
    %p106 = por %p104, %p105
    %p107 = scmp.ne.s32.totalorder %s95, %s96
    %p108 = scmp.eq.s32.totalorder %s28, 1
    %p109 = por %p107, %p108
    %p111 = scmp.ne.s32.totalorder %s96, %s110
    %p112 = scmp.eq.s32.totalorder %s28, 0
    %p113 = por %p111, %p112
    %s115 = sadd.s32 %s114, 1
    %p118 = scmp.eq.s32.totalorder %s22, 1
    %p119 = scmp.ne.s32.totalorder %s114, %s116
    %p120 = scmp.eq.s32.totalorder %s22, 0
    %p121 = por %p119, %p120
    %p122 = scmp.ne.s32.totalorder %s114, %s116
    %p123 = scmp.eq.s32.totalorder %s27, 1
    %p124 = por %p122, %p123
    %p125 = scmp.ne.s32.totalorder %s116, %s117
    %p126 = scmp.eq.s32.totalorder %s27, 0
    %p127 = por %p125, %p126
    %p128 = scmp.ne.s32.totalorder %s116, %s117
    %p129 = scmp.eq.s32.totalorder %s28, 1
    %p130 = por %p128, %p129
    %p132 = scmp.ne.s32.totalorder %s117, %s131
    %p133 = scmp.eq.s32.totalorder %s28, 0
    %p134 = por %p132, %p133
    %s136 = sadd.s32 %s135, 1
    %p139 = scmp.eq.s32.totalorder %s22, 1
    %p140 = scmp.ne.s32.totalorder %s135, %s137
    %p141 = scmp.eq.s32.totalorder %s22, 0
    %p142 = por %p140, %p141
    %p143 = scmp.ne.s32.totalorder %s135, %s137
    %p144 = scmp.eq.s32.totalorder %s27, 1
    %p145 = por %p143, %p144
    %p146 = scmp.ne.s32.totalorder %s137, %s138
    %p147 = scmp.eq.s32.totalorder %s27, 0
    %p148 = por %p146, %p147
    %p149 = scmp.ne.s32.totalorder %s137, %s138
    %p150 = scmp.eq.s32.totalorder %s28, 1
    %p151 = por %p149, %p150
    %p153 = scmp.ne.s32.totalorder %s138, %s152
    %p154 = scmp.eq.s32.totalorder %s28, 0
    %p155 = por %p153, %p154
    %s157 = sadd.s32 %s156, 1
    %p160 = scmp.eq.s32.totalorder %s22, 1
    %p161 = scmp.ne.s32.totalorder %s156, %s158
    %p162 = scmp.eq.s32.totalorder %s22, 0
    %p163 = por %p161, %p162
    %p164 = scmp.ne.s32.totalorder %s156, %s158
    %p165 = scmp.eq.s32.totalorder %s27, 1
    %p166 = por %p164, %p165
    %p167 = scmp.ne.s32.totalorder %s158, %s159
    %p168 = scmp.eq.s32.totalorder %s27, 0
    %p169 = por %p167, %p168
    %p170 = scmp.ne.s32.totalorder %s158, %s159
    %p171 = scmp.eq.s32.totalorder %s28, 1
    %p172 = por %p170, %p171
    %p174 = scmp.ne.s32.totalorder %s159, %s173
    %p175 = scmp.eq.s32.totalorder %s28, 0
    %p176 = por %p174, %p175
    %s178 = sadd.s32 %s177, 1
    %p181 = scmp.eq.s32.totalorder %s22, 1
    %p182 = scmp.ne.s32.totalorder %s177, %s179
    %p183 = scmp.eq.s32.totalorder %s22, 0
    %p184 = por %p182, %p183
    %p185 = scmp.ne.s32.totalorder %s177, %s179
    %p186 = scmp.eq.s32.totalorder %s27, 1
    %p187 = por %p185, %p186
    %p188 = scmp.ne.s32.totalorder %s179, %s180
    %p189 = scmp.eq.s32.totalorder %s27, 0
    %p190 = por %p188, %p189
    %p191 = scmp.ne.s32.totalorder %s179, %s180
    %p192 = scmp.eq.s32.totalorder %s28, 1
    %p193 = por %p191, %p192
    %p195 = scmp.ne.s32.totalorder %s180, %s194
    %p196 = scmp.eq.s32.totalorder %s28, 0
    %p197 = por %p195, %p196
    %s199 = sadd.s32 %s198, 1
    %p202 = scmp.eq.s32.totalorder %s22, 1
    %p203 = scmp.ne.s32.totalorder %s198, %s200
    %p204 = scmp.eq.s32.totalorder %s22, 0
    %p205 = por %p203, %p204
    %p206 = scmp.ne.s32.totalorder %s198, %s200
    %p207 = scmp.eq.s32.totalorder %s27, 1
    %p208 = por %p206, %p207
    %p209 = scmp.ne.s32.totalorder %s200, %s201
    %p210 = scmp.eq.s32.totalorder %s27, 0
    %p211 = por %p209, %p210
    %p212 = scmp.ne.s32.totalorder %s200, %s201
    %p213 = scmp.eq.s32.totalorder %s28, 1
    %p214 = por %p212, %p213
    %p216 = scmp.ne.s32.totalorder %s201, %s215
    %p217 = scmp.eq.s32.totalorder %s28, 0
    %p218 = por %p216, %p217
    %s220 = sadd.s32 %s219, 1
    %p223 = scmp.eq.s32.totalorder %s22, 1
    %p224 = scmp.ne.s32.totalorder %s219, %s221
    %p225 = scmp.eq.s32.totalorder %s22, 0
    %p226 = por %p224, %p225
    %p227 = scmp.ne.s32.totalorder %s219, %s221
    %p228 = scmp.eq.s32.totalorder %s27, 1
    %p229 = por %p227, %p228
    %p230 = scmp.ne.s32.totalorder %s221, %s222
    %p231 = scmp.eq.s32.totalorder %s27, 0
    %p232 = por %p230, %p231
    %p233 = scmp.ne.s32.totalorder %s221, %s222
    %p234 = scmp.eq.s32.totalorder %s28, 1
    %p235 = por %p233, %p234
    %p237 = scmp.ne.s32.totalorder %s222, %s236
    %p238 = scmp.eq.s32.totalorder %s28, 0
    %p239 = por %p237, %p238
    %s240 = ssub.s32 %s22, %s29
    %p241 = scmp.eq.s32.totalorder %s240, 0
    %s243 = sadd.s32 %s242, 1
    %s244 = scalar_select %p241, %s242, %s243
    %p247 = pneg %p241
    %p248 = scmp.eq.s32.totalorder %s22, 1
    %p249 = por %p247, %p248
    %p250 = scmp.ne.s32.totalorder %s242, %s245
    %p251 = scmp.eq.s32.totalorder %s22, 0
    %p252 = por %p250, %p251
    %p253 = scmp.ne.s32.totalorder %s242, %s245
    %p254 = scmp.eq.s32.totalorder %s27, 1
    %p255 = por %p253, %p254
    %p256 = scmp.ne.s32.totalorder %s245, %s246
    %p257 = scmp.eq.s32.totalorder %s27, 0
    %p258 = por %p256, %p257
    %p259 = scmp.ne.s32.totalorder %s245, %s246
    %p260 = scmp.eq.s32.totalorder %s28, 1
    %p261 = por %p259, %p260
    %p263 = scmp.ne.s32.totalorder %s246, %s262
    %p264 = scmp.eq.s32.totalorder %s28, 0
    %p265 = por %p263, %p264
    %s266 = ssub.s32 %s22, %s29
    %p267 = scmp.eq.s32.totalorder %s266, 0
    %s269 = sadd.s32 %s268, 1
    %s270 = scalar_select %p267, %s268, %s269
    %p273 = pneg %p267
    %p274 = scmp.eq.s32.totalorder %s22, 1
    %p275 = por %p273, %p274
    %p276 = scmp.ne.s32.totalorder %s268, %s271
    %p277 = scmp.eq.s32.totalorder %s22, 0
    %p278 = por %p276, %p277
    %p279 = scmp.ne.s32.totalorder %s268, %s271
    %p280 = scmp.eq.s32.totalorder %s27, 1
    %p281 = por %p279, %p280
    %p282 = scmp.ne.s32.totalorder %s271, %s272
    %p283 = scmp.eq.s32.totalorder %s27, 0
    %p284 = por %p282, %p283
    %p285 = scmp.ne.s32.totalorder %s271, %s272
    %p286 = scmp.eq.s32.totalorder %s28, 1
    %p287 = por %p285, %p286
    %p289 = scmp.ne.s32.totalorder %s272, %s288
    %p290 = scmp.eq.s32.totalorder %s28, 0
    %p291 = por %p289, %p290
    %s292 = ssub.s32 %s22, %s29
    %p293 = scmp.eq.s32.totalorder %s292, 0
    %s295 = sadd.s32 %s294, 1
    %s296 = scalar_select %p293, %s294, %s295
    %p299 = pneg %p293
    %p300 = scmp.eq.s32.totalorder %s22, 1
    %p301 = por %p299, %p300
    %p302 = scmp.ne.s32.totalorder %s294, %s297
    %p303 = scmp.eq.s32.totalorder %s22, 0
    %p304 = por %p302, %p303
    %p305 = scmp.ne.s32.totalorder %s294, %s297
    %p306 = scmp.eq.s32.totalorder %s27, 1
    %p307 = por %p305, %p306
    %p308 = scmp.ne.s32.totalorder %s297, %s298
    %p309 = scmp.eq.s32.totalorder %s27, 0
    %p310 = por %p308, %p309
    %p311 = scmp.ne.s32.totalorder %s297, %s298
    %p312 = scmp.eq.s32.totalorder %s28, 1
    %p313 = por %p311, %p312
    %p315 = scmp.ne.s32.totalorder %s298, %s314
    %p316 = scmp.eq.s32.totalorder %s28, 0
    %p317 = por %p315, %p316
    %s318 = ssub.s32 %s22, %s29
    %p319 = scmp.eq.s32.totalorder %s318, 0
    %s321 = sadd.s32 %s320, 1
    %s322 = scalar_select %p319, %s320, %s321
    %p325 = pneg %p319
    %p326 = scmp.eq.s32.totalorder %s22, 1
    %p327 = por %p325, %p326
    %p328 = scmp.ne.s32.totalorder %s320, %s323
    %p329 = scmp.eq.s32.totalorder %s22, 0
    %p330 = por %p328, %p329
    %p331 = scmp.ne.s32.totalorder %s320, %s323
    %p332 = scmp.eq.s32.totalorder %s27, 1
    %p333 = por %p331, %p332
    %p334 = scmp.ne.s32.totalorder %s323, %s324
    %p335 = scmp.eq.s32.totalorder %s27, 0
    %p336 = por %p334, %p335
    %p337 = scmp.ne.s32.totalorder %s323, %s324
    %p338 = scmp.eq.s32.totalorder %s28, 1
    %p339 = por %p337, %p338
    %p341 = scmp.ne.s32.totalorder %s324, %s340
    %p342 = scmp.eq.s32.totalorder %s28, 0
    %p343 = por %p341, %p342
    %s344 = ssub.s32 %s22, %s29
    %p345 = scmp.eq.s32.totalorder %s344, 0
    %s347 = sadd.s32 %s346, 1
    %s348 = scalar_select %p345, %s346, %s347
    %p351 = pneg %p345
    %p352 = scmp.eq.s32.totalorder %s22, 1
    %p353 = por %p351, %p352
    %p354 = scmp.ne.s32.totalorder %s346, %s349
    %p355 = scmp.eq.s32.totalorder %s22, 0
    %p356 = por %p354, %p355
    %p357 = scmp.ne.s32.totalorder %s346, %s349
    %p358 = scmp.eq.s32.totalorder %s27, 1
    %p359 = por %p357, %p358
    %p360 = scmp.ne.s32.totalorder %s349, %s350
    %p361 = scmp.eq.s32.totalorder %s27, 0
    %p362 = por %p360, %p361
    %p363 = scmp.ne.s32.totalorder %s349, %s350
    %p364 = scmp.eq.s32.totalorder %s28, 1
    %p365 = por %p363, %p364
    %p367 = scmp.ne.s32.totalorder %s350, %s366
    %p368 = scmp.eq.s32.totalorder %s28, 0
    %p369 = por %p367, %p368
    %s370 = ssub.s32 %s22, %s29
    %p371 = scmp.eq.s32.totalorder %s370, 0
    %s373 = sadd.s32 %s372, 1
    %s374 = scalar_select %p371, %s372, %s373
    %p377 = pneg %p371
    %p378 = scmp.eq.s32.totalorder %s22, 1
    %p379 = por %p377, %p378
    %p380 = scmp.ne.s32.totalorder %s372, %s375
    %p381 = scmp.eq.s32.totalorder %s22, 0
    %p382 = por %p380, %p381
    %p383 = scmp.ne.s32.totalorder %s372, %s375
    %p384 = scmp.eq.s32.totalorder %s27, 1
    %p385 = por %p383, %p384
    %p386 = scmp.ne.s32.totalorder %s375, %s376
    %p387 = scmp.eq.s32.totalorder %s27, 0
    %p388 = por %p386, %p387
    %p389 = scmp.ne.s32.totalorder %s375, %s376
    %p390 = scmp.eq.s32.totalorder %s28, 1
    %p391 = por %p389, %p390
    %p393 = scmp.ne.s32.totalorder %s376, %s392
    %p394 = scmp.eq.s32.totalorder %s28, 0
    %p395 = por %p393, %p394
    %s397 = sadd.s32 %s396, 1
    %p400 = scmp.eq.s32.totalorder %s22, 1
    %p401 = scmp.ne.s32.totalorder %s396, %s398
    %p402 = scmp.eq.s32.totalorder %s22, 0
    %p403 = por %p401, %p402
    %p404 = scmp.ne.s32.totalorder %s396, %s398
    %p405 = scmp.eq.s32.totalorder %s27, 1
    %p406 = por %p404, %p405
    %p407 = scmp.ne.s32.totalorder %s398, %s399
    %p408 = scmp.eq.s32.totalorder %s27, 0
    %p409 = por %p407, %p408
    %p410 = scmp.ne.s32.totalorder %s398, %s399
    %p411 = scmp.eq.s32.totalorder %s28, 1
    %p412 = por %p410, %p411
    %p414 = scmp.ne.s32.totalorder %s399, %s413
    %p415 = scmp.eq.s32.totalorder %s28, 0
    %p416 = por %p414, %p415
    %p417 = scmp.le.s32.totalorder 1, %s22
    %p418 = scmp.lt.s32.totalorder %s22, 3
    %p419 = pnand %p417, %p418
    %p420 = pneg %p419
    // Predicated region
    $region9: #{_lambda_.1} parent=5 // pred_check
      _
    $region10: #{_lambda_.1} parent=5 // pred_check_branch
      %422 = sbr.rel (%p419) target = $region12
    $region11: #{_lambda_.1} parent=5 // pred_region
      %s423 = ssub.s32 %s22, 1
      // Predicated region
      $region13: #{_lambda_.1} parent=11 // pred_check
        %p424 = pneg %p43
      $region14: #{_lambda_.1} parent=11 // pred_check_branch
        %426 = sbr.rel (%p424) target = $region16
      $region15: #{_lambda_.1} parent=11 // pred_region
        _
      $region16: #{_lambda_.1} parent=11 // pred_fallthru
        _
      // Predicated region
      $region17: #{_lambda_.1} parent=11 // pred_check
        %p427 = pneg %p64
      $region18: #{_lambda_.1} parent=11 // pred_check_branch
        %429 = sbr.rel (%p427) target = $region20
      $region19: #{_lambda_.1} parent=11 // pred_region
        _
      $region20: #{_lambda_.1} parent=11 // pred_fallthru
        _
      // Predicated region
      $region21: #{_lambda_.1} parent=11 // pred_check
        %p430 = pneg %p85
      $region22: #{_lambda_.1} parent=11 // pred_check_branch
        %432 = sbr.rel (%p430) target = $region24
      $region23: #{_lambda_.1} parent=11 // pred_region
        _
      $region24: #{_lambda_.1} parent=11 // pred_fallthru
        _
      // Predicated region
      $region25: #{_lambda_.1} parent=11 // pred_check
        %p433 = pneg %p106
      $region26: #{_lambda_.1} parent=11 // pred_check_branch
        %435 = sbr.rel (%p433) target = $region28
      $region27: #{_lambda_.1} parent=11 // pred_region
        _
      $region28: #{_lambda_.1} parent=11 // pred_fallthru
        _
      // Predicated region
      $region29: #{_lambda_.1} parent=11 // pred_check
        %p436 = pneg %p127
      $region30: #{_lambda_.1} parent=11 // pred_check_branch
        %438 = sbr.rel (%p436) target = $region32
      $region31: #{_lambda_.1} parent=11 // pred_region
        _
      $region32: #{_lambda_.1} parent=11 // pred_fallthru
        _
      // Predicated region
      $region33: #{_lambda_.1} parent=11 // pred_check
        %p439 = pneg %p148
      $region34: #{_lambda_.1} parent=11 // pred_check_branch
        %441 = sbr.rel (%p439) target = $region36
      $region35: #{_lambda_.1} parent=11 // pred_region
        _
      $region36: #{_lambda_.1} parent=11 // pred_fallthru
        _
      // Predicated region
      $region37: #{_lambda_.1} parent=11 // pred_check
        %p442 = pneg %p169
      $region38: #{_lambda_.1} parent=11 // pred_check_branch
        %444 = sbr.rel (%p442) target = $region40
      $region39: #{_lambda_.1} parent=11 // pred_region
        _
      $region40: #{_lambda_.1} parent=11 // pred_fallthru
        _
      // Predicated region
      $region41: #{_lambda_.1} parent=11 // pred_check
        %p445 = pneg %p190
      $region42: #{_lambda_.1} parent=11 // pred_check_branch
        %447 = sbr.rel (%p445) target = $region44
      $region43: #{_lambda_.1} parent=11 // pred_region
        _
      $region44: #{_lambda_.1} parent=11 // pred_fallthru
        _
      // Predicated region
      $region45: #{_lambda_.1} parent=11 // pred_check
        %p448 = pneg %p211
      $region46: #{_lambda_.1} parent=11 // pred_check_branch
        %450 = sbr.rel (%p448) target = $region48
      $region47: #{_lambda_.1} parent=11 // pred_region
        _
      $region48: #{_lambda_.1} parent=11 // pred_fallthru
        _
      // Predicated region
      $region49: #{_lambda_.1} parent=11 // pred_check
        %p451 = pneg %p232
      $region50: #{_lambda_.1} parent=11 // pred_check_branch
        %453 = sbr.rel (%p451) target = $region52
      $region51: #{_lambda_.1} parent=11 // pred_region
        _
      $region52: #{_lambda_.1} parent=11 // pred_fallthru
        _
    $region12: #{_lambda_.1} parent=5 // pred_fallthru
      _
    %p454 = scmp.lt.s32.totalorder %s22, 2
    // Predicated region
    $region53: #{_lambda_.1} parent=5 // pred_check
      %p455 = pneg %p454
    $region54: #{_lambda_.1} parent=5 // pred_check_branch
      %457 = sbr.rel (%p455) target = $region56
    $region55: #{_lambda_.1} parent=5 // pred_region
      // Predicated region
      $region57: #{_lambda_.1} parent=55 // pred_check
        %p458 = pneg %p252
      $region58: #{_lambda_.1} parent=55 // pred_check_branch
        %460 = sbr.rel (%p458) target = $region60
      $region59: #{_lambda_.1} parent=55 // pred_region
        %p461 = scmp.lt.s32.totalorder %s22, 1
        %s462 = scalar_select %p461, %s22, 1
        %s463 = smul.addr %s462, 30
        %s464 = smul.addr %s463, 4
        %s465 = scalar_lea.vmem %s10, %s464
      $region60: #{_lambda_.1} parent=55 // pred_fallthru
        _
      // Predicated region
      $region61: #{_lambda_.1} parent=55 // pred_check
        %p466 = pneg %p278
      $region62: #{_lambda_.1} parent=55 // pred_check_branch
        %468 = sbr.rel (%p466) target = $region64
      $region63: #{_lambda_.1} parent=55 // pred_region
        %p469 = scmp.lt.s32.totalorder %s22, 1
        %s470 = scalar_select %p469, %s22, 1
        %s471 = smul.addr %s470, 14
        %s472 = smul.addr %s471, 4
        %s473 = scalar_lea.vmem %s11, %s472
      $region64: #{_lambda_.1} parent=55 // pred_fallthru
        _
      // Predicated region
      $region65: #{_lambda_.1} parent=55 // pred_check
        %p474 = pneg %p304
      $region66: #{_lambda_.1} parent=55 // pred_check_branch
        %476 = sbr.rel (%p474) target = $region68
      $region67: #{_lambda_.1} parent=55 // pred_region
        %p477 = scmp.lt.s32.totalorder %s22, 1
        %s478 = scalar_select %p477, %s22, 1
        %s479 = smul.addr %s478, 14
        %s480 = smul.addr %s479, 4
        %s481 = scalar_lea.vmem %s12, %s480
      $region68: #{_lambda_.1} parent=55 // pred_fallthru
        _
      // Predicated region
      $region69: #{_lambda_.1} parent=55 // pred_check
        %p482 = pneg %p330
      $region70: #{_lambda_.1} parent=55 // pred_check_branch
        %484 = sbr.rel (%p482) target = $region72
      $region71: #{_lambda_.1} parent=55 // pred_region
        %p485 = scmp.lt.s32.totalorder %s22, 1
        %s486 = scalar_select %p485, %s22, 1
        %s487 = smul.addr %s486, 26
        %s488 = smul.addr %s487, 4
        %s489 = scalar_lea.vmem %s13, %s488
      $region72: #{_lambda_.1} parent=55 // pred_fallthru
        _
      // Predicated region
      $region73: #{_lambda_.1} parent=55 // pred_check
        %p490 = pneg %p356
      $region74: #{_lambda_.1} parent=55 // pred_check_branch
        %492 = sbr.rel (%p490) target = $region76
      $region75: #{_lambda_.1} parent=55 // pred_region
        %p493 = scmp.lt.s32.totalorder %s22, 1
        %s494 = scalar_select %p493, %s22, 1
        %s495 = smul.addr %s494, 26
        %s496 = smul.addr %s495, 4
        %s497 = scalar_lea.vmem %s14, %s496
      $region76: #{_lambda_.1} parent=55 // pred_fallthru
        _
      // Predicated region
      $region77: #{_lambda_.1} parent=55 // pred_check
        %p498 = pneg %p382
      $region78: #{_lambda_.1} parent=55 // pred_check_branch
        %500 = sbr.rel (%p498) target = $region80
      $region79: #{_lambda_.1} parent=55 // pred_region
        %p501 = scmp.lt.s32.totalorder %s22, 1
        %s502 = scalar_select %p501, %s22, 1
        %s503 = smul.addr %s502, 2
        %s504 = smul.addr %s503, 8
        %s505 = scalar_lea.vmem %s15, %s504
      $region80: #{_lambda_.1} parent=55 // pred_fallthru
        _
    $region56: #{_lambda_.1} parent=5 // pred_fallthru
      _
    %p506 = scmp.le.s32.totalorder 1, %s22
    %p507 = scmp.lt.s32.totalorder %s22, 3
    %p508 = pnand %p506, %p507
    %p509 = pneg %p508
    // Predicated region
    $region81: #{_lambda_.1} parent=5 // pred_check
      _
    $region82: #{_lambda_.1} parent=5 // pred_check_branch
      %511 = sbr.rel (%p508) target = $region84
    $region83: #{_lambda_.1} parent=5 // pred_region
      %s512 = ssub.s32 %s22, 1
      %p513 = pneg %p43
      %p514 = pneg %p40
      %p515 = pneg %p64
      %p516 = pneg %p61
      %p517 = pneg %p85
      %p518 = pneg %p82
      %p519 = pneg %p106
      %p520 = pneg %p103
      %p521 = pneg %p127
      %p522 = pneg %p124
      %p523 = pneg %p148
      %p524 = pneg %p145
      %p525 = pneg %p169
      %p526 = pneg %p166
      %p527 = pneg %p190
      %p528 = pneg %p187
      %p529 = pneg %p211
      %p530 = pneg %p208
      %p531 = pneg %p232
      %p532 = pneg %p229
      %p533 = scmp.lt.s32.totalorder %s27, 1
      %s534 = scalar_select %p533, %s27, 1
      %s535 = smul.addr %s534, 30
      %s536 = smul.addr %s535, 4
      %s537 = scalar_lea.vmem %s10, %s536
      %p538 = pneg %p258
      %p539 = pneg %p255
      %p540 = scmp.lt.s32.totalorder %s27, 1
      %s541 = scalar_select %p540, %s27, 1
      %s542 = smul.addr %s541, 14
      %s543 = smul.addr %s542, 4
      %s544 = scalar_lea.vmem %s11, %s543
      %p545 = pneg %p284
      %p546 = pneg %p281
      %p547 = scmp.lt.s32.totalorder %s27, 1
      %s548 = scalar_select %p547, %s27, 1
      %s549 = smul.addr %s548, 14
      %s550 = smul.addr %s549, 4
      %s551 = scalar_lea.vmem %s12, %s550
      %p552 = pneg %p310
      %p553 = pneg %p307
      %p554 = scmp.lt.s32.totalorder %s27, 1
      %s555 = scalar_select %p554, %s27, 1
      %s556 = smul.addr %s555, 26
      %s557 = smul.addr %s556, 4
      %s558 = scalar_lea.vmem %s13, %s557
      %p559 = pneg %p336
      %p560 = pneg %p333
      %p561 = scmp.lt.s32.totalorder %s27, 1
      %s562 = scalar_select %p561, %s27, 1
      %s563 = smul.addr %s562, 26
      %s564 = smul.addr %s563, 4
      %s565 = scalar_lea.vmem %s14, %s564
      %p566 = pneg %p362
      %p567 = pneg %p359
      %p568 = scmp.lt.s32.totalorder %s27, 1
      %s569 = scalar_select %p568, %s27, 1
      %s570 = smul.addr %s569, 2
      %s571 = smul.addr %s570, 8
      %s572 = scalar_lea.vmem %s15, %s571
      %p573 = pneg %p388
      %p574 = pneg %p385
      %p575 = pneg %p409
      %p576 = pneg %p406
      %p577 = scmp.lt.s32.totalorder %s27, 1
      %s578 = scalar_select %p577, %s27, 1
      %s579 = smul.addr %s578, 30
      %s580 = smul.addr %s579, 4
      %s581 = scalar_lea.vmem %s10, %s580
      %p582 = scmp.lt.s32.totalorder %s27, 1
      %s583 = scalar_select %p582, %s27, 1
      %s584 = smul.addr %s583, 14
      %s585 = smul.addr %s584, 4
      %s586 = scalar_lea.vmem %s11, %s585
      %p587 = scmp.lt.s32.totalorder %s27, 1
      %s588 = scalar_select %p587, %s27, 1
      %s589 = smul.addr %s588, 14
      %s590 = smul.addr %s589, 4
      %s591 = scalar_lea.vmem %s12, %s590
      %p592 = scmp.lt.s32.totalorder %s27, 1
      %s593 = scalar_select %p592, %s27, 1
      %s594 = smul.addr %s593, 26
      %s595 = smul.addr %s594, 4
      %s596 = scalar_lea.vmem %s13, %s595
      %p597 = scmp.lt.s32.totalorder %s27, 1
      %s598 = scalar_select %p597, %s27, 1
      %s599 = smul.addr %s598, 26
      %s600 = smul.addr %s599, 4
      %s601 = scalar_lea.vmem %s14, %s600
      %p602 = scmp.lt.s32.totalorder %s27, 1
      %s603 = scalar_select %p602, %s27, 1
      %s604 = smul.addr %s603, 2
      %s605 = smul.addr %s604, 8
      %s606 = scalar_lea.vmem %s15, %s605
      %p608 = scmp.eq.s32.totalorder %s27, 0
      // Predicated region
      $region85: #{_lambda_.1} parent=83 // pred_check
        %p609 = pneg %p608
      $region86: #{_lambda_.1} parent=83 // pred_check_branch
        %611 = sbr.rel (%p609) target = $region88
      $region87: #{_lambda_.1} parent=83 // pred_region
        %v612 = vld [vmem:[%s0] sm:$0xff]
        %v613 = vld [vmem:[%s3] sm:$0xff]
        %v614 = vld [vmem:[%s3 + $0x8] sm:$0xff]
        %v615 = vld [vmem:[%s4] sm:$0xff]
        %v616 = vld [vmem:[%s4 + $0x8] sm:$0xff]
        %v617 = vlaneseq
        %v618 = vand.u32 %v617, 127
        %619 = vset.pattern.permute.xlu0 0
        %620 = vperm.xlu0 %619, %v613
        %v621 = vpop.permute.xlu0 %620
        %622 = vset.pattern.permute.xlu0 0
        %623 = vperm.xlu0 %622, %v614
        %v624 = vpop.permute.xlu0 %623
        %vm625 = vcmp.eq.s32.totalorder %v618, %v621
        %vm626 = vcmp.eq.s32.totalorder %v618, %v624
        %v627 = vsel %vm625, 1, 0
        %v628 = vsel %vm626, 1, 0
        %v629 = vcvt.s32.f32 %v627
        %v630 = vcvt.s32.f32 %v628
        %631 = vset.pattern.permute.xlu0 0
        %632 = vperm.xlu0 %631, %v615
        %v633 = vpop.permute.xlu0 %632
        %634 = vset.pattern.permute.xlu0 0
        %635 = vperm.xlu0 %634, %v616
        %v636 = vpop.permute.xlu0 %635
        %vm637 = vcmp.eq.s32.totalorder %v618, %v633
        %vm638 = vcmp.eq.s32.totalorder %v618, %v636
        %v639 = vsel %vm637, 1, 0
        %v640 = vsel %vm638, 1, 0
        %v641 = vcvt.s32.f32 %v639
        %v642 = vcvt.s32.f32 %v640
        %v643 = vsub.f32 %v629, %v641
        %v644 = vsub.f32 %v630, %v642
        %vm645 = vcmask 64512
        %v647 = vsel %vm645, %v643, 0
        %v650 = vsel %vm645, %v644, 0
        %652 = vmatpush.msra.mxu0 0.0
        %653 = vmatpush.msra.mxu0 0.0
        %654 = vmatpush.msra.mxu0 0.0
        %655 = vmatpush.msra.mxu0 0.0
        %656 = vmatpush.msra.mxu0 0.0
        %657 = vmatpush.msra.mxu0 0.0
        %658 = vmatpush.msra.mxu0 0.0
        %659 = vmatpush.msra.mxu0 0.0
        %660 = vmatpush.msra.mxu0 0.0
        %661 = vmatpush.msra.mxu0 0.0
        %662 = vmatpush.msra.mxu0 0.0
        %663 = vmatpush.msra.mxu0 0.0
        %664 = vmatpush.msra.mxu0 0.0
        %665 = vmatpush.msra.mxu0 0.0
        %666 = vmatpush.msra.mxu0 0.0
        %667 = vmatpush.msra.mxu0 %v612
        %668 = vmatmul.f32.gmra.mxu0 %v647
        %v669 = vpop.f32.mrf.mxu0
        %v670 = vadd.f32 0.0, %v669
        %671 = vmatmul.f32.gmra.mxu0 %v650
        %v672 = vpop.f32.mrf.mxu0
        %v673 = vadd.f32 0.0, %v672
        %674 = vdwg.mxu0
        %v675 = vmul.f32 %v670, %v670
        %v676 = vmul.f32 %v673, %v673
        %vm677 = vcmask 23552
        %v678 = vsel %vm677, %v675, 0.0
        %679 = vadd.xlane.f32.xlu0 %v678
        %v680 = vpop.xlane.xlu0 %679
        %v681 = vsel %vm677, %v676, 0.0
        %682 = vadd.xlane.f32.xlu0 %v681
        %v683 = vpop.xlane.xlu0 %682
        %v684 = vrsqrt.pop %v680
        %v685 = vmul.f32 %v684, %v680
        %v686 = vmul.f32 %v685, %v684
        %v687 = vmul.f32 0.5, %v686
        %v688 = vsub.f32 1.5, %v687
        %v689 = vmul.f32 %v684, %v688
        %v690 = vmul.f32 %v680, %v689
        %vm691 = vcmp.eq.f32.partialorder %v680, inf
        %v692 = vsel %vm691, %v680, %v690
        %vm693 = vcmp.eq.f32.partialorder %v680, 0.0
        %v694 = vand.u32 %v680, 2147483648
        %v695 = vsel %vm693, %v694, %v692
        %v696 = vrsqrt.pop %v683
        %v697 = vmul.f32 %v696, %v683
        %v698 = vmul.f32 %v697, %v696
        %v699 = vmul.f32 0.5, %v698
        %v700 = vsub.f32 1.5, %v699
        %v701 = vmul.f32 %v696, %v700
        %v702 = vmul.f32 %v683, %v701
        %vm703 = vcmp.eq.f32.partialorder %v683, inf
        %v704 = vsel %vm703, %v683, %v702
        %vm705 = vcmp.eq.f32.partialorder %v683, 0.0
        %v706 = vand.u32 %v683, 2147483648
        %v707 = vsel %vm705, %v706, %v704
        %v708 = vmax.f32 %v695, 0.0001
        %v709 = vmax.f32 %v707, 0.0001
        %v710 = vrcp.pop %v708
        %v711 = vmul.f32 %v708, %v710
        %v712 = vsub.f32 1.0, %v711
        %v713 = vmul.f32 %v710, %v712
        %v714 = vadd.f32 %v710, %v713
        %vm715 = vweird.f32 %v708
        %vm716 = vweird.f32 %v710
        %vm717 = vmor %vm715, %vm716
        %v718 = vsel %vm717, %v710, %v714
        %v719 = vand.u32 2147483647, %v708
        %vm720 = vcmp.eq.f32.partialorder %v719, 8.507059e+37
        %v721 = vand.u32 %v708, 2147483648
        %v722 = vor.u32 1.1754944e-38, %v721
        %v723 = vsel %vm720, %v722, %v718
        %v724 = vmul.f32 %v670, %v723
        %v725 = vrcp.pop %v709
        %v726 = vmul.f32 %v709, %v725
        %v727 = vsub.f32 1.0, %v726
        %v728 = vmul.f32 %v725, %v727
        %v729 = vadd.f32 %v725, %v728
        %vm730 = vweird.f32 %v709
        %vm731 = vweird.f32 %v725
        %vm732 = vmor %vm730, %vm731
        %v733 = vsel %vm732, %v725, %v729
        %v734 = vand.u32 2147483647, %v709
        %vm735 = vcmp.eq.f32.partialorder %v734, 8.507059e+37
        %v736 = vand.u32 %v709, 2147483648
        %v737 = vor.u32 1.1754944e-38, %v736
        %v738 = vsel %vm735, %v737, %v733
        %v739 = vmul.f32 %v673, %v738
        %742 = vrot.lane.b32.xlu0 %v724, 127
        %v743 = vpop.permute.xlu0 %742
        %744 = vrot.lane.b32.xlu0 %v739, 127
        %v745 = vpop.permute.xlu0 %744
        %748 = vrot.lane.b32.xlu0 %v724, 126
        %v749 = vpop.permute.xlu0 %748
        %750 = vrot.lane.b32.xlu0 %v739, 126
        %v751 = vpop.permute.xlu0 %750
        %v754 = vld [vmem:[%s9] sm:$0x1]
        %v755 = vld [vmem:[%s9 + $0x1] sm:$0x1]
        %v756 = vmul.f32 %v724, %v724
        %v757 = vmul.f32 %v739, %v739
        %v758 = vmul.f32 %v743, %v743
        %v759 = vmul.f32 %v745, %v745
        %v760 = vadd.f32 %v756, %v758
        %v761 = vadd.f32 %v757, %v759
        %v762 = vmul.f32 %v749, %v749
        %v763 = vmul.f32 %v751, %v751
        %v764 = vadd.f32 %v760, %v762
        %v765 = vadd.f32 %v761, %v763
        %v766 = vmax.f32 %v764, 1e-08
        %v767 = vmax.f32 %v765, 1e-08
        %v768 = vadd.f32 %v766, 0.0
        %v769 = vadd.f32 %v767, 0.0
        %v770 = vrsqrt.pop %v768
        %v771 = vmul.f32 %v770, %v768
        %v772 = vmul.f32 %v771, %v770
        %v773 = vmul.f32 0.5, %v772
        %v774 = vsub.f32 1.5, %v773
        %v775 = vmul.f32 %v770, %v774
        %vm776 = vweird.f32 %v768
        %vm777 = vweird.f32 %v770
        %vm778 = vmor %vm776, %vm777
        %v779 = vsel %vm778, %v770, %v775
        %v780 = vrsqrt.pop %v769
        %v781 = vmul.f32 %v780, %v769
        %v782 = vmul.f32 %v781, %v780
        %v783 = vmul.f32 0.5, %v782
        %v784 = vsub.f32 1.5, %v783
        %v785 = vmul.f32 %v780, %v784
        %vm786 = vweird.f32 %v769
        %vm787 = vweird.f32 %v780
        %vm788 = vmor %vm786, %vm787
        %v789 = vsel %vm788, %v780, %v785
        %v790 = vmul.f32 %v724, %v779
        %v791 = vmul.f32 %v739, %v789
        %v792 = vmul.f32 %v743, %v779
        %v793 = vmul.f32 %v745, %v789
        %v794 = vmul.f32 %v749, %v779
        %v795 = vmul.f32 %v751, %v789
        %v796 = vadd.f32 %v695, 0.0
        %v797 = vadd.f32 %v707, 0.0
        %v798 = vsub.f32 %v695, %v796
        %v799 = vsub.f32 %v707, %v797
        %v800 = vmul.f32 %v798, %v798
        %v801 = vmul.f32 %v799, %v799
        %v802 = vadd.f32 %v800, 0.0
        %v803 = vadd.f32 %v801, 0.0
        %v804 = vadd.f32 %v802, 1e-05
        %v805 = vadd.f32 %v803, 1e-05
        %v806 = vrsqrt.pop %v804
        %v807 = vmul.f32 %v806, %v804
        %v808 = vmul.f32 %v807, %v806
        %v809 = vmul.f32 0.5, %v808
        %v810 = vsub.f32 1.5, %v809
        %v811 = vmul.f32 %v806, %v810
        %vm812 = vweird.f32 %v804
        %vm813 = vweird.f32 %v806
        %vm814 = vmor %vm812, %vm813
        %v815 = vsel %vm814, %v806, %v811
        %v816 = vrsqrt.pop %v805
        %v817 = vmul.f32 %v816, %v805
        %v818 = vmul.f32 %v817, %v816
        %v819 = vmul.f32 0.5, %v818
        %v820 = vsub.f32 1.5, %v819
        %v821 = vmul.f32 %v816, %v820
        %vm822 = vweird.f32 %v805
        %vm823 = vweird.f32 %v816
        %vm824 = vmor %vm822, %vm823
        %v825 = vsel %vm824, %v816, %v821
        %v826 = vmul.f32 %v798, %v815
        %v827 = vmul.f32 %v799, %v825
        %v828 = vperm.slane %v754, 0
        %v829 = vmul.f32 %v826, %v828
        %v830 = vmul.f32 %v827, %v828
        %v831 = vperm.slane %v755, 0
        %v832 = vadd.f32 %v829, %v831
        %v833 = vadd.f32 %v830, %v831
        %v834 = vld [vmem:[%s9 + $0x6] sm:$0x1]
        %v835 = vld [vmem:[%s9 + $0x7] sm:$0x1]
        %v836 = vld [vmem:[%s6] sm:$0x1]
        %v837 = vunpack.c.l.bf16 %v836
        %v838 = vperm.slane %v837, 0
        %v839 = vmul.f32 %v790, %v838
        %v840 = vmul.f32 %v791, %v838
        %v841 = vmul.f32 %v792, %v838
        %v842 = vmul.f32 %v793, %v838
        %v843 = vmul.f32 %v794, %v838
        %v844 = vmul.f32 %v795, %v838
        %v845 = vmul.f32 %v839, %v839
        %v846 = vmul.f32 %v840, %v840
        %v847 = vmul.f32 %v841, %v841
        %v848 = vmul.f32 %v842, %v842
        %v849 = vadd.f32 %v845, %v847
        %v850 = vadd.f32 %v846, %v848
        %v851 = vmul.f32 %v843, %v843
        %v852 = vmul.f32 %v844, %v844
        %v853 = vadd.f32 %v849, %v851
        %v854 = vadd.f32 %v850, %v852
        %v855 = vmax.f32 %v853, 1e-08
        %v856 = vmax.f32 %v854, 1e-08
        %v857 = vrsqrt.pop %v855
        %v858 = vmul.f32 %v857, %v855
        %v859 = vmul.f32 %v858, %v857
        %v860 = vmul.f32 0.5, %v859
        %v861 = vsub.f32 1.5, %v860
        %v862 = vmul.f32 %v857, %v861
        %v863 = vmul.f32 %v855, %v862
        %vm864 = vcmp.eq.f32.partialorder %v855, inf
        %v865 = vsel %vm864, %v855, %v863
        %vm866 = vcmp.eq.f32.partialorder %v855, 0.0
        %v867 = vand.u32 %v855, 2147483648
        %v868 = vsel %vm866, %v867, %v865
        %v869 = vrsqrt.pop %v856
        %v870 = vmul.f32 %v869, %v856
        %v871 = vmul.f32 %v870, %v869
        %v872 = vmul.f32 0.5, %v871
        %v873 = vsub.f32 1.5, %v872
        %v874 = vmul.f32 %v869, %v873
        %v875 = vmul.f32 %v856, %v874
        %vm876 = vcmp.eq.f32.partialorder %v856, inf
        %v877 = vsel %vm876, %v856, %v875
        %vm878 = vcmp.eq.f32.partialorder %v856, 0.0
        %v879 = vand.u32 %v856, 2147483648
        %v880 = vsel %vm878, %v879, %v877
        %v881 = vld [vmem:[%s6 + $0x10] sm:$0x1]
        %v882 = vunpack.c.l.bf16 %v881
        %884 = vset.pattern.permute.xlu0 0
        %885 = vperm.xlu0 %884, %v832
        %v886 = vpop.permute.xlu0 %885
        %889 = vset.pattern.permute.xlu0 0
        %890 = vperm.xlu0 %889, %v833
        %v891 = vpop.permute.xlu0 %890
        %v893 = vperm.slane %v882, 0
        %v894 = vmul.f32 %v886, %v893
        %v895 = vmul.f32 %v891, %v893
        %v896 = vperm.slane %v834, 0
        %v897 = vadd.f32 %v896, %v894
        %v898 = vadd.f32 %v896, %v895
        %v899 = vld [vmem:[%s6 + $0x18] sm:$0x1]
        %v900 = vunpack.c.l.bf16 %v899
        %902 = vset.pattern.permute.xlu0 0
        %903 = vperm.xlu0 %902, %v868
        %v904 = vpop.permute.xlu0 %903
        %907 = vset.pattern.permute.xlu0 0
        %908 = vperm.xlu0 %907, %v880
        %v909 = vpop.permute.xlu0 %908
        %v911 = vperm.slane %v900, 0
        %v912 = vmul.f32 %v904, %v911
        %v913 = vmul.f32 %v909, %v911
        %v914 = vadd.f32 %v897, %v912
        %v915 = vadd.f32 %v898, %v913
        %v916 = vld [vmem:[%s6 + $0x8] sm:$0x1]
        %v917 = vunpack.c.l.bf16 %v916
        %v918 = vperm.slane %v917, 0
        %v919 = vmul.f32 %v839, %v918
        %v920 = vmul.f32 %v840, %v918
        %v921 = vmul.f32 %v841, %v918
        %v922 = vmul.f32 %v842, %v918
        %v923 = vmul.f32 %v843, %v918
        %v924 = vmul.f32 %v844, %v918
        %v925 = vld [vmem:[%s6 + $0x20] sm:$0xf]
        %v926 = vld [vmem:[%s6 + $0x24] sm:$0xf]
        %v927 = vld [vmem:[%s6 + $0x28] sm:$0xf]
        %v928 = vld [vmem:[%s6 + $0x2c] sm:$0xf]
        %v929 = vpack.c.bf16 %v915, %v914
        %v930 = vperm.slane %v835, 0
        %v935 = vunpack.c.l.b16 %v925
        %v936 = vunpack.c.l.b16 %v926
        %v937 = vunpack.c.l.b16 %v927
        %v938 = vunpack.c.l.b16 %v928
        %v939 = vpack.c.b16 %v936, %v935
        %v940 = vpack.c.b16 %v938, %v937
        %vm943 = vcmask 261120
        %v945 = vsel %vm943, %v929, 0
        %947 = vmatpush.bf16.msra.mxu0 0
        %948 = vmatpush.bf16.msra.mxu0 0
        %949 = vmatpush.bf16.msra.mxu0 0
        %950 = vmatpush.bf16.msra.mxu0 0
        %951 = vmatpush.bf16.msra.mxu0 0
        %952 = vmatpush.bf16.msra.mxu0 0
        %953 = vmatpush.bf16.msra.mxu0 %v940
        %954 = vmatpush.bf16.msra.mxu0 %v939
        %955 = vmatmul.bf16.gmra.mxu0 %v945
        %v956 = vpop.f32.mrf.mxu0
        %v957 = vadd.f32 %v930, %v956
        %v958 = vpop.f32.mrf.mxu0
        %v959 = vadd.f32 %v930, %v958
        %960 = vdwg.mxu0
        %v961 = vxor.u32 %v957, 2147483648
        %v962 = vxor.u32 %v959, 2147483648
        %v963 = vmul.f32 %v961, 1.442695
        %v964 = vpow.pop %v963
        %v965 = vmul.f32 %v962, 1.442695
        %v966 = vpow.pop %v965
        %v967 = vadd.f32 %v964, 1.0
        %v968 = vadd.f32 %v966, 1.0
        %v969 = vrcp.pop %v967
        %v970 = vmul.f32 %v967, %v969
        %v971 = vsub.f32 1.0, %v970
        %v972 = vmul.f32 %v969, %v971
        %v973 = vadd.f32 %v969, %v972
        %vm974 = vweird.f32 %v967
        %vm975 = vweird.f32 %v969
        %vm976 = vmor %vm974, %vm975
        %v977 = vsel %vm976, %v969, %v973
        %v978 = vand.u32 2147483647, %v967
        %vm979 = vcmp.eq.f32.partialorder %v978, 8.507059e+37
        %v980 = vand.u32 %v967, 2147483648
        %v981 = vor.u32 1.1754944e-38, %v980
        %v982 = vsel %vm979, %v981, %v977
        %v983 = vmul.f32 1.0, %v982
        %v984 = vrcp.pop %v968
        %v985 = vmul.f32 %v968, %v984
        %v986 = vsub.f32 1.0, %v985
        %v987 = vmul.f32 %v984, %v986
        %v988 = vadd.f32 %v984, %v987
        %vm989 = vweird.f32 %v968
        %vm990 = vweird.f32 %v984
        %vm991 = vmor %vm989, %vm990
        %v992 = vsel %vm991, %v984, %v988
        %v993 = vand.u32 2147483647, %v968
        %vm994 = vcmp.eq.f32.partialorder %v993, 8.507059e+37
        %v995 = vand.u32 %v968, 2147483648
        %v996 = vor.u32 1.1754944e-38, %v995
        %v997 = vsel %vm994, %v996, %v992
        %v998 = vmul.f32 1.0, %v997
        %v999 = vmul.f32 %v919, %v983
        %v1000 = vmul.f32 %v920, %v998
        %v1001 = vmul.f32 %v921, %v983
        %v1002 = vmul.f32 %v922, %v998
        %v1003 = vmul.f32 %v923, %v983
        %v1004 = vmul.f32 %v924, %v998
        %1007 = vrot.lane.b32.xlu0 %v999, 32
        %v1008 = vpop.permute.xlu0 %1007
        %1009 = vrot.lane.b32.xlu0 %v1000, 32
        %v1010 = vpop.permute.xlu0 %1009
        %1015 = vrot.lane.b32.xlu0 %v1001, 33
        %v1016 = vpop.permute.xlu0 %1015
        %1017 = vrot.lane.b32.xlu0 %v1002, 33
        %v1018 = vpop.permute.xlu0 %1017
        %1023 = vrot.lane.b32.xlu0 %v1003, 34
        %v1024 = vpop.permute.xlu0 %1023
        %1025 = vrot.lane.b32.xlu0 %v1004, 34
        %v1026 = vpop.permute.xlu0 %1025
        %v1029 = vsel %vm943, %v914, %v1008
        %v1030 = vsel %vm943, %v915, %v1010
        %vm1031 = vcmask 269312
        %v1032 = vsel %vm1031, %v1029, %v1016
        %v1033 = vsel %vm1031, %v1030, %v1018
        %vm1034 = vcmask 277504
        %v1035 = vsel %vm1034, %v1032, %v1024
        %v1036 = vsel %vm1034, %v1033, %v1026
        %vm1037 = vcmask 285696
        %1038 = vst.msk [vmem:[#allocation3] sm:$0xff] %vm1037, %v1035
        %1039 = vst.msk [vmem:[#allocation3 + $0x8] sm:$0xff] %vm1037, %v1036
        %v1040 = vld [vmem:[%s1] sm:$0xff]
        %v1041 = vld [vmem:[%s2] sm:$0xff]
        %v1042 = vld [vmem:[%s2 + $0x8] sm:$0xff]
        %v1043 = vld [vmem:[%s2 + $0x10] sm:$0xff]
        %v1044 = vld [vmem:[%s9 + $0x2] sm:$0x1]
        %v1045 = vld [vmem:[%s9 + $0x3] sm:$0x1]
        %v1046 = vmul.f32 %v1041, %v1041
        %v1047 = vmul.f32 %v1042, %v1042
        %v1048 = vadd.f32 %v1046, %v1047
        %v1049 = vmul.f32 %v1043, %v1043
        %v1050 = vadd.f32 %v1048, %v1049
        %v1051 = vmax.f32 %v1050, 1e-08
        %vm1052 = vcmask 31744
        %v1053 = vsel %vm1052, %v1051, 0.0
        %1054 = vadd.xlane.f32.xlu0 %v1053
        %v1055 = vpop.xlane.xlu0 %1054
        %v1056 = vrcp.pop 4.0
        %v1057 = vmul.f32 4.0, %v1056
        %v1058 = vsub.f32 1.0, %v1057
        %v1059 = vmul.f32 %v1056, %v1058
        %v1060 = vadd.f32 %v1056, %v1059
        %vm1061 = vweird.f32 %v1056
        %v1062 = vsel %vm1061, %v1056, %v1060
        %v1063 = vmul.f32 %v1055, %v1062
        %v1064 = vrsqrt.pop %v1063
        %v1065 = vmul.f32 %v1064, %v1063
        %v1066 = vmul.f32 %v1065, %v1064
        %v1067 = vmul.f32 0.5, %v1066
        %v1068 = vsub.f32 1.5, %v1067
        %v1069 = vmul.f32 %v1064, %v1068
        %vm1070 = vweird.f32 %v1063
        %vm1071 = vweird.f32 %v1064
        %vm1072 = vmor %vm1070, %vm1071
        %v1073 = vsel %vm1072, %v1064, %v1069
        %1075 = vset.pattern.permute.xlu0 0
        %1076 = vperm.xlu0 %1075, %v1073
        %v1077 = vpop.permute.xlu0 %1076
        %v1079 = vmul.f32 %v1041, %v1077
        %v1080 = vmul.f32 %v1042, %v1077
        %v1081 = vmul.f32 %v1043, %v1077
        %vm1082 = vcmask 130048
        %v1083 = vsel %vm1082, %v1040, 0.0
        %1084 = vadd.xlane.f32.xlu0 %v1083
        %v1085 = vpop.xlane.xlu0 %1084
        %v1086 = vrcp.pop 16.0
        %v1087 = vmul.f32 16.0, %v1086
        %v1088 = vsub.f32 1.0, %v1087
        %v1089 = vmul.f32 %v1086, %v1088
        %v1090 = vadd.f32 %v1086, %v1089
        %vm1091 = vweird.f32 %v1086
        %v1092 = vsel %vm1091, %v1086, %v1090
        %v1093 = vmul.f32 %v1085, %v1092
        %v1094 = vsub.f32 %v1040, %v1093
        %v1095 = vmul.f32 %v1094, %v1094
        %v1096 = vsel %vm1082, %v1095, 0.0
        %1097 = vadd.xlane.f32.xlu0 %v1096
        %v1098 = vpop.xlane.xlu0 %1097
        %v1099 = vmul.f32 %v1098, %v1092
        %v1100 = vadd.f32 %v1099, 1e-05
        %v1101 = vrsqrt.pop %v1100
        %v1102 = vmul.f32 %v1101, %v1100
        %v1103 = vmul.f32 %v1102, %v1101
        %v1104 = vmul.f32 0.5, %v1103
        %v1105 = vsub.f32 1.5, %v1104
        %v1106 = vmul.f32 %v1101, %v1105
        %vm1107 = vweird.f32 %v1100
        %vm1108 = vweird.f32 %v1101
        %vm1109 = vmor %vm1107, %vm1108
        %v1110 = vsel %vm1109, %v1101, %v1106
        %v1111 = vmul.f32 %v1094, %v1110
        %v1112 = vperm.slane %v1044, 0
        %v1113 = vmul.f32 %v1111, %v1112
        %v1114 = vperm.slane %v1045, 0
        %v1115 = vadd.f32 %v1113, %v1114
        %v1116 = vld [vmem:[%s9 + $0x8] sm:$0x1]
        %v1117 = vld [vmem:[%s9 + $0x9] sm:$0x1]
        %v1118 = vld [vmem:[%s7] sm:$0x3]
        %v1119 = vpack.c.bf16 %v1080, %v1079
        %v1120 = vpack.c.bf16 %v1081, %v1081
        %v1122 = vsel %vm1052, %v1119, 0
        %v1125 = vsel %vm1052, %v1120, 0
        %vm1127 = vcmask 1041408
        %v1129 = vsel %vm1127, %v1118, 0
        %1131 = vmatpush.bf16.msra.mxu0 0
        %1132 = vmatpush.bf16.msra.mxu0 0
        %1133 = vmatpush.bf16.msra.mxu0 0
        %1134 = vmatpush.bf16.msra.mxu0 0
        %1135 = vmatpush.bf16.msra.mxu0 0
        %1136 = vmatpush.bf16.msra.mxu0 0
        %1137 = vmatpush.bf16.msra.mxu0 0
        %1138 = vmatpush.bf16.msra.mxu0 %v1129
        %1139 = vmatmul.bf16.gmra.mxu0 %v1122
        %v1140 = vpop.f32.mrf.mxu0
        %v1141 = vadd.f32 0.0, %v1140
        %v1142 = vpop.f32.mrf.mxu0
        %v1143 = vadd.f32 0.0, %v1142
        %1144 = vmatmul.bf16.gmra.mxu0 %v1125
        %v1145 = vpop.f32.mrf.mxu0
        %v1146 = vadd.f32 0.0, %v1145
        %v1147 = vpop.f32.mrf.mxu0
        %1148 = vdwg.mxu0
        %v1149 = vmul.f32 %v1141, %v1141
        %v1150 = vmul.f32 %v1143, %v1143
        %v1151 = vadd.f32 %v1149, %v1150
        %v1152 = vmul.f32 %v1146, %v1146
        %v1153 = vadd.f32 %v1151, %v1152
        %v1154 = vmax.f32 %v1153, 1e-08
        %v1155 = vrsqrt.pop %v1154
        %v1156 = vmul.f32 %v1155, %v1154
        %v1157 = vmul.f32 %v1156, %v1155
        %v1158 = vmul.f32 0.5, %v1157
        %v1159 = vsub.f32 1.5, %v1158
        %v1160 = vmul.f32 %v1155, %v1159
        %v1161 = vmul.f32 %v1154, %v1160
        %vm1162 = vcmp.eq.f32.partialorder %v1154, inf
        %v1163 = vsel %vm1162, %v1154, %v1161
        %vm1164 = vcmp.eq.f32.partialorder %v1154, 0.0
        %v1165 = vand.u32 %v1154, 2147483648
        %v1166 = vsel %vm1164, %v1165, %v1163
        %v1167 = vld [vmem:[%s7 + $0x10] sm:$0xf]
        %v1168 = vld [vmem:[%s7 + $0x14] sm:$0xf]
        %v1169 = vpack.c.bf16 %v1115, %v1115
        %v1172 = vunpack.c.l.b16 %v1167
        %v1173 = vunpack.c.l.b16 %v1168
        %v1174 = vpack.c.b16 %v1173, %v1172
        %v1177 = vsel %vm1082, %v1169, 0
        %1179 = vmatpush.bf16.msra.mxu0 0
        %1180 = vmatpush.bf16.msra.mxu0 0
        %1181 = vmatpush.bf16.msra.mxu0 0
        %1182 = vmatpush.bf16.msra.mxu0 0
        %1183 = vmatpush.bf16.msra.mxu0 0
        %1184 = vmatpush.bf16.msra.mxu0 0
        %1185 = vmatpush.bf16.msra.mxu0 0
        %1186 = vmatpush.bf16.msra.mxu0 %v1174
        %1187 = vmatmul.bf16.gmra.mxu0 %v1177
        %v1188 = vpop.f32.mrf.mxu0
        %v1189 = vadd.f32 0.0, %v1188
        %v1190 = vpop.f32.mrf.mxu0
        %1191 = vdwg.mxu0
        %v1192 = vperm.slane %v1116, 0
        %v1193 = vadd.f32 %v1192, %v1189
        %v1194 = vld [vmem:[%s7 + $0x18] sm:$0xf]
        %v1195 = vpack.c.bf16 %v1166, %v1166
        %v1197 = vsel %vm645, %v1195, 0
        %vm1199 = vcmask 1043456
        %v1201 = vsel %vm1199, %v1194, 0
        %1203 = vmatpush.bf16.msra.mxu0 0
        %1204 = vmatpush.bf16.msra.mxu0 0
        %1205 = vmatpush.bf16.msra.mxu0 0
        %1206 = vmatpush.bf16.msra.mxu0 0
        %1207 = vmatpush.bf16.msra.mxu0 0
        %1208 = vmatpush.bf16.msra.mxu0 0
        %1209 = vmatpush.bf16.msra.mxu0 0
        %1210 = vmatpush.bf16.msra.mxu0 %v1201
        %1211 = vmatmul.bf16.gmra.mxu0 %v1197
        %v1212 = vpop.f32.mrf.mxu0
        %v1213 = vadd.f32 0.0, %v1212
        %v1214 = vpop.f32.mrf.mxu0
        %1215 = vdwg.mxu0
        %v1216 = vadd.f32 %v1193, %v1213
        %v1217 = vld [vmem:[%s7 + $0x8] sm:$0xf]
        %v1218 = vpack.c.bf16 %v1143, %v1141
        %v1219 = vpack.c.bf16 %v1146, %v1146
        %v1221 = vsel %vm645, %v1218, 0
        %v1224 = vsel %vm645, %v1219, 0
        %v1227 = vsel %vm1199, %v1217, 0
        %1229 = vmatpush.bf16.msra.mxu0 0
        %1230 = vmatpush.bf16.msra.mxu0 0
        %1231 = vmatpush.bf16.msra.mxu0 0
        %1232 = vmatpush.bf16.msra.mxu0 0
        %1233 = vmatpush.bf16.msra.mxu0 0
        %1234 = vmatpush.bf16.msra.mxu0 0
        %1235 = vmatpush.bf16.msra.mxu0 0
        %1236 = vmatpush.bf16.msra.mxu0 %v1227
        %1237 = vmatmul.bf16.gmra.mxu0 %v1221
        %v1238 = vpop.f32.mrf.mxu0
        %v1239 = vadd.f32 0.0, %v1238
        %v1240 = vpop.f32.mrf.mxu0
        %v1241 = vadd.f32 0.0, %v1240
        %1242 = vmatmul.bf16.gmra.mxu0 %v1224
        %v1243 = vpop.f32.mrf.mxu0
        %v1244 = vadd.f32 0.0, %v1243
        %v1245 = vpop.f32.mrf.mxu0
        %1246 = vdwg.mxu0
        %v1247 = vld [vmem:[%s7 + $0x20] sm:$0xf]
        %v1248 = vld [vmem:[%s7 + $0x24] sm:$0xf]
        %v1249 = vld [vmem:[%s7 + $0x28] sm:$0xf]
        %v1250 = vld [vmem:[%s7 + $0x2c] sm:$0xf]
        %v1251 = vpack.c.bf16 %v1216, %v1216
        %v1252 = vperm.slane %v1117, 0
        %v1257 = vunpack.c.l.b16 %v1247
        %v1258 = vunpack.c.l.b16 %v1248
        %v1259 = vunpack.c.l.b16 %v1249
        %v1260 = vunpack.c.l.b16 %v1250
        %v1261 = vpack.c.b16 %v1258, %v1257
        %v1262 = vpack.c.b16 %v1260, %v1259
        %v1266 = vsel %vm943, %v1251, 0
        %1268 = vmatpush.bf16.msra.mxu0 0
        %1269 = vmatpush.bf16.msra.mxu0 0
        %1270 = vmatpush.bf16.msra.mxu0 0
        %1271 = vmatpush.bf16.msra.mxu0 0
        %1272 = vmatpush.bf16.msra.mxu0 0
        %1273 = vmatpush.bf16.msra.mxu0 0
        %1274 = vmatpush.bf16.msra.mxu0 %v1262
        %1275 = vmatpush.bf16.msra.mxu0 %v1261
        %1276 = vmatmul.bf16.gmra.mxu0 %v1266
        %v1277 = vpop.f32.mrf.mxu0
        %v1278 = vadd.f32 %v1252, %v1277
        %v1279 = vpop.f32.mrf.mxu0
        %1280 = vdwg.mxu0
        %v1281 = vxor.u32 %v1278, 2147483648
        %v1282 = vmul.f32 %v1281, 1.442695
        %v1283 = vpow.pop %v1282
        %v1284 = vadd.f32 %v1283, 1.0
        %v1285 = vrcp.pop %v1284
        %v1286 = vmul.f32 %v1284, %v1285
        %v1287 = vsub.f32 1.0, %v1286
        %v1288 = vmul.f32 %v1285, %v1287
        %v1289 = vadd.f32 %v1285, %v1288
        %vm1290 = vweird.f32 %v1284
        %vm1291 = vweird.f32 %v1285
        %vm1292 = vmor %vm1290, %vm1291
        %v1293 = vsel %vm1292, %v1285, %v1289
        %v1294 = vand.u32 2147483647, %v1284
        %vm1295 = vcmp.eq.f32.partialorder %v1294, 8.507059e+37
        %v1296 = vand.u32 %v1284, 2147483648
        %v1297 = vor.u32 1.1754944e-38, %v1296
        %v1298 = vsel %vm1295, %v1297, %v1293
        %v1299 = vmul.f32 1.0, %v1298
        %v1300 = vmul.f32 %v1239, %v1299
        %v1301 = vmul.f32 %v1241, %v1299
        %v1302 = vmul.f32 %v1244, %v1299
        %1304 = vrot.lane.b32.xlu0 %v1300, 32
        %v1305 = vpop.permute.xlu0 %1304
        %1308 = vrot.lane.b32.xlu0 %v1301, 40
        %v1309 = vpop.permute.xlu0 %1308
        %1312 = vrot.lane.b32.xlu0 %v1302, 48
        %v1313 = vpop.permute.xlu0 %1312
        %v1315 = vsel %vm943, %v1216, %v1305
        %vm1316 = vcmask 326656
        %v1317 = vsel %vm1316, %v1315, %v1309
        %vm1318 = vcmask 392192
        %v1319 = vsel %vm1318, %v1317, %v1313
        %vm1320 = vcmask 457728
        %1321 = vst.msk [vmem:[#allocation2] sm:$0xff] %vm1320, %v1319
      $region88: #{_lambda_.1} parent=83 // pred_fallthru
        _
      %v1322 = vld [vmem:[#allocation2] sm:$0xff]
      %1324 = vrot.lane.b32.xlu0 %v1322, 120
      %v1325 = vpop.permute.xlu0 %1324
      %1327 = vrot.lane.b32.xlu0 %v1322, 112
      %v1328 = vpop.permute.xlu0 %1327
      %v1330 = vld [vmem:[#allocation3] sm:$0xff]
      %v1331 = vld [vmem:[#allocation3 + $0x8] sm:$0xff]
      %1334 = vrot.lane.b32.xlu0 %v1330, 127
      %v1335 = vpop.permute.xlu0 %1334
      %1336 = vrot.lane.b32.xlu0 %v1331, 127
      %v1337 = vpop.permute.xlu0 %1336
      %1338 = vrot.lane.b32.xlu0 %v1330, 126
      %v1339 = vpop.permute.xlu0 %1338
      %1340 = vrot.lane.b32.xlu0 %v1331, 126
      %v1341 = vpop.permute.xlu0 %1340
      %v1342 = vld [vmem:[%s3] sm:$0xff]
      %v1343 = vld [vmem:[%s3 + $0x8] sm:$0xff]
      %v1344 = vld [vmem:[%s4] sm:$0xff]
      %v1345 = vld [vmem:[%s4 + $0x8] sm:$0xff]
      %v1346 = vld [vmem:[%s5] sm:$0x1]
      %v1347 = vlaneseq
      %v1348 = vand.u32 %v1347, 127
      %1349 = vset.pattern.permute.xlu0 0
      %1350 = vperm.xlu0 %1349, %v1342
      %v1351 = vpop.permute.xlu0 %1350
      %1352 = vset.pattern.permute.xlu0 0
      %1353 = vperm.xlu0 %1352, %v1343
      %v1354 = vpop.permute.xlu0 %1353
      %vm1355 = vcmp.eq.s32.totalorder %v1348, %v1351
      %vm1356 = vcmp.eq.s32.totalorder %v1348, %v1354
      %v1357 = vsel %vm1355, 1, 0
      %v1358 = vsel %vm1356, 1, 0
      %v1359 = vcvt.s32.f32 %v1357
      %v1360 = vcvt.s32.f32 %v1358
      %v1361 = vpack.c.bf16 %v1360, %v1359
      %1362 = vset.pattern.permute.xlu0 0
      %1363 = vperm.xlu0 %1362, %v1344
      %v1364 = vpop.permute.xlu0 %1363
      %1365 = vset.pattern.permute.xlu0 0
      %1366 = vperm.xlu0 %1365, %v1345
      %v1367 = vpop.permute.xlu0 %1366
      %vm1368 = vcmp.eq.s32.totalorder %v1348, %v1364
      %vm1369 = vcmp.eq.s32.totalorder %v1348, %v1367
      %v1370 = vsel %vm1368, 1, 0
      %v1371 = vsel %vm1369, 1, 0
      %v1372 = vcvt.s32.f32 %v1370
      %v1373 = vcvt.s32.f32 %v1371
      %v1374 = vpack.c.bf16 %v1373, %v1372
      %v1375 = vlaneseq
      %v1376 = vshrl.u32 %v1375, 7
      %v1377 = vperm.slane %v1346, 0
      %vm1378 = vcmp.eq.s32.totalorder %v1376, %v1377
      %v1379 = vsel %vm1378, 1, 0
      %v1380 = vcvt.s32.f32 %v1379
      %v1381 = vpack.c.bf16 %v1380, %v1380
      %v1382 = vpack.c.bf16 %v1322, %v1322
      %vm1383 = vcmask 64512
      %v1385 = vsel %vm1383, %v1361, 0
      %vm1387 = vcmask 1043456
      %v1389 = vsel %vm1387, %v1382, 0
      %1391 = vmatpush.bf16.msra.mxu0 0
      %1392 = vmatpush.bf16.msra.mxu0 0
      %1393 = vmatpush.bf16.msra.mxu0 0
      %1394 = vmatpush.bf16.msra.mxu0 0
      %1395 = vmatpush.bf16.msra.mxu0 0
      %1396 = vmatpush.bf16.msra.mxu0 0
      %1397 = vmatpush.bf16.msra.mxu0 0
      %1398 = vmatpush.bf16.msra.mxu0 %v1389
      %1399 = vmatmul.bf16.gmra.mxu0 %v1385
      %v1400 = vpop.f32.mrf.mxu0
      %v1401 = vadd.f32 0.0, %v1400
      %v1402 = vpop.f32.mrf.mxu0
      %v1403 = vadd.f32 0.0, %v1402
      %1404 = vdwg.mxu0
      %v1406 = vsel %vm1383, %v1374, 0
      %1408 = vmatpush.bf16.msra.mxu0 0
      %1409 = vmatpush.bf16.msra.mxu0 0
      %1410 = vmatpush.bf16.msra.mxu0 0
      %1411 = vmatpush.bf16.msra.mxu0 0
      %1412 = vmatpush.bf16.msra.mxu0 0
      %1413 = vmatpush.bf16.msra.mxu0 0
      %1414 = vmatpush.bf16.msra.mxu0 0
      %1415 = vmatpush.bf16.msra.mxu0 %v1389
      %1416 = vmatmul.bf16.gmra.mxu0 %v1406
      %v1417 = vpop.f32.mrf.mxu0
      %v1418 = vadd.f32 0.0, %v1417
      %v1419 = vpop.f32.mrf.mxu0
      %v1420 = vadd.f32 0.0, %v1419
      %1421 = vdwg.mxu0
      %1424 = vrot.lane.b32.xlu0 %v1401, 120
      %v1425 = vpop.permute.xlu0 %1424
      %1426 = vrot.lane.b32.xlu0 %v1403, 120
      %v1427 = vpop.permute.xlu0 %1426
      %1430 = vrot.lane.b32.xlu0 %v1401, 112
      %v1431 = vpop.permute.xlu0 %1430
      %1432 = vrot.lane.b32.xlu0 %v1403, 112
      %v1433 = vpop.permute.xlu0 %1432
      %1438 = vrot.lane.b32.xlu0 %v1418, 120
      %v1439 = vpop.permute.xlu0 %1438
      %1440 = vrot.lane.b32.xlu0 %v1420, 120
      %v1441 = vpop.permute.xlu0 %1440
      %1444 = vrot.lane.b32.xlu0 %v1418, 112
      %v1445 = vpop.permute.xlu0 %1444
      %1446 = vrot.lane.b32.xlu0 %v1420, 112
      %v1447 = vpop.permute.xlu0 %1446
      %v1450 = vld [vmem:[%s606 + $0x4] sm:$0x1]
      %v1451 = vld [vmem:[%s606 + $0x5] sm:$0x1]
      %v1452 = vld [vmem:[%s581] sm:$0xf]
      %v1453 = vpack.c.bf16 %v1403, %v1401
      %v1454 = vpack.c.bf16 %v1427, %v1425
      %v1455 = vpack.c.bf16 %v1433, %v1431
      %v1456 = vld [vmem:[%s581 + $0x8] sm:$0x1]
      %v1457 = vunpack.c.l.bf16 %v1456
      %1458 = vset.pattern.permute.xlu0 32
      %1459 = vperm.xlu0 %1458, %v1330
      %v1460 = vpop.permute.xlu0 %1459
      %1462 = vset.pattern.permute.xlu0 32
      %1463 = vperm.xlu0 %1462, %v1331
      %v1464 = vpop.permute.xlu0 %1463
      %1466 = vset.pattern.permute.xlu0 32
      %1467 = vperm.xlu0 %1466, %v1335
      %v1468 = vpop.permute.xlu0 %1467
      %1470 = vset.pattern.permute.xlu0 32
      %1471 = vperm.xlu0 %1470, %v1337
      %v1472 = vpop.permute.xlu0 %1471
      %1474 = vset.pattern.permute.xlu0 32
      %1475 = vperm.xlu0 %1474, %v1339
      %v1476 = vpop.permute.xlu0 %1475
      %1478 = vset.pattern.permute.xlu0 32
      %1479 = vperm.xlu0 %1478, %v1341
      %v1480 = vpop.permute.xlu0 %1479
      %v1482 = vperm.slane %v1457, 0
      %v1483 = vmul.f32 %v1460, %v1482
      %v1484 = vmul.f32 %v1464, %v1482
      %v1485 = vmul.f32 %v1468, %v1482
      %v1486 = vmul.f32 %v1472, %v1482
      %v1487 = vmul.f32 %v1476, %v1482
      %v1488 = vmul.f32 %v1480, %v1482
      %1492 = vrot.lane.b32.xlu0 %v1453, 96
      %v1493 = vpop.permute.xlu0 %1492
      %1494 = vrot.lane.b32.xlu0 %v1454, 96
      %v1495 = vpop.permute.xlu0 %1494
      %1496 = vrot.lane.b32.xlu0 %v1455, 96
      %v1497 = vpop.permute.xlu0 %1496
      %v1499 = vsel %vm1383, %v1493, 0
      %v1502 = vsel %vm1383, %v1495, 0
      %v1505 = vsel %vm1383, %v1497, 0
      %v1508 = vsel %vm1387, %v1452, 0
      %1510 = vmatpush.bf16.msra.mxu0 0
      %1511 = vmatpush.bf16.msra.mxu0 0
      %1512 = vmatpush.bf16.msra.mxu0 0
      %1513 = vmatpush.bf16.msra.mxu0 0
      %1514 = vmatpush.bf16.msra.mxu0 0
      %1515 = vmatpush.bf16.msra.mxu0 0
      %1516 = vmatpush.bf16.msra.mxu0 0
      %1517 = vmatpush.bf16.msra.mxu0 %v1508
      %1518 = vmatmul.bf16.gmra.mxu0 %v1499
      %v1519 = vpop.f32.mrf.mxu0
      %v1520 = vadd.f32 %v1483, %v1519
      %v1521 = vpop.f32.mrf.mxu0
      %v1522 = vadd.f32 %v1484, %v1521
      %1523 = vmatmul.bf16.gmra.mxu0 %v1502
      %v1524 = vpop.f32.mrf.mxu0
      %v1525 = vadd.f32 %v1485, %v1524
      %v1526 = vpop.f32.mrf.mxu0
      %v1527 = vadd.f32 %v1486, %v1526
      %1528 = vmatmul.bf16.gmra.mxu0 %v1505
      %v1529 = vpop.f32.mrf.mxu0
      %v1530 = vadd.f32 %v1487, %v1529
      %v1531 = vpop.f32.mrf.mxu0
      %v1532 = vadd.f32 %v1488, %v1531
      %1533 = vdwg.mxu0
      %v1534 = vld [vmem:[%s581 + $0x10] sm:$0xf]
      %v1535 = vpack.c.bf16 %v1420, %v1418
      %v1536 = vpack.c.bf16 %v1441, %v1439
      %v1537 = vpack.c.bf16 %v1447, %v1445
      %1541 = vrot.lane.b32.xlu0 %v1535, 96
      %v1542 = vpop.permute.xlu0 %1541
      %1543 = vrot.lane.b32.xlu0 %v1536, 96
      %v1544 = vpop.permute.xlu0 %1543
      %1545 = vrot.lane.b32.xlu0 %v1537, 96
      %v1546 = vpop.permute.xlu0 %1545
      %v1548 = vsel %vm1383, %v1542, 0
      %v1551 = vsel %vm1383, %v1544, 0
      %v1554 = vsel %vm1383, %v1546, 0
      %v1557 = vsel %vm1387, %v1534, 0
      %1559 = vmatpush.bf16.msra.mxu0 0
      %1560 = vmatpush.bf16.msra.mxu0 0
      %1561 = vmatpush.bf16.msra.mxu0 0
      %1562 = vmatpush.bf16.msra.mxu0 0
      %1563 = vmatpush.bf16.msra.mxu0 0
      %1564 = vmatpush.bf16.msra.mxu0 0
      %1565 = vmatpush.bf16.msra.mxu0 0
      %1566 = vmatpush.bf16.msra.mxu0 %v1557
      %1567 = vmatmul.bf16.gmra.mxu0 %v1548
      %v1568 = vpop.f32.mrf.mxu0
      %v1569 = vadd.f32 0.0, %v1568
      %v1570 = vpop.f32.mrf.mxu0
      %v1571 = vadd.f32 0.0, %v1570
      %1572 = vmatmul.bf16.gmra.mxu0 %v1551
      %v1573 = vpop.f32.mrf.mxu0
      %v1574 = vadd.f32 0.0, %v1573
      %v1575 = vpop.f32.mrf.mxu0
      %v1576 = vadd.f32 0.0, %v1575
      %1577 = vmatmul.bf16.gmra.mxu0 %v1554
      %v1578 = vpop.f32.mrf.mxu0
      %v1579 = vadd.f32 0.0, %v1578
      %v1580 = vpop.f32.mrf.mxu0
      %v1581 = vadd.f32 0.0, %v1580
      %1582 = vdwg.mxu0
      %v1583 = vadd.f32 %v1520, %v1569
      %v1584 = vadd.f32 %v1522, %v1571
      %v1585 = vadd.f32 %v1525, %v1574
      %v1586 = vadd.f32 %v1527, %v1576
      %v1587 = vadd.f32 %v1530, %v1579
      %v1588 = vadd.f32 %v1532, %v1581
      %v1589 = vmul.f32 %v1583, %v1583
      %v1590 = vmul.f32 %v1584, %v1584
      %v1591 = vmul.f32 %v1585, %v1585
      %v1592 = vmul.f32 %v1586, %v1586
      %v1593 = vadd.f32 %v1589, %v1591
      %v1594 = vadd.f32 %v1590, %v1592
      %v1595 = vmul.f32 %v1587, %v1587
      %v1596 = vmul.f32 %v1588, %v1588
      %v1597 = vadd.f32 %v1593, %v1595
      %v1598 = vadd.f32 %v1594, %v1596
      %v1599 = vmax.f32 %v1597, 1e-08
      %v1600 = vmax.f32 %v1598, 1e-08
      %v1601 = vrsqrt.pop %v1599
      %v1602 = vmul.f32 %v1601, %v1599
      %v1603 = vmul.f32 %v1602, %v1601
      %v1604 = vmul.f32 0.5, %v1603
      %v1605 = vsub.f32 1.5, %v1604
      %v1606 = vmul.f32 %v1601, %v1605
      %v1607 = vmul.f32 %v1599, %v1606
      %vm1608 = vcmp.eq.f32.partialorder %v1599, inf
      %v1609 = vsel %vm1608, %v1599, %v1607
      %vm1610 = vcmp.eq.f32.partialorder %v1599, 0.0
      %v1611 = vand.u32 %v1599, 2147483648
      %v1612 = vsel %vm1610, %v1611, %v1609
      %v1613 = vrsqrt.pop %v1600
      %v1614 = vmul.f32 %v1613, %v1600
      %v1615 = vmul.f32 %v1614, %v1613
      %v1616 = vmul.f32 0.5, %v1615
      %v1617 = vsub.f32 1.5, %v1616
      %v1618 = vmul.f32 %v1613, %v1617
      %v1619 = vmul.f32 %v1600, %v1618
      %vm1620 = vcmp.eq.f32.partialorder %v1600, inf
      %v1621 = vsel %vm1620, %v1600, %v1619
      %vm1622 = vcmp.eq.f32.partialorder %v1600, 0.0
      %v1623 = vand.u32 %v1600, 2147483648
      %v1624 = vsel %vm1622, %v1623, %v1621
      %v1625 = vld [vmem:[%s581 + $0x28] sm:$0xf]
      %v1626 = vld [vmem:[%s581 + $0x2c] sm:$0xf]
      %v1627 = vld [vmem:[%s581 + $0x30] sm:$0xf]
      %v1628 = vld [vmem:[%s581 + $0x34] sm:$0xf]
      %v1633 = vunpack.c.l.b16 %v1625
      %v1634 = vunpack.c.l.b16 %v1626
      %v1635 = vunpack.c.l.b16 %v1627
      %v1636 = vunpack.c.l.b16 %v1628
      %v1637 = vpack.c.b16 %v1634, %v1633
      %v1638 = vpack.c.b16 %v1636, %v1635
      %vm1641 = vcmask 261120
      %v1643 = vsel %vm1641, %v1453, 0
      %1645 = vmatpush.bf16.msra.mxu0 0
      %1646 = vmatpush.bf16.msra.mxu0 0
      %1647 = vmatpush.bf16.msra.mxu0 0
      %1648 = vmatpush.bf16.msra.mxu0 0
      %1649 = vmatpush.bf16.msra.mxu0 0
      %1650 = vmatpush.bf16.msra.mxu0 0
      %1651 = vmatpush.bf16.msra.mxu0 %v1638
      %1652 = vmatpush.bf16.msra.mxu0 %v1637
      %1653 = vmatmul.bf16.gmra.mxu0 %v1643
      %v1654 = vpop.f32.mrf.mxu0
      %v1655 = vadd.f32 0.0, %v1654
      %v1656 = vpop.f32.mrf.mxu0
      %v1657 = vadd.f32 0.0, %v1656
      %1658 = vdwg.mxu0
      %v1659 = vperm.slane %v1450, 0
      %v1660 = vadd.f32 %v1659, %v1655
      %v1661 = vadd.f32 %v1659, %v1657
      %v1662 = vld [vmem:[%s581 + $0x38] sm:$0xf]
      %v1663 = vld [vmem:[%s581 + $0x3c] sm:$0xf]
      %v1664 = vld [vmem:[%s581 + $0x40] sm:$0xf]
      %v1665 = vld [vmem:[%s581 + $0x44] sm:$0xf]
      %v1666 = vpack.c.bf16 %v1331, %v1330
      %v1671 = vunpack.c.l.b16 %v1662
      %v1672 = vunpack.c.l.b16 %v1663
      %v1673 = vunpack.c.l.b16 %v1664
      %v1674 = vunpack.c.l.b16 %v1665
      %v1675 = vpack.c.b16 %v1672, %v1671
      %v1676 = vpack.c.b16 %v1674, %v1673
      %v1680 = vsel %vm1641, %v1666, 0
      %1682 = vmatpush.bf16.msra.mxu0 0
      %1683 = vmatpush.bf16.msra.mxu0 0
      %1684 = vmatpush.bf16.msra.mxu0 0
      %1685 = vmatpush.bf16.msra.mxu0 0
      %1686 = vmatpush.bf16.msra.mxu0 0
      %1687 = vmatpush.bf16.msra.mxu0 0
      %1688 = vmatpush.bf16.msra.mxu0 %v1676
      %1689 = vmatpush.bf16.msra.mxu0 %v1675
      %1690 = vmatmul.bf16.gmra.mxu0 %v1680
      %v1691 = vpop.f32.mrf.mxu0
      %v1692 = vadd.f32 0.0, %v1691
      %v1693 = vpop.f32.mrf.mxu0
      %v1694 = vadd.f32 0.0, %v1693
      %1695 = vdwg.mxu0
      %v1696 = vadd.f32 %v1660, %v1692
      %v1697 = vadd.f32 %v1661, %v1694
      %v1698 = vld [vmem:[%s581 + $0x48] sm:$0xf]
      %v1699 = vld [vmem:[%s581 + $0x4c] sm:$0xf]
      %v1700 = vld [vmem:[%s581 + $0x50] sm:$0xf]
      %v1701 = vld [vmem:[%s581 + $0x54] sm:$0xf]
      %v1706 = vunpack.c.l.b16 %v1698
      %v1707 = vunpack.c.l.b16 %v1699
      %v1708 = vunpack.c.l.b16 %v1700
      %v1709 = vunpack.c.l.b16 %v1701
      %v1710 = vpack.c.b16 %v1707, %v1706
      %v1711 = vpack.c.b16 %v1709, %v1708
      %v1715 = vsel %vm1641, %v1535, 0
      %1717 = vmatpush.bf16.msra.mxu0 0
      %1718 = vmatpush.bf16.msra.mxu0 0
      %1719 = vmatpush.bf16.msra.mxu0 0
      %1720 = vmatpush.bf16.msra.mxu0 0
      %1721 = vmatpush.bf16.msra.mxu0 0
      %1722 = vmatpush.bf16.msra.mxu0 0
      %1723 = vmatpush.bf16.msra.mxu0 %v1711
      %1724 = vmatpush.bf16.msra.mxu0 %v1710
      %1725 = vmatmul.bf16.gmra.mxu0 %v1715
      %v1726 = vpop.f32.mrf.mxu0
      %v1727 = vadd.f32 0.0, %v1726
      %v1728 = vpop.f32.mrf.mxu0
      %v1729 = vadd.f32 0.0, %v1728
      %1730 = vdwg.mxu0
      %v1731 = vadd.f32 %v1696, %v1727
      %v1732 = vadd.f32 %v1697, %v1729
      %v1733 = vld [vmem:[%s581 + $0x58] sm:$0xf]
      %v1734 = vld [vmem:[%s581 + $0x5c] sm:$0xf]
      %v1735 = vld [vmem:[%s581 + $0x60] sm:$0x1]
      %v1736 = vpack.c.bf16 %v1624, %v1612
      %v1740 = vunpack.c.l.b16 %v1733
      %v1741 = vunpack.c.l.b16 %v1734
      %v1742 = vunpack.c.l.b16 %v1735
      %v1743 = vpack.c.b16 %v1741, %v1740
      %v1744 = vpack.c.b16 %v1742, %v1742
      %vm1746 = vcmask 138240
      %v1748 = vsel %vm1746, %v1736, 0
      %vm1750 = vcmask 1040384
      %v1751 = vsel 0, 4294967295, 65535
      %v1752 = vsel %vm1750, %v1751, 0
      %v1754 = vand.u32 %v1744, %v1752
      %1756 = vmatpush.bf16.msra.mxu0 0
      %1757 = vmatpush.bf16.msra.mxu0 0
      %1758 = vmatpush.bf16.msra.mxu0 0
      %1759 = vmatpush.bf16.msra.mxu0 0
      %1760 = vmatpush.bf16.msra.mxu0 0
      %1761 = vmatpush.bf16.msra.mxu0 0
      %1762 = vmatpush.bf16.msra.mxu0 %v1754
      %1763 = vmatpush.bf16.msra.mxu0 %v1743
      %1764 = vmatmul.bf16.gmra.mxu0 %v1748
      %v1765 = vpop.f32.mrf.mxu0
      %v1766 = vadd.f32 0.0, %v1765
      %v1767 = vpop.f32.mrf.mxu0
      %v1768 = vadd.f32 0.0, %v1767
      %1769 = vdwg.mxu0
      %v1770 = vadd.f32 %v1731, %v1766
      %v1771 = vadd.f32 %v1732, %v1768
      %v1772 = vld [vmem:[%s581 + $0x18] sm:$0xf]
      %v1773 = vld [vmem:[%s581 + $0x1c] sm:$0xf]
      %v1774 = vld [vmem:[%s581 + $0x20] sm:$0x1]
      %v1775 = vpack.c.bf16 %v1584, %v1583
      %v1776 = vpack.c.bf16 %v1586, %v1585
      %v1777 = vpack.c.bf16 %v1588, %v1587
      %v1781 = vunpack.c.l.b16 %v1772
      %v1782 = vunpack.c.l.b16 %v1773
      %v1783 = vunpack.c.l.b16 %v1774
      %v1784 = vpack.c.b16 %v1782, %v1781
      %v1785 = vpack.c.b16 %v1783, %v1783
      %v1788 = vsel %vm1746, %v1775, 0
      %v1791 = vsel %vm1746, %v1776, 0
      %v1794 = vsel %vm1746, %v1777, 0
      %v1797 = vand.u32 %v1785, %v1752
      %1799 = vmatpush.bf16.msra.mxu0 0
      %1800 = vmatpush.bf16.msra.mxu0 0
      %1801 = vmatpush.bf16.msra.mxu0 0
      %1802 = vmatpush.bf16.msra.mxu0 0
      %1803 = vmatpush.bf16.msra.mxu0 0
      %1804 = vmatpush.bf16.msra.mxu0 0
      %1805 = vmatpush.bf16.msra.mxu0 %v1797
      %1806 = vmatpush.bf16.msra.mxu0 %v1784
      %1807 = vmatmul.bf16.gmra.mxu0 %v1788
      %v1808 = vpop.f32.mrf.mxu0
      %v1809 = vadd.f32 0.0, %v1808
      %v1810 = vpop.f32.mrf.mxu0
      %v1811 = vadd.f32 0.0, %v1810
      %1812 = vmatmul.bf16.gmra.mxu0 %v1791
      %v1813 = vpop.f32.mrf.mxu0
      %v1814 = vadd.f32 0.0, %v1813
      %v1815 = vpop.f32.mrf.mxu0
      %v1816 = vadd.f32 0.0, %v1815
      %1817 = vmatmul.bf16.gmra.mxu0 %v1794
      %v1818 = vpop.f32.mrf.mxu0
      %v1819 = vadd.f32 0.0, %v1818
      %v1820 = vpop.f32.mrf.mxu0
      %v1821 = vadd.f32 0.0, %v1820
      %1822 = vdwg.mxu0
      %v1823 = vld [vmem:[%s581 + $0x68] sm:$0xf]
      %v1824 = vld [vmem:[%s581 + $0x6c] sm:$0xf]
      %v1825 = vld [vmem:[%s581 + $0x70] sm:$0xf]
      %v1826 = vld [vmem:[%s581 + $0x74] sm:$0xf]
      %v1827 = vpack.c.bf16 %v1771, %v1770
      %v1828 = vperm.slane %v1451, 0
      %v1833 = vunpack.c.l.b16 %v1823
      %v1834 = vunpack.c.l.b16 %v1824
      %v1835 = vunpack.c.l.b16 %v1825
      %v1836 = vunpack.c.l.b16 %v1826
      %v1837 = vpack.c.b16 %v1834, %v1833
      %v1838 = vpack.c.b16 %v1836, %v1835
      %v1842 = vsel %vm1641, %v1827, 0
      %1844 = vmatpush.bf16.msra.mxu0 0
      %1845 = vmatpush.bf16.msra.mxu0 0
      %1846 = vmatpush.bf16.msra.mxu0 0
      %1847 = vmatpush.bf16.msra.mxu0 0
      %1848 = vmatpush.bf16.msra.mxu0 0
      %1849 = vmatpush.bf16.msra.mxu0 0
      %1850 = vmatpush.bf16.msra.mxu0 %v1838
      %1851 = vmatpush.bf16.msra.mxu0 %v1837
      %1852 = vmatmul.bf16.gmra.mxu0 %v1842
      %v1853 = vpop.f32.mrf.mxu0
      %v1854 = vadd.f32 %v1828, %v1853
      %v1855 = vpop.f32.mrf.mxu0
      %v1856 = vadd.f32 %v1828, %v1855
      %1857 = vdwg.mxu0
      %v1858 = vxor.u32 %v1854, 2147483648
      %v1859 = vxor.u32 %v1856, 2147483648
      %v1860 = vmul.f32 %v1858, 1.442695
      %v1861 = vpow.pop %v1860
      %v1862 = vmul.f32 %v1859, 1.442695
      %v1863 = vpow.pop %v1862
      %v1864 = vadd.f32 %v1861, 1.0
      %v1865 = vadd.f32 %v1863, 1.0
      %v1866 = vrcp.pop %v1864
      %v1867 = vmul.f32 %v1864, %v1866
      %v1868 = vsub.f32 1.0, %v1867
      %v1869 = vmul.f32 %v1866, %v1868
      %v1870 = vadd.f32 %v1866, %v1869
      %vm1871 = vweird.f32 %v1864
      %vm1872 = vweird.f32 %v1866
      %vm1873 = vmor %vm1871, %vm1872
      %v1874 = vsel %vm1873, %v1866, %v1870
      %v1875 = vand.u32 2147483647, %v1864
      %vm1876 = vcmp.eq.f32.partialorder %v1875, 8.507059e+37
      %v1877 = vand.u32 %v1864, 2147483648
      %v1878 = vor.u32 1.1754944e-38, %v1877
      %v1879 = vsel %vm1876, %v1878, %v1874
      %v1880 = vmul.f32 1.0, %v1879
      %v1881 = vrcp.pop %v1865
      %v1882 = vmul.f32 %v1865, %v1881
      %v1883 = vsub.f32 1.0, %v1882
      %v1884 = vmul.f32 %v1881, %v1883
      %v1885 = vadd.f32 %v1881, %v1884
      %vm1886 = vweird.f32 %v1865
      %vm1887 = vweird.f32 %v1881
      %vm1888 = vmor %vm1886, %vm1887
      %v1889 = vsel %vm1888, %v1881, %v1885
      %v1890 = vand.u32 2147483647, %v1865
      %vm1891 = vcmp.eq.f32.partialorder %v1890, 8.507059e+37
      %v1892 = vand.u32 %v1865, 2147483648
      %v1893 = vor.u32 1.1754944e-38, %v1892
      %v1894 = vsel %vm1891, %v1893, %v1889
      %v1895 = vmul.f32 1.0, %v1894
      %v1896 = vmul.f32 %v1809, %v1880
      %v1897 = vmul.f32 %v1811, %v1895
      %v1898 = vmul.f32 %v1814, %v1880
      %v1899 = vmul.f32 %v1816, %v1895
      %v1900 = vmul.f32 %v1819, %v1880
      %v1901 = vmul.f32 %v1821, %v1895
      %v1902 = vxor.u32 %v1770, 2147483648
      %v1903 = vxor.u32 %v1771, 2147483648
      %v1904 = vmul.f32 %v1902, 1.442695
      %v1905 = vpow.pop %v1904
      %v1906 = vmul.f32 %v1903, 1.442695
      %v1907 = vpow.pop %v1906
      %v1908 = vadd.f32 %v1905, 1.0
      %v1909 = vadd.f32 %v1907, 1.0
      %v1910 = vrcp.pop %v1908
      %v1911 = vmul.f32 %v1908, %v1910
      %v1912 = vsub.f32 1.0, %v1911
      %v1913 = vmul.f32 %v1910, %v1912
      %v1914 = vadd.f32 %v1910, %v1913
      %vm1915 = vweird.f32 %v1908
      %vm1916 = vweird.f32 %v1910
      %vm1917 = vmor %vm1915, %vm1916
      %v1918 = vsel %vm1917, %v1910, %v1914
      %v1919 = vand.u32 2147483647, %v1908
      %vm1920 = vcmp.eq.f32.partialorder %v1919, 8.507059e+37
      %v1921 = vand.u32 %v1908, 2147483648
      %v1922 = vor.u32 1.1754944e-38, %v1921
      %v1923 = vsel %vm1920, %v1922, %v1918
      %v1924 = vmul.f32 1.0, %v1923
      %v1925 = vrcp.pop %v1909
      %v1926 = vmul.f32 %v1909, %v1925
      %v1927 = vsub.f32 1.0, %v1926
      %v1928 = vmul.f32 %v1925, %v1927
      %v1929 = vadd.f32 %v1925, %v1928
      %vm1930 = vweird.f32 %v1909
      %vm1931 = vweird.f32 %v1925
      %vm1932 = vmor %vm1930, %vm1931
      %v1933 = vsel %vm1932, %v1925, %v1929
      %v1934 = vand.u32 2147483647, %v1909
      %vm1935 = vcmp.eq.f32.partialorder %v1934, 8.507059e+37
      %v1936 = vand.u32 %v1909, 2147483648
      %v1937 = vor.u32 1.1754944e-38, %v1936
      %v1938 = vsel %vm1935, %v1937, %v1933
      %v1939 = vmul.f32 1.0, %v1938
      %v1940 = vmul.f32 %v1770, %v1924
      %v1941 = vmul.f32 %v1771, %v1939
      %v1942 = vld [vmem:[%s606 + $0x6] sm:$0x1]
      %v1943 = vld [vmem:[%s606 + $0x7] sm:$0x1]
      %v1944 = vld [vmem:[%s586] sm:$0xf]
      %v1945 = vpack.c.bf16 %v1897, %v1896
      %v1946 = vpack.c.bf16 %v1899, %v1898
      %v1947 = vpack.c.bf16 %v1901, %v1900
      %v1949 = vsel %vm1383, %v1945, 0
      %v1952 = vsel %vm1383, %v1946, 0
      %v1955 = vsel %vm1383, %v1947, 0
      %v1958 = vsel %vm1387, %v1944, 0
      %1960 = vmatpush.bf16.msra.mxu0 0
      %1961 = vmatpush.bf16.msra.mxu0 0
      %1962 = vmatpush.bf16.msra.mxu0 0
      %1963 = vmatpush.bf16.msra.mxu0 0
      %1964 = vmatpush.bf16.msra.mxu0 0
      %1965 = vmatpush.bf16.msra.mxu0 0
      %1966 = vmatpush.bf16.msra.mxu0 0
      %1967 = vmatpush.bf16.msra.mxu0 %v1958
      %1968 = vmatmul.bf16.gmra.mxu0 %v1949
      %v1969 = vpop.f32.mrf.mxu0
      %v1970 = vadd.f32 0.0, %v1969
      %v1971 = vpop.f32.mrf.mxu0
      %v1972 = vadd.f32 0.0, %v1971
      %1973 = vmatmul.bf16.gmra.mxu0 %v1952
      %v1974 = vpop.f32.mrf.mxu0
      %v1975 = vadd.f32 0.0, %v1974
      %v1976 = vpop.f32.mrf.mxu0
      %v1977 = vadd.f32 0.0, %v1976
      %1978 = vmatmul.bf16.gmra.mxu0 %v1955
      %v1979 = vpop.f32.mrf.mxu0
      %v1980 = vadd.f32 0.0, %v1979
      %v1981 = vpop.f32.mrf.mxu0
      %v1982 = vadd.f32 0.0, %v1981
      %1983 = vdwg.mxu0
      %v1984 = vmul.f32 %v1970, %v1970
      %v1985 = vmul.f32 %v1972, %v1972
      %v1986 = vmul.f32 %v1975, %v1975
      %v1987 = vmul.f32 %v1977, %v1977
      %v1988 = vadd.f32 %v1984, %v1986
      %v1989 = vadd.f32 %v1985, %v1987
      %v1990 = vmul.f32 %v1980, %v1980
      %v1991 = vmul.f32 %v1982, %v1982
      %v1992 = vadd.f32 %v1988, %v1990
      %v1993 = vadd.f32 %v1989, %v1991
      %v1994 = vmax.f32 %v1992, 1e-08
      %v1995 = vmax.f32 %v1993, 1e-08
      %v1996 = vrsqrt.pop %v1994
      %v1997 = vmul.f32 %v1996, %v1994
      %v1998 = vmul.f32 %v1997, %v1996
      %v1999 = vmul.f32 0.5, %v1998
      %v2000 = vsub.f32 1.5, %v1999
      %v2001 = vmul.f32 %v1996, %v2000
      %v2002 = vmul.f32 %v1994, %v2001
      %vm2003 = vcmp.eq.f32.partialorder %v1994, inf
      %v2004 = vsel %vm2003, %v1994, %v2002
      %vm2005 = vcmp.eq.f32.partialorder %v1994, 0.0
      %v2006 = vand.u32 %v1994, 2147483648
      %v2007 = vsel %vm2005, %v2006, %v2004
      %v2008 = vrsqrt.pop %v1995
      %v2009 = vmul.f32 %v2008, %v1995
      %v2010 = vmul.f32 %v2009, %v2008
      %v2011 = vmul.f32 0.5, %v2010
      %v2012 = vsub.f32 1.5, %v2011
      %v2013 = vmul.f32 %v2008, %v2012
      %v2014 = vmul.f32 %v1995, %v2013
      %vm2015 = vcmp.eq.f32.partialorder %v1995, inf
      %v2016 = vsel %vm2015, %v1995, %v2014
      %vm2017 = vcmp.eq.f32.partialorder %v1995, 0.0
      %v2018 = vand.u32 %v1995, 2147483648
      %v2019 = vsel %vm2017, %v2018, %v2016
      %v2020 = vld [vmem:[%s586 + $0x10] sm:$0xf]
      %v2021 = vld [vmem:[%s586 + $0x14] sm:$0xf]
      %v2022 = vld [vmem:[%s586 + $0x18] sm:$0xf]
      %v2023 = vld [vmem:[%s586 + $0x1c] sm:$0xf]
      %v2024 = vpack.c.bf16 %v1941, %v1940
      %v2029 = vunpack.c.l.b16 %v2020
      %v2030 = vunpack.c.l.b16 %v2021
      %v2031 = vunpack.c.l.b16 %v2022
      %v2032 = vunpack.c.l.b16 %v2023
      %v2033 = vpack.c.b16 %v2030, %v2029
      %v2034 = vpack.c.b16 %v2032, %v2031
      %v2038 = vsel %vm1641, %v2024, 0
      %2040 = vmatpush.bf16.msra.mxu0 0
      %2041 = vmatpush.bf16.msra.mxu0 0
      %2042 = vmatpush.bf16.msra.mxu0 0
      %2043 = vmatpush.bf16.msra.mxu0 0
      %2044 = vmatpush.bf16.msra.mxu0 0
      %2045 = vmatpush.bf16.msra.mxu0 0
      %2046 = vmatpush.bf16.msra.mxu0 %v2034
      %2047 = vmatpush.bf16.msra.mxu0 %v2033
      %2048 = vmatmul.bf16.gmra.mxu0 %v2038
      %v2049 = vpop.f32.mrf.mxu0
      %v2050 = vadd.f32 0.0, %v2049
      %v2051 = vpop.f32.mrf.mxu0
      %v2052 = vadd.f32 0.0, %v2051
      %2053 = vdwg.mxu0
      %v2054 = vperm.slane %v1942, 0
      %v2055 = vadd.f32 %v2054, %v2050
      %v2056 = vadd.f32 %v2054, %v2052
      %v2057 = vld [vmem:[%s586 + $0x20] sm:$0xf]
      %v2058 = vpack.c.bf16 %v2019, %v2007
      %v2060 = vsel %vm1383, %v2058, 0
      %v2063 = vsel %vm1387, %v2057, 0
      %2065 = vmatpush.bf16.msra.mxu0 0
      %2066 = vmatpush.bf16.msra.mxu0 0
      %2067 = vmatpush.bf16.msra.mxu0 0
      %2068 = vmatpush.bf16.msra.mxu0 0
      %2069 = vmatpush.bf16.msra.mxu0 0
      %2070 = vmatpush.bf16.msra.mxu0 0
      %2071 = vmatpush.bf16.msra.mxu0 0
      %2072 = vmatpush.bf16.msra.mxu0 %v2063
      %2073 = vmatmul.bf16.gmra.mxu0 %v2060
      %v2074 = vpop.f32.mrf.mxu0
      %v2075 = vadd.f32 0.0, %v2074
      %v2076 = vpop.f32.mrf.mxu0
      %v2077 = vadd.f32 0.0, %v2076
      %2078 = vdwg.mxu0
      %v2079 = vadd.f32 %v2055, %v2075
      %v2080 = vadd.f32 %v2056, %v2077
      %v2081 = vld [vmem:[%s586 + $0x8] sm:$0xf]
      %v2082 = vpack.c.bf16 %v1972, %v1970
      %v2083 = vpack.c.bf16 %v1977, %v1975
      %v2084 = vpack.c.bf16 %v1982, %v1980
      %v2086 = vsel %vm1383, %v2082, 0
      %v2089 = vsel %vm1383, %v2083, 0
      %v2092 = vsel %vm1383, %v2084, 0
      %v2095 = vsel %vm1387, %v2081, 0
      %2097 = vmatpush.bf16.msra.mxu0 0
      %2098 = vmatpush.bf16.msra.mxu0 0
      %2099 = vmatpush.bf16.msra.mxu0 0
      %2100 = vmatpush.bf16.msra.mxu0 0
      %2101 = vmatpush.bf16.msra.mxu0 0
      %2102 = vmatpush.bf16.msra.mxu0 0
      %2103 = vmatpush.bf16.msra.mxu0 0
      %2104 = vmatpush.bf16.msra.mxu0 %v2095
      %2105 = vmatmul.bf16.gmra.mxu0 %v2086
      %v2106 = vpop.f32.mrf.mxu0
      %v2107 = vadd.f32 0.0, %v2106
      %v2108 = vpop.f32.mrf.mxu0
      %v2109 = vadd.f32 0.0, %v2108
      %2110 = vmatmul.bf16.gmra.mxu0 %v2089
      %v2111 = vpop.f32.mrf.mxu0
      %v2112 = vadd.f32 0.0, %v2111
      %v2113 = vpop.f32.mrf.mxu0
      %v2114 = vadd.f32 0.0, %v2113
      %2115 = vmatmul.bf16.gmra.mxu0 %v2092
      %v2116 = vpop.f32.mrf.mxu0
      %v2117 = vadd.f32 0.0, %v2116
      %v2118 = vpop.f32.mrf.mxu0
      %v2119 = vadd.f32 0.0, %v2118
      %2120 = vdwg.mxu0
      %v2121 = vld [vmem:[%s586 + $0x28] sm:$0xf]
      %v2122 = vld [vmem:[%s586 + $0x2c] sm:$0xf]
      %v2123 = vld [vmem:[%s586 + $0x30] sm:$0xf]
      %v2124 = vld [vmem:[%s586 + $0x34] sm:$0xf]
      %v2125 = vpack.c.bf16 %v2080, %v2079
      %v2126 = vperm.slane %v1943, 0
      %v2131 = vunpack.c.l.b16 %v2121
      %v2132 = vunpack.c.l.b16 %v2122
      %v2133 = vunpack.c.l.b16 %v2123
      %v2134 = vunpack.c.l.b16 %v2124
      %v2135 = vpack.c.b16 %v2132, %v2131
      %v2136 = vpack.c.b16 %v2134, %v2133
      %v2140 = vsel %vm1641, %v2125, 0
      %2142 = vmatpush.bf16.msra.mxu0 0
      %2143 = vmatpush.bf16.msra.mxu0 0
      %2144 = vmatpush.bf16.msra.mxu0 0
      %2145 = vmatpush.bf16.msra.mxu0 0
      %2146 = vmatpush.bf16.msra.mxu0 0
      %2147 = vmatpush.bf16.msra.mxu0 0
      %2148 = vmatpush.bf16.msra.mxu0 %v2136
      %2149 = vmatpush.bf16.msra.mxu0 %v2135
      %2150 = vmatmul.bf16.gmra.mxu0 %v2140
      %v2151 = vpop.f32.mrf.mxu0
      %v2152 = vadd.f32 %v2126, %v2151
      %v2153 = vpop.f32.mrf.mxu0
      %v2154 = vadd.f32 %v2126, %v2153
      %2155 = vdwg.mxu0
      %v2156 = vxor.u32 %v2152, 2147483648
      %v2157 = vxor.u32 %v2154, 2147483648
      %v2158 = vmul.f32 %v2156, 1.442695
      %v2159 = vpow.pop %v2158
      %v2160 = vmul.f32 %v2157, 1.442695
      %v2161 = vpow.pop %v2160
      %v2162 = vadd.f32 %v2159, 1.0
      %v2163 = vadd.f32 %v2161, 1.0
      %v2164 = vrcp.pop %v2162
      %v2165 = vmul.f32 %v2162, %v2164
      %v2166 = vsub.f32 1.0, %v2165
      %v2167 = vmul.f32 %v2164, %v2166
      %v2168 = vadd.f32 %v2164, %v2167
      %vm2169 = vweird.f32 %v2162
      %vm2170 = vweird.f32 %v2164
      %vm2171 = vmor %vm2169, %vm2170
      %v2172 = vsel %vm2171, %v2164, %v2168
      %v2173 = vand.u32 2147483647, %v2162
      %vm2174 = vcmp.eq.f32.partialorder %v2173, 8.507059e+37
      %v2175 = vand.u32 %v2162, 2147483648
      %v2176 = vor.u32 1.1754944e-38, %v2175
      %v2177 = vsel %vm2174, %v2176, %v2172
      %v2178 = vmul.f32 1.0, %v2177
      %v2179 = vrcp.pop %v2163
      %v2180 = vmul.f32 %v2163, %v2179
      %v2181 = vsub.f32 1.0, %v2180
      %v2182 = vmul.f32 %v2179, %v2181
      %v2183 = vadd.f32 %v2179, %v2182
      %vm2184 = vweird.f32 %v2163
      %vm2185 = vweird.f32 %v2179
      %vm2186 = vmor %vm2184, %vm2185
      %v2187 = vsel %vm2186, %v2179, %v2183
      %v2188 = vand.u32 2147483647, %v2163
      %vm2189 = vcmp.eq.f32.partialorder %v2188, 8.507059e+37
      %v2190 = vand.u32 %v2163, 2147483648
      %v2191 = vor.u32 1.1754944e-38, %v2190
      %v2192 = vsel %vm2189, %v2191, %v2187
      %v2193 = vmul.f32 1.0, %v2192
      %v2194 = vmul.f32 %v2107, %v2178
      %v2195 = vmul.f32 %v2109, %v2193
      %v2196 = vmul.f32 %v2112, %v2178
      %v2197 = vmul.f32 %v2114, %v2193
      %v2198 = vmul.f32 %v2117, %v2178
      %v2199 = vmul.f32 %v2119, %v2193
      %v2200 = vxor.u32 %v2079, 2147483648
      %v2201 = vxor.u32 %v2080, 2147483648
      %v2202 = vmul.f32 %v2200, 1.442695
      %v2203 = vpow.pop %v2202
      %v2204 = vmul.f32 %v2201, 1.442695
      %v2205 = vpow.pop %v2204
      %v2206 = vadd.f32 %v2203, 1.0
      %v2207 = vadd.f32 %v2205, 1.0
      %v2208 = vrcp.pop %v2206
      %v2209 = vmul.f32 %v2206, %v2208
      %v2210 = vsub.f32 1.0, %v2209
      %v2211 = vmul.f32 %v2208, %v2210
      %v2212 = vadd.f32 %v2208, %v2211
      %vm2213 = vweird.f32 %v2206
      %vm2214 = vweird.f32 %v2208
      %vm2215 = vmor %vm2213, %vm2214
      %v2216 = vsel %vm2215, %v2208, %v2212
      %v2217 = vand.u32 2147483647, %v2206
      %vm2218 = vcmp.eq.f32.partialorder %v2217, 8.507059e+37
      %v2219 = vand.u32 %v2206, 2147483648
      %v2220 = vor.u32 1.1754944e-38, %v2219
      %v2221 = vsel %vm2218, %v2220, %v2216
      %v2222 = vmul.f32 1.0, %v2221
      %v2223 = vrcp.pop %v2207
      %v2224 = vmul.f32 %v2207, %v2223
      %v2225 = vsub.f32 1.0, %v2224
      %v2226 = vmul.f32 %v2223, %v2225
      %v2227 = vadd.f32 %v2223, %v2226
      %vm2228 = vweird.f32 %v2207
      %vm2229 = vweird.f32 %v2223
      %vm2230 = vmor %vm2228, %vm2229
      %v2231 = vsel %vm2230, %v2223, %v2227
      %v2232 = vand.u32 2147483647, %v2207
      %vm2233 = vcmp.eq.f32.partialorder %v2232, 8.507059e+37
      %v2234 = vand.u32 %v2207, 2147483648
      %v2235 = vor.u32 1.1754944e-38, %v2234
      %v2236 = vsel %vm2233, %v2235, %v2231
      %v2237 = vmul.f32 1.0, %v2236
      %v2238 = vmul.f32 %v2079, %v2222
      %v2239 = vmul.f32 %v2080, %v2237
      %v2240 = vld [vmem:[%s606 + $0x8] sm:$0x1]
      %v2241 = vld [vmem:[%s606 + $0x9] sm:$0x1]
      %v2242 = vld [vmem:[%s591] sm:$0xf]
      %v2243 = vpack.c.bf16 %v2195, %v2194
      %v2244 = vpack.c.bf16 %v2197, %v2196
      %v2245 = vpack.c.bf16 %v2199, %v2198
      %v2247 = vsel %vm1383, %v2243, 0
      %v2250 = vsel %vm1383, %v2244, 0
      %v2253 = vsel %vm1383, %v2245, 0
      %v2256 = vsel %vm1387, %v2242, 0
      %2258 = vmatpush.bf16.msra.mxu0 0
      %2259 = vmatpush.bf16.msra.mxu0 0
      %2260 = vmatpush.bf16.msra.mxu0 0
      %2261 = vmatpush.bf16.msra.mxu0 0
      %2262 = vmatpush.bf16.msra.mxu0 0
      %2263 = vmatpush.bf16.msra.mxu0 0
      %2264 = vmatpush.bf16.msra.mxu0 0
      %2265 = vmatpush.bf16.msra.mxu0 %v2256
      %2266 = vmatmul.bf16.gmra.mxu0 %v2247
      %v2267 = vpop.f32.mrf.mxu0
      %v2268 = vadd.f32 0.0, %v2267
      %v2269 = vpop.f32.mrf.mxu0
      %v2270 = vadd.f32 0.0, %v2269
      %2271 = vmatmul.bf16.gmra.mxu0 %v2250
      %v2272 = vpop.f32.mrf.mxu0
      %v2273 = vadd.f32 0.0, %v2272
      %v2274 = vpop.f32.mrf.mxu0
      %v2275 = vadd.f32 0.0, %v2274
      %2276 = vmatmul.bf16.gmra.mxu0 %v2253
      %v2277 = vpop.f32.mrf.mxu0
      %v2278 = vadd.f32 0.0, %v2277
      %v2279 = vpop.f32.mrf.mxu0
      %v2280 = vadd.f32 0.0, %v2279
      %2281 = vdwg.mxu0
      %v2282 = vmul.f32 %v2268, %v2268
      %v2283 = vmul.f32 %v2270, %v2270
      %v2284 = vmul.f32 %v2273, %v2273
      %v2285 = vmul.f32 %v2275, %v2275
      %v2286 = vadd.f32 %v2282, %v2284
      %v2287 = vadd.f32 %v2283, %v2285
      %v2288 = vmul.f32 %v2278, %v2278
      %v2289 = vmul.f32 %v2280, %v2280
      %v2290 = vadd.f32 %v2286, %v2288
      %v2291 = vadd.f32 %v2287, %v2289
      %v2292 = vmax.f32 %v2290, 1e-08
      %v2293 = vmax.f32 %v2291, 1e-08
      %v2294 = vrsqrt.pop %v2292
      %v2295 = vmul.f32 %v2294, %v2292
      %v2296 = vmul.f32 %v2295, %v2294
      %v2297 = vmul.f32 0.5, %v2296
      %v2298 = vsub.f32 1.5, %v2297
      %v2299 = vmul.f32 %v2294, %v2298
      %v2300 = vmul.f32 %v2292, %v2299
      %vm2301 = vcmp.eq.f32.partialorder %v2292, inf
      %v2302 = vsel %vm2301, %v2292, %v2300
      %vm2303 = vcmp.eq.f32.partialorder %v2292, 0.0
      %v2304 = vand.u32 %v2292, 2147483648
      %v2305 = vsel %vm2303, %v2304, %v2302
      %v2306 = vrsqrt.pop %v2293
      %v2307 = vmul.f32 %v2306, %v2293
      %v2308 = vmul.f32 %v2307, %v2306
      %v2309 = vmul.f32 0.5, %v2308
      %v2310 = vsub.f32 1.5, %v2309
      %v2311 = vmul.f32 %v2306, %v2310
      %v2312 = vmul.f32 %v2293, %v2311
      %vm2313 = vcmp.eq.f32.partialorder %v2293, inf
      %v2314 = vsel %vm2313, %v2293, %v2312
      %vm2315 = vcmp.eq.f32.partialorder %v2293, 0.0
      %v2316 = vand.u32 %v2293, 2147483648
      %v2317 = vsel %vm2315, %v2316, %v2314
      %v2318 = vld [vmem:[%s591 + $0x10] sm:$0xf]
      %v2319 = vld [vmem:[%s591 + $0x14] sm:$0xf]
      %v2320 = vld [vmem:[%s591 + $0x18] sm:$0xf]
      %v2321 = vld [vmem:[%s591 + $0x1c] sm:$0xf]
      %v2322 = vpack.c.bf16 %v2239, %v2238
      %v2327 = vunpack.c.l.b16 %v2318
      %v2328 = vunpack.c.l.b16 %v2319
      %v2329 = vunpack.c.l.b16 %v2320
      %v2330 = vunpack.c.l.b16 %v2321
      %v2331 = vpack.c.b16 %v2328, %v2327
      %v2332 = vpack.c.b16 %v2330, %v2329
      %v2336 = vsel %vm1641, %v2322, 0
      %2338 = vmatpush.bf16.msra.mxu0 0
      %2339 = vmatpush.bf16.msra.mxu0 0
      %2340 = vmatpush.bf16.msra.mxu0 0
      %2341 = vmatpush.bf16.msra.mxu0 0
      %2342 = vmatpush.bf16.msra.mxu0 0
      %2343 = vmatpush.bf16.msra.mxu0 0
      %2344 = vmatpush.bf16.msra.mxu0 %v2332
      %2345 = vmatpush.bf16.msra.mxu0 %v2331
      %2346 = vmatmul.bf16.gmra.mxu0 %v2336
      %v2347 = vpop.f32.mrf.mxu0
      %v2348 = vadd.f32 0.0, %v2347
      %v2349 = vpop.f32.mrf.mxu0
      %v2350 = vadd.f32 0.0, %v2349
      %2351 = vdwg.mxu0
      %v2352 = vperm.slane %v2240, 0
      %v2353 = vadd.f32 %v2352, %v2348
      %v2354 = vadd.f32 %v2352, %v2350
      %v2355 = vld [vmem:[%s591 + $0x20] sm:$0xf]
      %v2356 = vpack.c.bf16 %v2317, %v2305
      %v2358 = vsel %vm1383, %v2356, 0
      %v2361 = vsel %vm1387, %v2355, 0
      %2363 = vmatpush.bf16.msra.mxu0 0
      %2364 = vmatpush.bf16.msra.mxu0 0
      %2365 = vmatpush.bf16.msra.mxu0 0
      %2366 = vmatpush.bf16.msra.mxu0 0
      %2367 = vmatpush.bf16.msra.mxu0 0
      %2368 = vmatpush.bf16.msra.mxu0 0
      %2369 = vmatpush.bf16.msra.mxu0 0
      %2370 = vmatpush.bf16.msra.mxu0 %v2361
      %2371 = vmatmul.bf16.gmra.mxu0 %v2358
      %v2372 = vpop.f32.mrf.mxu0
      %v2373 = vadd.f32 0.0, %v2372
      %v2374 = vpop.f32.mrf.mxu0
      %v2375 = vadd.f32 0.0, %v2374
      %2376 = vdwg.mxu0
      %v2377 = vadd.f32 %v2353, %v2373
      %v2378 = vadd.f32 %v2354, %v2375
      %v2379 = vld [vmem:[%s591 + $0x8] sm:$0xf]
      %v2380 = vpack.c.bf16 %v2270, %v2268
      %v2381 = vpack.c.bf16 %v2275, %v2273
      %v2382 = vpack.c.bf16 %v2280, %v2278
      %v2384 = vsel %vm1383, %v2380, 0
      %v2387 = vsel %vm1383, %v2381, 0
      %v2390 = vsel %vm1383, %v2382, 0
      %v2393 = vsel %vm1387, %v2379, 0
      %2395 = vmatpush.bf16.msra.mxu0 0
      %2396 = vmatpush.bf16.msra.mxu0 0
      %2397 = vmatpush.bf16.msra.mxu0 0
      %2398 = vmatpush.bf16.msra.mxu0 0
      %2399 = vmatpush.bf16.msra.mxu0 0
      %2400 = vmatpush.bf16.msra.mxu0 0
      %2401 = vmatpush.bf16.msra.mxu0 0
      %2402 = vmatpush.bf16.msra.mxu0 %v2393
      %2403 = vmatmul.bf16.gmra.mxu0 %v2384
      %v2404 = vpop.f32.mrf.mxu0
      %v2405 = vadd.f32 0.0, %v2404
      %v2406 = vpop.f32.mrf.mxu0
      %v2407 = vadd.f32 0.0, %v2406
      %2408 = vmatmul.bf16.gmra.mxu0 %v2387
      %v2409 = vpop.f32.mrf.mxu0
      %v2410 = vadd.f32 0.0, %v2409
      %v2411 = vpop.f32.mrf.mxu0
      %v2412 = vadd.f32 0.0, %v2411
      %2413 = vmatmul.bf16.gmra.mxu0 %v2390
      %v2414 = vpop.f32.mrf.mxu0
      %v2415 = vadd.f32 0.0, %v2414
      %v2416 = vpop.f32.mrf.mxu0
      %v2417 = vadd.f32 0.0, %v2416
      %2418 = vdwg.mxu0
      %v2419 = vld [vmem:[%s591 + $0x28] sm:$0xf]
      %v2420 = vld [vmem:[%s591 + $0x2c] sm:$0xf]
      %v2421 = vld [vmem:[%s591 + $0x30] sm:$0xf]
      %v2422 = vld [vmem:[%s591 + $0x34] sm:$0xf]
      %v2423 = vpack.c.bf16 %v2378, %v2377
      %v2424 = vperm.slane %v2241, 0
      %v2429 = vunpack.c.l.b16 %v2419
      %v2430 = vunpack.c.l.b16 %v2420
      %v2431 = vunpack.c.l.b16 %v2421
      %v2432 = vunpack.c.l.b16 %v2422
      %v2433 = vpack.c.b16 %v2430, %v2429
      %v2434 = vpack.c.b16 %v2432, %v2431
      %v2438 = vsel %vm1641, %v2423, 0
      %2440 = vmatpush.bf16.msra.mxu0 0
      %2441 = vmatpush.bf16.msra.mxu0 0
      %2442 = vmatpush.bf16.msra.mxu0 0
      %2443 = vmatpush.bf16.msra.mxu0 0
      %2444 = vmatpush.bf16.msra.mxu0 0
      %2445 = vmatpush.bf16.msra.mxu0 0
      %2446 = vmatpush.bf16.msra.mxu0 %v2434
      %2447 = vmatpush.bf16.msra.mxu0 %v2433
      %2448 = vmatmul.bf16.gmra.mxu0 %v2438
      %v2449 = vpop.f32.mrf.mxu0
      %v2450 = vadd.f32 %v2424, %v2449
      %v2451 = vpop.f32.mrf.mxu0
      %v2452 = vadd.f32 %v2424, %v2451
      %2453 = vdwg.mxu0
      %v2454 = vxor.u32 %v2450, 2147483648
      %v2455 = vxor.u32 %v2452, 2147483648
      %v2456 = vmul.f32 %v2454, 1.442695
      %v2457 = vpow.pop %v2456
      %v2458 = vmul.f32 %v2455, 1.442695
      %v2459 = vpow.pop %v2458
      %v2460 = vadd.f32 %v2457, 1.0
      %v2461 = vadd.f32 %v2459, 1.0
      %v2462 = vrcp.pop %v2460
      %v2463 = vmul.f32 %v2460, %v2462
      %v2464 = vsub.f32 1.0, %v2463
      %v2465 = vmul.f32 %v2462, %v2464
      %v2466 = vadd.f32 %v2462, %v2465
      %vm2467 = vweird.f32 %v2460
      %vm2468 = vweird.f32 %v2462
      %vm2469 = vmor %vm2467, %vm2468
      %v2470 = vsel %vm2469, %v2462, %v2466
      %v2471 = vand.u32 2147483647, %v2460
      %vm2472 = vcmp.eq.f32.partialorder %v2471, 8.507059e+37
      %v2473 = vand.u32 %v2460, 2147483648
      %v2474 = vor.u32 1.1754944e-38, %v2473
      %v2475 = vsel %vm2472, %v2474, %v2470
      %v2476 = vmul.f32 1.0, %v2475
      %v2477 = vrcp.pop %v2461
      %v2478 = vmul.f32 %v2461, %v2477
      %v2479 = vsub.f32 1.0, %v2478
      %v2480 = vmul.f32 %v2477, %v2479
      %v2481 = vadd.f32 %v2477, %v2480
      %vm2482 = vweird.f32 %v2461
      %vm2483 = vweird.f32 %v2477
      %vm2484 = vmor %vm2482, %vm2483
      %v2485 = vsel %vm2484, %v2477, %v2481
      %v2486 = vand.u32 2147483647, %v2461
      %vm2487 = vcmp.eq.f32.partialorder %v2486, 8.507059e+37
      %v2488 = vand.u32 %v2461, 2147483648
      %v2489 = vor.u32 1.1754944e-38, %v2488
      %v2490 = vsel %vm2487, %v2489, %v2485
      %v2491 = vmul.f32 1.0, %v2490
      %v2492 = vmul.f32 %v2405, %v2476
      %v2493 = vmul.f32 %v2407, %v2491
      %v2494 = vmul.f32 %v2410, %v2476
      %v2495 = vmul.f32 %v2412, %v2491
      %v2496 = vmul.f32 %v2415, %v2476
      %v2497 = vmul.f32 %v2417, %v2491
      %2500 = vrot.lane.b32.xlu0 %v2492, 32
      %v2501 = vpop.permute.xlu0 %2500
      %2502 = vrot.lane.b32.xlu0 %v2493, 32
      %v2503 = vpop.permute.xlu0 %2502
      %2508 = vrot.lane.b32.xlu0 %v2494, 40
      %v2509 = vpop.permute.xlu0 %2508
      %2510 = vrot.lane.b32.xlu0 %v2495, 40
      %v2511 = vpop.permute.xlu0 %2510
      %2516 = vrot.lane.b32.xlu0 %v2496, 48
      %v2517 = vpop.permute.xlu0 %2516
      %2518 = vrot.lane.b32.xlu0 %v2497, 48
      %v2519 = vpop.permute.xlu0 %2518
      %v2522 = vsel %vm1641, %v2377, %v2501
      %v2523 = vsel %vm1641, %v2378, %v2503
      %vm2524 = vcmask 326656
      %v2525 = vsel %vm2524, %v2522, %v2509
      %v2526 = vsel %vm2524, %v2523, %v2511
      %vm2527 = vcmask 392192
      %v2528 = vsel %vm2527, %v2525, %v2517
      %v2529 = vsel %vm2527, %v2526, %v2519
      %v2530 = vpack.c.bf16 %v2529, %v2528
      %vm2531 = vcmask 130048
      %v2533 = vsel %vm2531, %v1381, 0
      %2535 = vmatpush.bf16.msra.mxu0 0
      %2536 = vmatpush.bf16.msra.mxu0 0
      %2537 = vmatpush.bf16.msra.mxu0 0
      %2538 = vmatpush.bf16.msra.mxu0 0
      %2539 = vmatpush.bf16.msra.mxu0 0
      %2540 = vmatpush.bf16.msra.mxu0 0
      %2541 = vmatpush.bf16.msra.mxu0 0
      %2542 = vmatpush.bf16.msra.mxu0 %v2530
      %2543 = vmatmul.bf16.gmra.mxu0 %v2533
      %v2544 = vpop.f32.mrf.mxu0
      %v2545 = vadd.f32 0.0, %v2544
      %v2546 = vpop.f32.mrf.mxu0
      %2547 = vdwg.mxu0
      %v2548 = vmul.f32 %v2545, 0.01
      %2550 = vrot.lane.b32.xlu0 %v2548, 120
      %v2551 = vpop.permute.xlu0 %2550
      %2553 = vrot.lane.b32.xlu0 %v2548, 112
      %v2554 = vpop.permute.xlu0 %2553
      %v2556 = vadd.f32 %v1322, %v2548
      %v2557 = vadd.f32 %v1325, %v2551
      %v2558 = vadd.f32 %v1328, %v2554
      %v2559 = vld [vmem:[%s606] sm:$0x1]
      %v2560 = vld [vmem:[%s606 + $0x1] sm:$0x1]
      %v2561 = vmul.f32 %v2556, %v2556
      %v2562 = vmul.f32 %v2557, %v2557
      %v2563 = vadd.f32 %v2561, %v2562
      %v2564 = vmul.f32 %v2558, %v2558
      %v2565 = vadd.f32 %v2563, %v2564
      %v2566 = vmax.f32 %v2565, 1e-08
      %2568 = vrot.lane.b32.xlu0 %v2566, 96
      %v2569 = vpop.permute.xlu0 %2568
      %v2571 = vsel %vm1383, %v2569, 0.0
      %2572 = vadd.xlane.f32.xlu0 %v2571
      %v2573 = vpop.xlane.xlu0 %2572
      %v2574 = vrcp.pop 8.0
      %v2575 = vmul.f32 8.0, %v2574
      %v2576 = vsub.f32 1.0, %v2575
      %v2577 = vmul.f32 %v2574, %v2576
      %v2578 = vadd.f32 %v2574, %v2577
      %vm2579 = vweird.f32 %v2574
      %v2580 = vsel %vm2579, %v2574, %v2578
      %v2581 = vmul.f32 %v2573, %v2580
      %v2582 = vrsqrt.pop %v2581
      %v2583 = vmul.f32 %v2582, %v2581
      %v2584 = vmul.f32 %v2583, %v2582
      %v2585 = vmul.f32 0.5, %v2584
      %v2586 = vsub.f32 1.5, %v2585
      %v2587 = vmul.f32 %v2582, %v2586
      %vm2588 = vweird.f32 %v2581
      %vm2589 = vweird.f32 %v2582
      %vm2590 = vmor %vm2588, %vm2589
      %v2591 = vsel %vm2590, %v2582, %v2587
      %2593 = vset.pattern.permute.xlu0 0
      %2594 = vperm.xlu0 %2593, %v2591
      %v2595 = vpop.permute.xlu0 %2594
      %v2597 = vmul.f32 %v2556, %v2595
      %v2598 = vmul.f32 %v2557, %v2595
      %v2599 = vmul.f32 %v2558, %v2595
      %v2600 = vsel %vm1641, %v2556, 0.0
      %2601 = vadd.xlane.f32.xlu0 %v2600
      %v2602 = vpop.xlane.xlu0 %2601
      %v2603 = vrcp.pop 32.0
      %v2604 = vmul.f32 32.0, %v2603
      %v2605 = vsub.f32 1.0, %v2604
      %v2606 = vmul.f32 %v2603, %v2605
      %v2607 = vadd.f32 %v2603, %v2606
      %vm2608 = vweird.f32 %v2603
      %v2609 = vsel %vm2608, %v2603, %v2607
      %v2610 = vmul.f32 %v2602, %v2609
      %v2611 = vsub.f32 %v2556, %v2610
      %v2612 = vmul.f32 %v2611, %v2611
      %v2613 = vsel %vm1641, %v2612, 0.0
      %2614 = vadd.xlane.f32.xlu0 %v2613
      %v2615 = vpop.xlane.xlu0 %2614
      %v2616 = vmul.f32 %v2615, %v2609
      %v2617 = vadd.f32 %v2616, 1e-05
      %v2618 = vrsqrt.pop %v2617
      %v2619 = vmul.f32 %v2618, %v2617
      %v2620 = vmul.f32 %v2619, %v2618
      %v2621 = vmul.f32 0.5, %v2620
      %v2622 = vsub.f32 1.5, %v2621
      %v2623 = vmul.f32 %v2618, %v2622
      %vm2624 = vweird.f32 %v2617
      %vm2625 = vweird.f32 %v2618
      %vm2626 = vmor %vm2624, %vm2625
      %v2627 = vsel %vm2626, %v2618, %v2623
      %v2628 = vmul.f32 %v2611, %v2627
      %v2629 = vperm.slane %v2559, 0
      %v2630 = vmul.f32 %v2628, %v2629
      %v2631 = vperm.slane %v2560, 0
      %v2632 = vadd.f32 %v2630, %v2631
      %v2633 = vld [vmem:[%s606 + $0xa] sm:$0x1]
      %v2634 = vld [vmem:[%s606 + $0xb] sm:$0x1]
      %v2635 = vld [vmem:[%s596] sm:$0xf]
      %v2636 = vpack.c.bf16 %v2598, %v2597
      %v2637 = vpack.c.bf16 %v2599, %v2599
      %2640 = vrot.lane.b32.xlu0 %v2636, 96
      %v2641 = vpop.permute.xlu0 %2640
      %2642 = vrot.lane.b32.xlu0 %v2637, 96
      %v2643 = vpop.permute.xlu0 %2642
      %v2645 = vsel %vm1383, %v2641, 0
      %v2648 = vsel %vm1383, %v2643, 0
      %v2651 = vsel %vm1387, %v2635, 0
      %2653 = vmatpush.bf16.msra.mxu0 0
      %2654 = vmatpush.bf16.msra.mxu0 0
      %2655 = vmatpush.bf16.msra.mxu0 0
      %2656 = vmatpush.bf16.msra.mxu0 0
      %2657 = vmatpush.bf16.msra.mxu0 0
      %2658 = vmatpush.bf16.msra.mxu0 0
      %2659 = vmatpush.bf16.msra.mxu0 0
      %2660 = vmatpush.bf16.msra.mxu0 %v2651
      %2661 = vmatmul.bf16.gmra.mxu0 %v2645
      %v2662 = vpop.f32.mrf.mxu0
      %v2663 = vadd.f32 0.0, %v2662
      %v2664 = vpop.f32.mrf.mxu0
      %v2665 = vadd.f32 0.0, %v2664
      %2666 = vmatmul.bf16.gmra.mxu0 %v2648
      %v2667 = vpop.f32.mrf.mxu0
      %v2668 = vadd.f32 0.0, %v2667
      %v2669 = vpop.f32.mrf.mxu0
      %2670 = vdwg.mxu0
      %v2671 = vmul.f32 %v2663, %v2663
      %v2672 = vmul.f32 %v2665, %v2665
      %v2673 = vadd.f32 %v2671, %v2672
      %v2674 = vmul.f32 %v2668, %v2668
      %v2675 = vadd.f32 %v2673, %v2674
      %v2676 = vmax.f32 %v2675, 1e-08
      %v2677 = vrsqrt.pop %v2676
      %v2678 = vmul.f32 %v2677, %v2676
      %v2679 = vmul.f32 %v2678, %v2677
      %v2680 = vmul.f32 0.5, %v2679
      %v2681 = vsub.f32 1.5, %v2680
      %v2682 = vmul.f32 %v2677, %v2681
      %v2683 = vmul.f32 %v2676, %v2682
      %vm2684 = vcmp.eq.f32.partialorder %v2676, inf
      %v2685 = vsel %vm2684, %v2676, %v2683
      %vm2686 = vcmp.eq.f32.partialorder %v2676, 0.0
      %v2687 = vand.u32 %v2676, 2147483648
      %v2688 = vsel %vm2686, %v2687, %v2685
      %v2689 = vld [vmem:[%s596 + $0x10] sm:$0xf]
      %v2690 = vld [vmem:[%s596 + $0x14] sm:$0xf]
      %v2691 = vld [vmem:[%s596 + $0x18] sm:$0xf]
      %v2692 = vld [vmem:[%s596 + $0x1c] sm:$0xf]
      %v2693 = vpack.c.bf16 %v2632, %v2632
      %v2698 = vunpack.c.l.b16 %v2689
      %v2699 = vunpack.c.l.b16 %v2690
      %v2700 = vunpack.c.l.b16 %v2691
      %v2701 = vunpack.c.l.b16 %v2692
      %v2702 = vpack.c.b16 %v2699, %v2698
      %v2703 = vpack.c.b16 %v2701, %v2700
      %v2707 = vsel %vm1641, %v2693, 0
      %2709 = vmatpush.bf16.msra.mxu0 0
      %2710 = vmatpush.bf16.msra.mxu0 0
      %2711 = vmatpush.bf16.msra.mxu0 0
      %2712 = vmatpush.bf16.msra.mxu0 0
      %2713 = vmatpush.bf16.msra.mxu0 0
      %2714 = vmatpush.bf16.msra.mxu0 0
      %2715 = vmatpush.bf16.msra.mxu0 %v2703
      %2716 = vmatpush.bf16.msra.mxu0 %v2702
      %2717 = vmatmul.bf16.gmra.mxu0 %v2707
      %v2718 = vpop.f32.mrf.mxu0
      %v2719 = vadd.f32 0.0, %v2718
      %v2720 = vpop.f32.mrf.mxu0
      %2721 = vdwg.mxu0
      %v2722 = vperm.slane %v2633, 0
      %v2723 = vadd.f32 %v2722, %v2719
      %v2724 = vld [vmem:[%s596 + $0x20] sm:$0xf]
      %v2725 = vld [vmem:[%s596 + $0x24] sm:$0xf]
      %v2726 = vpack.c.bf16 %v2688, %v2688
      %v2729 = vunpack.c.l.b16 %v2724
      %v2730 = vunpack.c.l.b16 %v2725
      %v2731 = vpack.c.b16 %v2730, %v2729
      %v2734 = vsel %vm2531, %v2726, 0
      %2736 = vmatpush.bf16.msra.mxu0 0
      %2737 = vmatpush.bf16.msra.mxu0 0
      %2738 = vmatpush.bf16.msra.mxu0 0
      %2739 = vmatpush.bf16.msra.mxu0 0
      %2740 = vmatpush.bf16.msra.mxu0 0
      %2741 = vmatpush.bf16.msra.mxu0 0
      %2742 = vmatpush.bf16.msra.mxu0 0
      %2743 = vmatpush.bf16.msra.mxu0 %v2731
      %2744 = vmatmul.bf16.gmra.mxu0 %v2734
      %v2745 = vpop.f32.mrf.mxu0
      %v2746 = vadd.f32 0.0, %v2745
      %v2747 = vpop.f32.mrf.mxu0
      %2748 = vdwg.mxu0
      %v2749 = vadd.f32 %v2723, %v2746
      %v2750 = vld [vmem:[%s596 + $0x8] sm:$0xf]
      %v2751 = vld [vmem:[%s596 + $0xc] sm:$0xf]
      %v2752 = vpack.c.bf16 %v2665, %v2663
      %v2753 = vpack.c.bf16 %v2668, %v2668
      %v2756 = vunpack.c.l.b16 %v2750
      %v2757 = vunpack.c.l.b16 %v2751
      %v2758 = vpack.c.b16 %v2757, %v2756
      %v2761 = vsel %vm2531, %v2752, 0
      %v2764 = vsel %vm2531, %v2753, 0
      %2766 = vmatpush.bf16.msra.mxu0 0
      %2767 = vmatpush.bf16.msra.mxu0 0
      %2768 = vmatpush.bf16.msra.mxu0 0
      %2769 = vmatpush.bf16.msra.mxu0 0
      %2770 = vmatpush.bf16.msra.mxu0 0
      %2771 = vmatpush.bf16.msra.mxu0 0
      %2772 = vmatpush.bf16.msra.mxu0 0
      %2773 = vmatpush.bf16.msra.mxu0 %v2758
      %2774 = vmatmul.bf16.gmra.mxu0 %v2761
      %v2775 = vpop.f32.mrf.mxu0
      %v2776 = vadd.f32 0.0, %v2775
      %v2777 = vpop.f32.mrf.mxu0
      %v2778 = vadd.f32 0.0, %v2777
      %2779 = vmatmul.bf16.gmra.mxu0 %v2764
      %v2780 = vpop.f32.mrf.mxu0
      %v2781 = vadd.f32 0.0, %v2780
      %v2782 = vpop.f32.mrf.mxu0
      %2783 = vdwg.mxu0
      %v2784 = vld [vmem:[%s596 + $0x28] sm:$0xf]
      %v2785 = vld [vmem:[%s596 + $0x2c] sm:$0xf]
      %v2786 = vld [vmem:[%s596 + $0x30] sm:$0xf]
      %v2787 = vld [vmem:[%s596 + $0x34] sm:$0xf]
      %v2788 = vld [vmem:[%s596 + $0x38] sm:$0xf]
      %v2789 = vld [vmem:[%s596 + $0x3c] sm:$0xf]
      %v2790 = vld [vmem:[%s596 + $0x40] sm:$0xf]
      %v2791 = vld [vmem:[%s596 + $0x44] sm:$0xf]
      %v2792 = vld [vmem:[%s596 + $0x48] sm:$0xf]
      %v2793 = vld [vmem:[%s596 + $0x4c] sm:$0xf]
      %v2794 = vld [vmem:[%s596 + $0x50] sm:$0xf]
      %v2795 = vld [vmem:[%s596 + $0x54] sm:$0xf]
      %v2796 = vld [vmem:[%s596 + $0x58] sm:$0xf]
      %v2797 = vld [vmem:[%s596 + $0x5c] sm:$0xf]
      %v2798 = vld [vmem:[%s596 + $0x60] sm:$0xf]
      %v2799 = vld [vmem:[%s596 + $0x64] sm:$0xf]
      %v2800 = vpack.c.bf16 %v2749, %v2749
      %v2801 = vperm.slane %v2634, 0
      %v2818 = vunpack.c.l.b16 %v2784
      %v2819 = vunpack.c.l.b16 %v2785
      %v2820 = vunpack.c.l.b16 %v2786
      %v2821 = vunpack.c.l.b16 %v2787
      %v2822 = vunpack.c.l.b16 %v2788
      %v2823 = vunpack.c.l.b16 %v2789
      %v2824 = vunpack.c.l.b16 %v2790
      %v2825 = vunpack.c.l.b16 %v2791
      %v2826 = vunpack.c.l.b16 %v2792
      %v2827 = vunpack.c.l.b16 %v2793
      %v2828 = vunpack.c.l.b16 %v2794
      %v2829 = vunpack.c.l.b16 %v2795
      %v2830 = vunpack.c.l.b16 %v2796
      %v2831 = vunpack.c.l.b16 %v2797
      %v2832 = vunpack.c.l.b16 %v2798
      %v2833 = vunpack.c.l.b16 %v2799
      %v2834 = vpack.c.b16 %v2819, %v2818
      %v2835 = vpack.c.b16 %v2821, %v2820
      %v2836 = vpack.c.b16 %v2823, %v2822
      %v2837 = vpack.c.b16 %v2825, %v2824
      %v2838 = vpack.c.b16 %v2827, %v2826
      %v2839 = vpack.c.b16 %v2829, %v2828
      %v2840 = vpack.c.b16 %v2831, %v2830
      %v2841 = vpack.c.b16 %v2833, %v2832
      %2850 = vmatpush.bf16.msra.mxu0 %v2841
      %2851 = vmatpush.bf16.msra.mxu0 %v2840
      %2852 = vmatpush.bf16.msra.mxu0 %v2839
      %2853 = vmatpush.bf16.msra.mxu0 %v2838
      %2854 = vmatpush.bf16.msra.mxu0 %v2837
      %2855 = vmatpush.bf16.msra.mxu0 %v2836
      %2856 = vmatpush.bf16.msra.mxu0 %v2835
      %2857 = vmatpush.bf16.msra.mxu0 %v2834
      %2858 = vmatmul.bf16.gmra.mxu0 %v2800
      %v2859 = vpop.f32.mrf.mxu0
      %v2860 = vadd.f32 %v2801, %v2859
      %v2861 = vpop.f32.mrf.mxu0
      %2862 = vdwg.mxu0
      %v2863 = vxor.u32 %v2860, 2147483648
      %v2864 = vmul.f32 %v2863, 1.442695
      %v2865 = vpow.pop %v2864
      %v2866 = vadd.f32 %v2865, 1.0
      %v2867 = vrcp.pop %v2866
      %v2868 = vmul.f32 %v2866, %v2867
      %v2869 = vsub.f32 1.0, %v2868
      %v2870 = vmul.f32 %v2867, %v2869
      %v2871 = vadd.f32 %v2867, %v2870
      %vm2872 = vweird.f32 %v2866
      %vm2873 = vweird.f32 %v2867
      %vm2874 = vmor %vm2872, %vm2873
      %v2875 = vsel %vm2874, %v2867, %v2871
      %v2876 = vand.u32 2147483647, %v2866
      %vm2877 = vcmp.eq.f32.partialorder %v2876, 8.507059e+37
      %v2878 = vand.u32 %v2866, 2147483648
      %v2879 = vor.u32 1.1754944e-38, %v2878
      %v2880 = vsel %vm2877, %v2879, %v2875
      %v2881 = vmul.f32 1.0, %v2880
      %v2882 = vmul.f32 %v2776, %v2881
      %v2883 = vmul.f32 %v2778, %v2881
      %v2884 = vmul.f32 %v2781, %v2881
      %v2885 = vxor.u32 %v2749, 2147483648
      %v2886 = vmul.f32 %v2885, 1.442695
      %v2887 = vpow.pop %v2886
      %v2888 = vadd.f32 %v2887, 1.0
      %v2889 = vrcp.pop %v2888
      %v2890 = vmul.f32 %v2888, %v2889
      %v2891 = vsub.f32 1.0, %v2890
      %v2892 = vmul.f32 %v2889, %v2891
      %v2893 = vadd.f32 %v2889, %v2892
      %vm2894 = vweird.f32 %v2888
      %vm2895 = vweird.f32 %v2889
      %vm2896 = vmor %vm2894, %vm2895
      %v2897 = vsel %vm2896, %v2889, %v2893
      %v2898 = vand.u32 2147483647, %v2888
      %vm2899 = vcmp.eq.f32.partialorder %v2898, 8.507059e+37
      %v2900 = vand.u32 %v2888, 2147483648
      %v2901 = vor.u32 1.1754944e-38, %v2900
      %v2902 = vsel %vm2899, %v2901, %v2897
      %v2903 = vmul.f32 1.0, %v2902
      %v2904 = vmul.f32 %v2749, %v2903
      %v2905 = vld [vmem:[%s606 + $0xc] sm:$0x1]
      %v2906 = vld [vmem:[%s606 + $0xd] sm:$0x1]
      %v2907 = vld [vmem:[%s601] sm:$0xf]
      %v2908 = vld [vmem:[%s601 + $0x4] sm:$0xf]
      %v2909 = vpack.c.bf16 %v2883, %v2882
      %v2910 = vpack.c.bf16 %v2884, %v2884
      %v2913 = vunpack.c.l.b16 %v2907
      %v2914 = vunpack.c.l.b16 %v2908
      %v2915 = vpack.c.b16 %v2914, %v2913
      %v2918 = vsel %vm2531, %v2909, 0
      %v2921 = vsel %vm2531, %v2910, 0
      %2923 = vmatpush.bf16.msra.mxu0 0
      %2924 = vmatpush.bf16.msra.mxu0 0
      %2925 = vmatpush.bf16.msra.mxu0 0
      %2926 = vmatpush.bf16.msra.mxu0 0
      %2927 = vmatpush.bf16.msra.mxu0 0
      %2928 = vmatpush.bf16.msra.mxu0 0
      %2929 = vmatpush.bf16.msra.mxu0 0
      %2930 = vmatpush.bf16.msra.mxu0 %v2915
      %2931 = vmatmul.bf16.gmra.mxu0 %v2918
      %v2932 = vpop.f32.mrf.mxu0
      %v2933 = vadd.f32 0.0, %v2932
      %v2934 = vpop.f32.mrf.mxu0
      %v2935 = vadd.f32 0.0, %v2934
      %2936 = vmatmul.bf16.gmra.mxu0 %v2921
      %v2937 = vpop.f32.mrf.mxu0
      %v2938 = vadd.f32 0.0, %v2937
      %v2939 = vpop.f32.mrf.mxu0
      %2940 = vdwg.mxu0
      %v2941 = vmul.f32 %v2933, %v2933
      %v2942 = vmul.f32 %v2935, %v2935
      %v2943 = vadd.f32 %v2941, %v2942
      %v2944 = vmul.f32 %v2938, %v2938
      %v2945 = vadd.f32 %v2943, %v2944
      %v2946 = vmax.f32 %v2945, 1e-08
      %v2947 = vrsqrt.pop %v2946
      %v2948 = vmul.f32 %v2947, %v2946
      %v2949 = vmul.f32 %v2948, %v2947
      %v2950 = vmul.f32 0.5, %v2949
      %v2951 = vsub.f32 1.5, %v2950
      %v2952 = vmul.f32 %v2947, %v2951
      %v2953 = vmul.f32 %v2946, %v2952
      %vm2954 = vcmp.eq.f32.partialorder %v2946, inf
      %v2955 = vsel %vm2954, %v2946, %v2953
      %vm2956 = vcmp.eq.f32.partialorder %v2946, 0.0
      %v2957 = vand.u32 %v2946, 2147483648
      %v2958 = vsel %vm2956, %v2957, %v2955
      %v2959 = vld [vmem:[%s601 + $0x10] sm:$0xf]
      %v2960 = vld [vmem:[%s601 + $0x14] sm:$0xf]
      %v2961 = vld [vmem:[%s601 + $0x18] sm:$0xf]
      %v2962 = vld [vmem:[%s601 + $0x1c] sm:$0xf]
      %v2963 = vld [vmem:[%s601 + $0x20] sm:$0xf]
      %v2964 = vld [vmem:[%s601 + $0x24] sm:$0xf]
      %v2965 = vld [vmem:[%s601 + $0x28] sm:$0xf]
      %v2966 = vld [vmem:[%s601 + $0x2c] sm:$0xf]
      %v2967 = vld [vmem:[%s601 + $0x30] sm:$0xf]
      %v2968 = vld [vmem:[%s601 + $0x34] sm:$0xf]
      %v2969 = vld [vmem:[%s601 + $0x38] sm:$0xf]
      %v2970 = vld [vmem:[%s601 + $0x3c] sm:$0xf]
      %v2971 = vld [vmem:[%s601 + $0x40] sm:$0xf]
      %v2972 = vld [vmem:[%s601 + $0x44] sm:$0xf]
      %v2973 = vld [vmem:[%s601 + $0x48] sm:$0xf]
      %v2974 = vld [vmem:[%s601 + $0x4c] sm:$0xf]
      %v2975 = vpack.c.bf16 %v2904, %v2904
      %v2992 = vunpack.c.l.b16 %v2959
      %v2993 = vunpack.c.l.b16 %v2960
      %v2994 = vunpack.c.l.b16 %v2961
      %v2995 = vunpack.c.l.b16 %v2962
      %v2996 = vunpack.c.l.b16 %v2963
      %v2997 = vunpack.c.l.b16 %v2964
      %v2998 = vunpack.c.l.b16 %v2965
      %v2999 = vunpack.c.l.b16 %v2966
      %v3000 = vunpack.c.l.b16 %v2967
      %v3001 = vunpack.c.l.b16 %v2968
      %v3002 = vunpack.c.l.b16 %v2969
      %v3003 = vunpack.c.l.b16 %v2970
      %v3004 = vunpack.c.l.b16 %v2971
      %v3005 = vunpack.c.l.b16 %v2972
      %v3006 = vunpack.c.l.b16 %v2973
      %v3007 = vunpack.c.l.b16 %v2974
      %v3008 = vpack.c.b16 %v2993, %v2992
      %v3009 = vpack.c.b16 %v2995, %v2994
      %v3010 = vpack.c.b16 %v2997, %v2996
      %v3011 = vpack.c.b16 %v2999, %v2998
      %v3012 = vpack.c.b16 %v3001, %v3000
      %v3013 = vpack.c.b16 %v3003, %v3002
      %v3014 = vpack.c.b16 %v3005, %v3004
      %v3015 = vpack.c.b16 %v3007, %v3006
      %3024 = vmatpush.bf16.msra.mxu0 %v3015
      %3025 = vmatpush.bf16.msra.mxu0 %v3014
      %3026 = vmatpush.bf16.msra.mxu0 %v3013
      %3027 = vmatpush.bf16.msra.mxu0 %v3012
      %3028 = vmatpush.bf16.msra.mxu0 %v3011
      %3029 = vmatpush.bf16.msra.mxu0 %v3010
      %3030 = vmatpush.bf16.msra.mxu0 %v3009
      %3031 = vmatpush.bf16.msra.mxu0 %v3008
      %3032 = vmatmul.bf16.gmra.mxu0 %v2975
      %v3033 = vpop.f32.mrf.mxu0
      %v3034 = vadd.f32 0.0, %v3033
      %v3035 = vpop.f32.mrf.mxu0
      %3036 = vdwg.mxu0
      %v3037 = vperm.slane %v2905, 0
      %v3038 = vadd.f32 %v3037, %v3034
      %v3039 = vld [vmem:[%s601 + $0x50] sm:$0xf]
      %v3040 = vld [vmem:[%s601 + $0x54] sm:$0xf]
      %v3041 = vpack.c.bf16 %v2958, %v2958
      %v3044 = vunpack.c.l.b16 %v3039
      %v3045 = vunpack.c.l.b16 %v3040
      %v3046 = vpack.c.b16 %v3045, %v3044
      %v3049 = vsel %vm2531, %v3041, 0
      %3051 = vmatpush.bf16.msra.mxu0 0
      %3052 = vmatpush.bf16.msra.mxu0 0
      %3053 = vmatpush.bf16.msra.mxu0 0
      %3054 = vmatpush.bf16.msra.mxu0 0
      %3055 = vmatpush.bf16.msra.mxu0 0
      %3056 = vmatpush.bf16.msra.mxu0 0
      %3057 = vmatpush.bf16.msra.mxu0 0
      %3058 = vmatpush.bf16.msra.mxu0 %v3046
      %3059 = vmatmul.bf16.gmra.mxu0 %v3049
      %v3060 = vpop.f32.mrf.mxu0
      %v3061 = vadd.f32 0.0, %v3060
      %v3062 = vpop.f32.mrf.mxu0
      %3063 = vdwg.mxu0
      %v3064 = vadd.f32 %v3038, %v3061
      %v3065 = vld [vmem:[%s601 + $0x8] sm:$0xf]
      %v3066 = vld [vmem:[%s601 + $0xc] sm:$0xf]
      %v3067 = vpack.c.bf16 %v2935, %v2933
      %v3068 = vpack.c.bf16 %v2938, %v2938
      %v3071 = vunpack.c.l.b16 %v3065
      %v3072 = vunpack.c.l.b16 %v3066
      %v3073 = vpack.c.b16 %v3072, %v3071
      %v3076 = vsel %vm2531, %v3067, 0
      %v3079 = vsel %vm2531, %v3068, 0
      %3081 = vmatpush.bf16.msra.mxu0 0
      %3082 = vmatpush.bf16.msra.mxu0 0
      %3083 = vmatpush.bf16.msra.mxu0 0
      %3084 = vmatpush.bf16.msra.mxu0 0
      %3085 = vmatpush.bf16.msra.mxu0 0
      %3086 = vmatpush.bf16.msra.mxu0 0
      %3087 = vmatpush.bf16.msra.mxu0 0
      %3088 = vmatpush.bf16.msra.mxu0 %v3073
      %3089 = vmatmul.bf16.gmra.mxu0 %v3076
      %v3090 = vpop.f32.mrf.mxu0
      %v3091 = vadd.f32 0.0, %v3090
      %v3092 = vpop.f32.mrf.mxu0
      %v3093 = vadd.f32 0.0, %v3092
      %3094 = vmatmul.bf16.gmra.mxu0 %v3079
      %v3095 = vpop.f32.mrf.mxu0
      %v3096 = vadd.f32 0.0, %v3095
      %v3097 = vpop.f32.mrf.mxu0
      %3098 = vdwg.mxu0
      %v3099 = vld [vmem:[%s601 + $0x58] sm:$0xf]
      %v3100 = vld [vmem:[%s601 + $0x5c] sm:$0xf]
      %v3101 = vld [vmem:[%s601 + $0x60] sm:$0xf]
      %v3102 = vld [vmem:[%s601 + $0x64] sm:$0xf]
      %v3103 = vpack.c.bf16 %v3064, %v3064
      %v3104 = vperm.slane %v2906, 0
      %v3109 = vunpack.c.l.b16 %v3099
      %v3110 = vunpack.c.l.b16 %v3100
      %v3111 = vunpack.c.l.b16 %v3101
      %v3112 = vunpack.c.l.b16 %v3102
      %v3113 = vpack.c.b16 %v3110, %v3109
      %v3114 = vpack.c.b16 %v3112, %v3111
      %v3118 = vsel %vm1641, %v3103, 0
      %3120 = vmatpush.bf16.msra.mxu0 0
      %3121 = vmatpush.bf16.msra.mxu0 0
      %3122 = vmatpush.bf16.msra.mxu0 0
      %3123 = vmatpush.bf16.msra.mxu0 0
      %3124 = vmatpush.bf16.msra.mxu0 0
      %3125 = vmatpush.bf16.msra.mxu0 0
      %3126 = vmatpush.bf16.msra.mxu0 %v3114
      %3127 = vmatpush.bf16.msra.mxu0 %v3113
      %3128 = vmatmul.bf16.gmra.mxu0 %v3118
      %v3129 = vpop.f32.mrf.mxu0
      %v3130 = vadd.f32 %v3104, %v3129
      %v3131 = vpop.f32.mrf.mxu0
      %3132 = vdwg.mxu0
      %v3133 = vxor.u32 %v3130, 2147483648
      %v3134 = vmul.f32 %v3133, 1.442695
      %v3135 = vpow.pop %v3134
      %v3136 = vadd.f32 %v3135, 1.0
      %v3137 = vrcp.pop %v3136
      %v3138 = vmul.f32 %v3136, %v3137
      %v3139 = vsub.f32 1.0, %v3138
      %v3140 = vmul.f32 %v3137, %v3139
      %v3141 = vadd.f32 %v3137, %v3140
      %vm3142 = vweird.f32 %v3136
      %vm3143 = vweird.f32 %v3137
      %vm3144 = vmor %vm3142, %vm3143
      %v3145 = vsel %vm3144, %v3137, %v3141
      %v3146 = vand.u32 2147483647, %v3136
      %vm3147 = vcmp.eq.f32.partialorder %v3146, 8.507059e+37
      %v3148 = vand.u32 %v3136, 2147483648
      %v3149 = vor.u32 1.1754944e-38, %v3148
      %v3150 = vsel %vm3147, %v3149, %v3145
      %v3151 = vmul.f32 1.0, %v3150
      %v3152 = vmul.f32 %v3091, %v3151
      %v3153 = vmul.f32 %v3093, %v3151
      %v3154 = vmul.f32 %v3096, %v3151
      %v3155 = vadd.f32 %v2632, %v3064
      %3159 = vrot.lane.b32.xlu0 %v3152, 32
      %v3160 = vpop.permute.xlu0 %3159
      %3161 = vrot.lane.b32.xlu0 %v3153, 32
      %v3162 = vpop.permute.xlu0 %3161
      %3163 = vrot.lane.b32.xlu0 %v3154, 32
      %v3164 = vpop.permute.xlu0 %3163
      %v3168 = vadd.f32 %v2597, %v3160
      %v3169 = vadd.f32 %v2598, %v3162
      %v3170 = vadd.f32 %v2599, %v3164
      %v3171 = vld [vmem:[%s606 + $0x2] sm:$0x1]
      %v3172 = vld [vmem:[%s606 + $0x3] sm:$0x1]
      %v3173 = vmul.f32 %v3168, %v3168
      %v3174 = vmul.f32 %v3169, %v3169
      %v3175 = vadd.f32 %v3173, %v3174
      %v3176 = vmul.f32 %v3170, %v3170
      %v3177 = vadd.f32 %v3175, %v3176
      %v3178 = vmax.f32 %v3177, 1e-08
      %3180 = vrot.lane.b32.xlu0 %v3178, 96
      %v3181 = vpop.permute.xlu0 %3180
      %v3183 = vsel %vm1383, %v3181, 0.0
      %3184 = vadd.xlane.f32.xlu0 %v3183
      %v3185 = vpop.xlane.xlu0 %3184
      %v3186 = vmul.f32 %v3185, %v2580
      %v3187 = vrsqrt.pop %v3186
      %v3188 = vmul.f32 %v3187, %v3186
      %v3189 = vmul.f32 %v3188, %v3187
      %v3190 = vmul.f32 0.5, %v3189
      %v3191 = vsub.f32 1.5, %v3190
      %v3192 = vmul.f32 %v3187, %v3191
      %vm3193 = vweird.f32 %v3186
      %vm3194 = vweird.f32 %v3187
      %vm3195 = vmor %vm3193, %vm3194
      %v3196 = vsel %vm3195, %v3187, %v3192
      %3198 = vset.pattern.permute.xlu0 0
      %3199 = vperm.xlu0 %3198, %v3196
      %v3200 = vpop.permute.xlu0 %3199
      %v3202 = vmul.f32 %v3168, %v3200
      %v3203 = vmul.f32 %v3169, %v3200
      %v3204 = vmul.f32 %v3170, %v3200
      %v3205 = vsel %vm1641, %v3155, 0.0
      %3206 = vadd.xlane.f32.xlu0 %v3205
      %v3207 = vpop.xlane.xlu0 %3206
      %v3208 = vmul.f32 %v3207, %v2609
      %v3209 = vsub.f32 %v3155, %v3208
      %v3210 = vmul.f32 %v3209, %v3209
      %v3211 = vsel %vm1641, %v3210, 0.0
      %3212 = vadd.xlane.f32.xlu0 %v3211
      %v3213 = vpop.xlane.xlu0 %3212
      %v3214 = vmul.f32 %v3213, %v2609
      %v3215 = vadd.f32 %v3214, 1e-05
      %v3216 = vrsqrt.pop %v3215
      %v3217 = vmul.f32 %v3216, %v3215
      %v3218 = vmul.f32 %v3217, %v3216
      %v3219 = vmul.f32 0.5, %v3218
      %v3220 = vsub.f32 1.5, %v3219
      %v3221 = vmul.f32 %v3216, %v3220
      %vm3222 = vweird.f32 %v3215
      %vm3223 = vweird.f32 %v3216
      %vm3224 = vmor %vm3222, %vm3223
      %v3225 = vsel %vm3224, %v3216, %v3221
      %v3226 = vmul.f32 %v3209, %v3225
      %v3227 = vperm.slane %v3171, 0
      %v3228 = vmul.f32 %v3226, %v3227
      %v3229 = vperm.slane %v3172, 0
      %v3230 = vadd.f32 %v3228, %v3229
      %3232 = vrot.lane.b32.xlu0 %v3203, 8
      %v3233 = vpop.permute.xlu0 %3232
      %3236 = vrot.lane.b32.xlu0 %v3204, 16
      %v3237 = vpop.permute.xlu0 %3236
      %v3239 = vsel %vm1641, %v3230, %v3202
      %v3240 = vsel %vm2524, %v3239, %v3233
      %v3241 = vsel %vm2527, %v3240, %v3237
      %vm3242 = vcmask 457728
      %3243 = vst.msk [vmem:[#allocation2] sm:$0xff] %vm3242, %v3241
      %p3244 = scmp.eq.s32.totalorder %s27, 1
      // Predicated region
      $region89: #{_lambda_.1} parent=83 // pred_check
        %p3245 = pneg %p3244
      $region90: #{_lambda_.1} parent=83 // pred_check_branch
        %3247 = sbr.rel (%p3245) target = $region92
      $region91: #{_lambda_.1} parent=83 // pred_region
        %v3248 = vld [vmem:[%s9 + $0x4] sm:$0x1]
        %v3249 = vld [vmem:[%s9 + $0x5] sm:$0x1]
        %v3250 = vmul.f32 %v3202, %v3202
        %v3251 = vmul.f32 %v3203, %v3203
        %v3252 = vadd.f32 %v3250, %v3251
        %v3253 = vmul.f32 %v3204, %v3204
        %v3254 = vadd.f32 %v3252, %v3253
        %v3255 = vmax.f32 %v3254, 1e-08
        %3257 = vrot.lane.b32.xlu0 %v3255, 96
        %v3258 = vpop.permute.xlu0 %3257
        %v3260 = vsel %vm1383, %v3258, 0.0
        %3261 = vadd.xlane.f32.xlu0 %v3260
        %v3262 = vpop.xlane.xlu0 %3261
        %v3263 = vmul.f32 %v3262, %v2580
        %v3264 = vrsqrt.pop %v3263
        %v3265 = vmul.f32 %v3264, %v3263
        %v3266 = vmul.f32 %v3265, %v3264
        %v3267 = vmul.f32 0.5, %v3266
        %v3268 = vsub.f32 1.5, %v3267
        %v3269 = vmul.f32 %v3264, %v3268
        %vm3270 = vweird.f32 %v3263
        %vm3271 = vweird.f32 %v3264
        %vm3272 = vmor %vm3270, %vm3271
        %v3273 = vsel %vm3272, %v3264, %v3269
        %3275 = vset.pattern.permute.xlu0 0
        %3276 = vperm.xlu0 %3275, %v3273
        %v3277 = vpop.permute.xlu0 %3276
        %v3279 = vmul.f32 %v3202, %v3277
        %v3280 = vmul.f32 %v3203, %v3277
        %v3281 = vmul.f32 %v3204, %v3277
        %v3282 = vsel %vm1641, %v3230, 0.0
        %3283 = vadd.xlane.f32.xlu0 %v3282
        %v3284 = vpop.xlane.xlu0 %3283
        %v3285 = vmul.f32 %v3284, %v2609
        %v3286 = vsub.f32 %v3230, %v3285
        %v3287 = vmul.f32 %v3286, %v3286
        %v3288 = vsel %vm1641, %v3287, 0.0
        %3289 = vadd.xlane.f32.xlu0 %v3288
        %v3290 = vpop.xlane.xlu0 %3289
        %v3291 = vmul.f32 %v3290, %v2609
        %v3292 = vadd.f32 %v3291, 1e-05
        %v3293 = vrsqrt.pop %v3292
        %v3294 = vmul.f32 %v3293, %v3292
        %v3295 = vmul.f32 %v3294, %v3293
        %v3296 = vmul.f32 0.5, %v3295
        %v3297 = vsub.f32 1.5, %v3296
        %v3298 = vmul.f32 %v3293, %v3297
        %vm3299 = vweird.f32 %v3292
        %vm3300 = vweird.f32 %v3293
        %vm3301 = vmor %vm3299, %vm3300
        %v3302 = vsel %vm3301, %v3293, %v3298
        %v3303 = vmul.f32 %v3286, %v3302
        %v3304 = vperm.slane %v3248, 0
        %v3305 = vmul.f32 %v3303, %v3304
        %v3306 = vperm.slane %v3249, 0
        %v3307 = vadd.f32 %v3305, %v3306
        %v3308 = vld [vmem:[%s9 + $0xa] sm:$0x1]
        %v3309 = vld [vmem:[%s9 + $0xb] sm:$0x1]
        %v3310 = vld [vmem:[%s8] sm:$0xf]
        %v3311 = vpack.c.bf16 %v3280, %v3279
        %v3312 = vpack.c.bf16 %v3281, %v3281
        %3315 = vrot.lane.b32.xlu0 %v3311, 96
        %v3316 = vpop.permute.xlu0 %3315
        %3317 = vrot.lane.b32.xlu0 %v3312, 96
        %v3318 = vpop.permute.xlu0 %3317
        %v3320 = vsel %vm1383, %v3316, 0
        %v3323 = vsel %vm1383, %v3318, 0
        %v3326 = vsel %vm1387, %v3310, 0
        %3328 = vmatpush.bf16.msra.mxu0 0
        %3329 = vmatpush.bf16.msra.mxu0 0
        %3330 = vmatpush.bf16.msra.mxu0 0
        %3331 = vmatpush.bf16.msra.mxu0 0
        %3332 = vmatpush.bf16.msra.mxu0 0
        %3333 = vmatpush.bf16.msra.mxu0 0
        %3334 = vmatpush.bf16.msra.mxu0 0
        %3335 = vmatpush.bf16.msra.mxu0 %v3326
        %3336 = vmatmul.bf16.gmra.mxu0 %v3320
        %v3337 = vpop.f32.mrf.mxu0
        %v3338 = vadd.f32 0.0, %v3337
        %v3339 = vpop.f32.mrf.mxu0
        %v3340 = vadd.f32 0.0, %v3339
        %3341 = vmatmul.bf16.gmra.mxu0 %v3323
        %v3342 = vpop.f32.mrf.mxu0
        %v3343 = vadd.f32 0.0, %v3342
        %v3344 = vpop.f32.mrf.mxu0
        %3345 = vdwg.mxu0
        %v3346 = vmul.f32 %v3338, %v3338
        %v3347 = vmul.f32 %v3340, %v3340
        %v3348 = vadd.f32 %v3346, %v3347
        %v3349 = vmul.f32 %v3343, %v3343
        %v3350 = vadd.f32 %v3348, %v3349
        %v3351 = vmax.f32 %v3350, 1e-08
        %v3352 = vrsqrt.pop %v3351
        %v3353 = vmul.f32 %v3352, %v3351
        %v3354 = vmul.f32 %v3353, %v3352
        %v3355 = vmul.f32 0.5, %v3354
        %v3356 = vsub.f32 1.5, %v3355
        %v3357 = vmul.f32 %v3352, %v3356
        %v3358 = vmul.f32 %v3351, %v3357
        %vm3359 = vcmp.eq.f32.partialorder %v3351, inf
        %v3360 = vsel %vm3359, %v3351, %v3358
        %vm3361 = vcmp.eq.f32.partialorder %v3351, 0.0
        %v3362 = vand.u32 %v3351, 2147483648
        %v3363 = vsel %vm3361, %v3362, %v3360
        %v3364 = vld [vmem:[%s8 + $0x10] sm:$0xf]
        %v3365 = vld [vmem:[%s8 + $0x14] sm:$0xf]
        %v3366 = vld [vmem:[%s8 + $0x18] sm:$0xf]
        %v3367 = vld [vmem:[%s8 + $0x1c] sm:$0xf]
        %v3368 = vpack.c.bf16 %v3307, %v3307
        %v3373 = vunpack.c.l.b16 %v3364
        %v3374 = vunpack.c.l.b16 %v3365
        %v3375 = vunpack.c.l.b16 %v3366
        %v3376 = vunpack.c.l.b16 %v3367
        %v3377 = vpack.c.b16 %v3374, %v3373
        %v3378 = vpack.c.b16 %v3376, %v3375
        %v3382 = vsel %vm1641, %v3368, 0
        %3384 = vmatpush.bf16.msra.mxu0 0
        %3385 = vmatpush.bf16.msra.mxu0 0
        %3386 = vmatpush.bf16.msra.mxu0 0
        %3387 = vmatpush.bf16.msra.mxu0 0
        %3388 = vmatpush.bf16.msra.mxu0 0
        %3389 = vmatpush.bf16.msra.mxu0 0
        %3390 = vmatpush.bf16.msra.mxu0 %v3378
        %3391 = vmatpush.bf16.msra.mxu0 %v3377
        %3392 = vmatmul.bf16.gmra.mxu0 %v3382
        %v3393 = vpop.f32.mrf.mxu0
        %v3394 = vadd.f32 0.0, %v3393
        %v3395 = vpop.f32.mrf.mxu0
        %3396 = vdwg.mxu0
        %v3397 = vperm.slane %v3308, 0
        %v3398 = vadd.f32 %v3397, %v3394
        %v3399 = vld [vmem:[%s8 + $0x20] sm:$0xf]
        %v3400 = vpack.c.bf16 %v3363, %v3363
        %v3402 = vsel %vm1383, %v3400, 0
        %v3405 = vsel %vm1387, %v3399, 0
        %3407 = vmatpush.bf16.msra.mxu0 0
        %3408 = vmatpush.bf16.msra.mxu0 0
        %3409 = vmatpush.bf16.msra.mxu0 0
        %3410 = vmatpush.bf16.msra.mxu0 0
        %3411 = vmatpush.bf16.msra.mxu0 0
        %3412 = vmatpush.bf16.msra.mxu0 0
        %3413 = vmatpush.bf16.msra.mxu0 0
        %3414 = vmatpush.bf16.msra.mxu0 %v3405
        %3415 = vmatmul.bf16.gmra.mxu0 %v3402
        %v3416 = vpop.f32.mrf.mxu0
        %v3417 = vadd.f32 0.0, %v3416
        %v3418 = vpop.f32.mrf.mxu0
        %3419 = vdwg.mxu0
        %v3420 = vadd.f32 %v3398, %v3417
        %v3421 = vld [vmem:[%s8 + $0x8] sm:$0xf]
        %v3422 = vpack.c.bf16 %v3340, %v3338
        %v3423 = vpack.c.bf16 %v3343, %v3343
        %v3425 = vsel %vm1383, %v3422, 0
        %v3428 = vsel %vm1383, %v3423, 0
        %v3431 = vsel %vm1387, %v3421, 0
        %3433 = vmatpush.bf16.msra.mxu0 0
        %3434 = vmatpush.bf16.msra.mxu0 0
        %3435 = vmatpush.bf16.msra.mxu0 0
        %3436 = vmatpush.bf16.msra.mxu0 0
        %3437 = vmatpush.bf16.msra.mxu0 0
        %3438 = vmatpush.bf16.msra.mxu0 0
        %3439 = vmatpush.bf16.msra.mxu0 0
        %3440 = vmatpush.bf16.msra.mxu0 %v3431
        %3441 = vmatmul.bf16.gmra.mxu0 %v3425
        %v3442 = vpop.f32.mrf.mxu0
        %v3443 = vadd.f32 0.0, %v3442
        %v3444 = vpop.f32.mrf.mxu0
        %v3445 = vadd.f32 0.0, %v3444
        %3446 = vmatmul.bf16.gmra.mxu0 %v3428
        %v3447 = vpop.f32.mrf.mxu0
        %v3448 = vadd.f32 0.0, %v3447
        %v3449 = vpop.f32.mrf.mxu0
        %3450 = vdwg.mxu0
        %v3451 = vld [vmem:[%s8 + $0x28] sm:$0xf]
        %v3452 = vpack.c.bf16 %v3420, %v3420
        %v3453 = vperm.slane %v3309, 0
        %v3455 = vsel %vm1383, %v3452, 0
        %v3458 = vsel %vm1387, %v3451, 0
        %3460 = vmatpush.bf16.msra.mxu0 0
        %3461 = vmatpush.bf16.msra.mxu0 0
        %3462 = vmatpush.bf16.msra.mxu0 0
        %3463 = vmatpush.bf16.msra.mxu0 0
        %3464 = vmatpush.bf16.msra.mxu0 0
        %3465 = vmatpush.bf16.msra.mxu0 0
        %3466 = vmatpush.bf16.msra.mxu0 0
        %3467 = vmatpush.bf16.msra.mxu0 %v3458
        %3468 = vmatmul.bf16.gmra.mxu0 %v3455
        %v3469 = vpop.f32.mrf.mxu0
        %v3470 = vadd.f32 %v3453, %v3469
        %v3471 = vpop.f32.mrf.mxu0
        %3472 = vdwg.mxu0
        %v3473 = vxor.u32 %v3470, 2147483648
        %v3474 = vmul.f32 %v3473, 1.442695
        %v3475 = vpow.pop %v3474
        %v3476 = vadd.f32 %v3475, 1.0
        %v3477 = vrcp.pop %v3476
        %v3478 = vmul.f32 %v3476, %v3477
        %v3479 = vsub.f32 1.0, %v3478
        %v3480 = vmul.f32 %v3477, %v3479
        %v3481 = vadd.f32 %v3477, %v3480
        %vm3482 = vweird.f32 %v3476
        %vm3483 = vweird.f32 %v3477
        %vm3484 = vmor %vm3482, %vm3483
        %v3485 = vsel %vm3484, %v3477, %v3481
        %v3486 = vand.u32 2147483647, %v3476
        %vm3487 = vcmp.eq.f32.partialorder %v3486, 8.507059e+37
        %v3488 = vand.u32 %v3476, 2147483648
        %v3489 = vor.u32 1.1754944e-38, %v3488
        %v3490 = vsel %vm3487, %v3489, %v3485
        %v3491 = vmul.f32 1.0, %v3490
        %v3492 = vmul.f32 %v3443, %v3491
        %v3493 = vmul.f32 %v3445, %v3491
        %v3494 = vmul.f32 %v3448, %v3491
        %v3495 = vxor.u32 %v3420, 2147483648
        %v3496 = vmul.f32 %v3495, 1.442695
        %v3497 = vpow.pop %v3496
        %v3498 = vadd.f32 %v3497, 1.0
        %v3499 = vrcp.pop %v3498
        %v3500 = vmul.f32 %v3498, %v3499
        %v3501 = vsub.f32 1.0, %v3500
        %v3502 = vmul.f32 %v3499, %v3501
        %v3503 = vadd.f32 %v3499, %v3502
        %vm3504 = vweird.f32 %v3498
        %vm3505 = vweird.f32 %v3499
        %vm3506 = vmor %vm3504, %vm3505
        %v3507 = vsel %vm3506, %v3499, %v3503
        %v3508 = vand.u32 2147483647, %v3498
        %vm3509 = vcmp.eq.f32.partialorder %v3508, 8.507059e+37
        %v3510 = vand.u32 %v3498, 2147483648
        %v3511 = vor.u32 1.1754944e-38, %v3510
        %v3512 = vsel %vm3509, %v3511, %v3507
        %v3513 = vmul.f32 1.0, %v3512
        %v3514 = vmul.f32 %v3420, %v3513
        %3516 = vrot.lane.b32.xlu0 %v3492, 8
        %v3517 = vpop.permute.xlu0 %3516
        %3520 = vrot.lane.b32.xlu0 %v3493, 10
        %v3521 = vpop.permute.xlu0 %3520
        %3524 = vrot.lane.b32.xlu0 %v3494, 12
        %v3525 = vpop.permute.xlu0 %3524
        %v3527 = vsel %vm1383, %v3514, %v3517
        %vm3528 = vcmask 80896
        %v3529 = vsel %vm3528, %v3527, %v3521
        %vm3530 = vcmask 97280
        %v3531 = vsel %vm3530, %v3529, %v3525
        %vm3532 = vcmask 113664
        %3533 = vst.msk [vmem:[%s16] sm:$0xff] %vm3532, %v3531
      $region92: #{_lambda_.1} parent=83 // pred_fallthru
        _
      // Predicated region
      $region93: #{_lambda_.1} parent=83 // pred_check
        %p3534 = pneg %p406
      $region94: #{_lambda_.1} parent=83 // pred_check_branch
        %3536 = sbr.rel (%p3534) target = $region96
      $region95: #{_lambda_.1} parent=83 // pred_region
        _
      $region96: #{_lambda_.1} parent=83 // pred_fallthru
        _
      // Predicated region
      $region97: #{_lambda_.1} parent=83 // pred_check
        %p3537 = pneg %p406
      $region98: #{_lambda_.1} parent=83 // pred_check_branch
        %3539 = sbr.rel (%p3537) target = $region100
      $region99: #{_lambda_.1} parent=83 // pred_region
        _
      $region100: #{_lambda_.1} parent=83 // pred_fallthru
        _
    $region84: #{_lambda_.1} parent=5 // pred_fallthru
      _
    %p3540 = scmp.le.s32.totalorder 2, %s22
    // Predicated region
    $region101: #{_lambda_.1} parent=5 // pred_check
      %p3541 = pneg %p3540
    $region102: #{_lambda_.1} parent=5 // pred_check_branch
      %3543 = sbr.rel (%p3541) target = $region104
    $region103: #{_lambda_.1} parent=5 // pred_region
      %s3544 = ssub.s32 %s22, 2
    $region104: #{_lambda_.1} parent=5 // pred_fallthru
      _
  $region6: #{_lambda_.1} parent=0 // loop_footer
    %s26 = sadd.s32 1, %s22
  $region7: #{_lambda_.1} parent=0 // loop_footer_branch
    %21 = sbr.rel target = $region3
  $region8: #{_lambda_.1} parent=0 // loop_exit
    _

</llo_original>
